<compile_context>
chip_gen: v7x
topology: tpu7x:2x2x1
jax: 0.10.0
libtpu: 0.0.40
codegen_flags: <defaults>
</compile_context>

<pallas_src>
import jax
import jax.numpy as jnp
import numpy as np
from jax.experimental import pallas as pl
from jax.experimental.pallas import tpu as pltpu

_EPS = 1e-5


def _make_fused_conv_kernel(*, stride, H, W, Cin, Cout,
                            has_shortcut, has_residual, emit_stats):
    """Fused BN affine + ReLU + 3x3 conv + bias
       [+ shortcut BN + 1x1 conv] [+ residual add] [+ BN2 partial sums]."""
    s = stride
    Ho, Wo = H // s, W // s
    Wc, Cp = W // s, s * Cin          # column-phase-packed width / channels
    Hp = H + 2                        # padded rows in the VMEM scratch

    def kernel(*refs):
        it = iter(refs)
        x_ref = next(it)                         # (1, H, Wc, Cp)    bf16
        sc1_ref = next(it)                       # (1, 1, Cp)        f32
        sh1_ref = next(it)                       # (1, 1, Cp)        f32
        w1_ref = next(it)                        # (3, 3*Cin, Cout)  bf16
        b1_ref = next(it)                        # (1, Cout)         f32
        if has_shortcut:
            scs_ref = next(it)                   # (1, 1, Cin)       f32
            shs_ref = next(it)                   # (1, 1, Cin)       f32
            ws_ref = next(it)                    # (Cin, Cout)       bf16
        if has_residual:
            res_ref = next(it)                   # (1, Ho, Wo, Cout) bf16
        out_ref = next(it)                       # (1, Ho, Wo, Cout)
        if has_shortcut:
            sout_ref = next(it)                  # (1, Ho, Wo, Cout) bf16
        if emit_stats:
            stats_ref = next(it)                 # (1, 2, Cout)      f32
        pad_ref = next(it)                       # scratch (Hp, Wc+2, Cp) f32

        # Upcast once; all element-wise math stays f32 (v5e-friendly).
        x = x_ref[0].astype(jnp.float32)         # (H, Wc, Cp)

        # BN1 affine (stats pre-folded into scale/shift) + ReLU.
        xn = jnp.maximum(x * sc1_ref[...] + sh1_ref[...], 0.0)

        # Zero-padded copy in the VMEM scratch.  The border is re-zeroed every
        # step on purpose: with "parallel" megacore sharding a program_id==0
        # guard would never run on the second core's scratch.
        zrow = jnp.zeros((1, Wc + 2, Cp), jnp.float32)
        zcol = jnp.zeros((Hp, 1, Cp), jnp.float32)
        pad_ref[0:1, :, :] = zrow
        pad_ref[Hp - 1:Hp, :, :] = zrow
        pad_ref[:, 0:1, :] = zcol
        pad_ref[:, Wc + 1:Wc + 2, :] = zcol
        pad_ref[1:H + 1, 1:Wc + 1, :] = xn

        # 3x3 conv as 3 MXU matmuls (kx taps fused along K = 3*Cin).
        # bf16 MXU inputs, f32 accumulation.
        acc = jnp.zeros((Ho * Wo, Cout), jnp.float32)
        for ky in range(3):
            if s == 1:
                rows = pad_ref[ky:ky + Ho, :, :]                      # (Ho, Wc+2, Cp)
            else:
                rows = pad_ref[ky:ky + s * Ho, :, :]                  # (s*Ho, Wc+2, Cp)
                rows = rows.reshape(Ho, s, Wc + 2, Cp)[:, 0]          # rows s*oy + ky
            if s == 1:
                taps = (rows[:, 0:Wo, :],                             # kx = 0
                        rows[:, 1:Wo + 1, :],                         # kx = 1
                        rows[:, 2:Wo + 2, :])                         # kx = 2
            else:  # s == 2: column-phase-packed layout
                taps = (rows[:, 0:Wo, Cin:2 * Cin],                   # kx = 0 (col 2*ox-1)
                        rows[:, 1:Wo + 1, 0:Cin],                     # kx = 1 (col 2*ox)
                        rows[:, 1:Wo + 1, Cin:2 * Cin])               # kx = 2 (col 2*ox+1)
            patch = jnp.concatenate(taps, axis=-1)                    # (Ho, Wo, 3*Cin)
            patch = patch.reshape(Ho * Wo, 3 * Cin).astype(jnp.bfloat16)
            acc = acc + jnp.dot(patch, w1_ref[ky],
                                preferred_element_type=jnp.float32)

        y = acc + b1_ref[...]                                         # (Ho*Wo, Cout) f32

        if emit_stats:
            # Per-image partial sums for the BN2 batch statistics; folded to
            # mean/var in XLA (no extra full HBM pass over y1).
            s1 = jnp.sum(y, axis=0, keepdims=True)                    # (1, Cout)
            s2 = jnp.sum(y * y, axis=0, keepdims=True)                # (1, Cout)
            stats_ref[0:1, 0:1, :] = s1.reshape(1, 1, Cout)
            stats_ref[0:1, 1:2, :] = s2.reshape(1, 1, Cout)

        y = y.reshape(Ho, Wo, Cout)
        if has_residual:
            y = y + res_ref[0].astype(jnp.float32)
        out_ref[0] = y.astype(out_ref.dtype)

        # Fused shortcut branch: slice rows/phase first, then BN_s affine
        # (no ReLU) + 1x1 conv at stride s.
        if has_shortcut:
            if s == 1:
                xs = x                                                # (H, W, Cin)
            else:
                xs = x.reshape(Ho, s, Wc, Cp)[:, 0]                   # rows s*oy
                xs = xs[:, :, 0:Cin]                                  # phase 0 -> cols s*ox
            xs = xs * scs_ref[...] + shs_ref[...]
            sc = jnp.dot(xs.reshape(Ho * Wo, Cin).astype(jnp.bfloat16),
                         ws_ref[...],
                         preferred_element_type=jnp.float32)
            sout_ref[0] = sc.reshape(Ho, Wo, Cout).astype(sout_ref.dtype)

    return kernel


def _padded_block_bytes(shape, itemsize):
    """VMEM block-buffer bytes with native (sublane, lane) tiling padding."""
    sub = 8 if itemsize >= 4 else 32 // itemsize
    dims = list(shape)
    dims[-1] = -(-dims[-1] // 128) * 128
    if len(dims) >= 2:
        dims[-2] = -(-dims[-2] // sub) * sub
    total = itemsize
    for d in dims:
        total *= d
    return total


def _conv_stage(x, scale1, shift1, w1r, b1, *, stride, scale_s=None, shift_s=None,
                ws=None, residual=None, emit_stats=False, out_dtype=jnp.float32):
    """One fused BN+ReLU+3x3-conv stage (optionally fused shortcut / residual / stats)."""
    N, H, W, Cin = x.shape
    Cout = w1r.shape[-1]
    s = stride
    assert H % s == 0 and W % s == 0, "H, W must be divisible by stride"
    Ho, Wo = H // s, W // s
    Wc, Cp = W // s, s * Cin
    has_shortcut = ws is not None
    has_residual = residual is not None

    # Column-phase packing for strided convs: (N,H,W,C) -> (N,H,W/s,s*C) (free XLA reshape).
    if s != 1:
        x_in = x.reshape(N, H, Wc, Cp)
        scale1 = jnp.tile(scale1, s)
        shift1 = jnp.tile(shift1, s)
    else:
        x_in = x

    def vec(v):  # per-channel vectors as (1,1,C) f32 blocks
        return v.reshape(1, 1, -1).astype(jnp.float32)

    args = [x_in.astype(jnp.bfloat16),
            vec(scale1), vec(shift1),
            w1r.astype(jnp.bfloat16),
            b1.reshape(1, -1).astype(jnp.float32)]
    in_specs = [
        pl.BlockSpec((1, H, Wc, Cp), lambda n: (n, 0, 0, 0)),
        pl.BlockSpec((1, 1, Cp), lambda n: (0, 0, 0)),
        pl.BlockSpec((1, 1, Cp), lambda n: (0, 0, 0)),
        pl.BlockSpec((3, 3 * Cin, Cout), lambda n: (0, 0, 0)),
        pl.BlockSpec((1, Cout), lambda n: (0, 0)),
    ]
    blocks = [((1, H, Wc, Cp), 2), ((1, 1, Cp), 4), ((1, 1, Cp), 4),
              ((3, 3 * Cin, Cout), 2), ((1, Cout), 4)]

    if has_shortcut:
        # scale/shift stay per-Cin (the kernel slices rows/phase before the affine).
        args += [vec(scale_s), vec(shift_s), ws.astype(jnp.bfloat16)]
        in_specs += [
            pl.BlockSpec((1, 1, Cin), lambda n: (0, 0, 0)),
            pl.BlockSpec((1, 1, Cin), lambda n: (0, 0, 0)),
            pl.BlockSpec((Cin, Cout), lambda n: (0, 0)),
        ]
        blocks += [((1, 1, Cin), 4), ((1, 1, Cin), 4), ((Cin, Cout), 2)]
    if has_residual:
        args.append(residual.astype(jnp.bfloat16))
        in_specs.append(pl.BlockSpec((1, Ho, Wo, Cout), lambda n: (n, 0, 0, 0)))
        blocks.append(((1, Ho, Wo, Cout), 2))

    out_block = pl.BlockSpec((1, Ho, Wo, Cout), lambda n: (n, 0, 0, 0))
    out_shapes = [jax.ShapeDtypeStruct((N, Ho, Wo, Cout), out_dtype)]
    out_specs = [out_block]
    blocks.append(((1, Ho, Wo, Cout), jnp.dtype(out_dtype).itemsize))
    if has_shortcut:
        out_shapes.append(jax.ShapeDtypeStruct((N, Ho, Wo, Cout), jnp.bfloat16))
        out_specs.append(out_block)
        blocks.append(((1, Ho, Wo, Cout), 2))
    if emit_stats:
        out_shapes.append(jax.ShapeDtypeStruct((N, 2, Cout), jnp.float32))
        out_specs.append(pl.BlockSpec((1, 2, Cout), lambda n: (n, 0, 0)))
        blocks.append(((1, 2, Cout), 4))

    # VMEM budget from the actual (tiling-padded, double-buffered) block bytes
    # plus the padded scratch, clamped against this generation's capacity
    # (64 MiB on v7x, 128 MiB on v5e/v6e).
    need = 2 * sum(_padded_block_bytes(shp, isz) for shp, isz in blocks)
    need += _padded_block_bytes((H + 2, Wc + 2, Cp), 4)
    try:
        cap = int(getattr(pltpu.get_tpu_info(), "vmem_capacity_bytes", 64 << 20))
    except Exception:
        cap = 64 << 20
    vmem_limit = int(min(max(need + (4 << 20), 16 << 20), int(cap * 0.9)))

    flops = 2 * N * Ho * Wo * Cout * 9 * Cin
    if has_shortcut:
        flops += 2 * N * Ho * Wo * Cout * Cin
    bytes_accessed = (2 * N * H * Wc * Cp                                   # x (bf16)
                      + N * Ho * Wo * Cout * jnp.dtype(out_dtype).itemsize  # main out
                      + (2 * N * Ho * Wo * Cout if has_shortcut else 0)     # shortcut out
                      + (2 * N * Ho * Wo * Cout if has_residual else 0)     # residual in
                      + 2 * 9 * Cin * Cout                                  # w1 (bf16)
                      + (2 * Cin * Cout if has_shortcut else 0)             # ws (bf16)
                      + 4 * (2 * Cp + Cout + (2 * Cin if has_shortcut else 0))
                      + (4 * N * 2 * Cout if emit_stats else 0))            # stats out

    kernel = _make_fused_conv_kernel(stride=s, H=H, W=W, Cin=Cin, Cout=Cout,
                                     has_shortcut=has_shortcut,
                                     has_residual=has_residual,
                                     emit_stats=emit_stats)
    res = pl.pallas_call(
        kernel,
        out_shape=tuple(out_shapes),
        grid=(N,),
        in_specs=in_specs,
        out_specs=tuple(out_specs),
        scratch_shapes=[pltpu.VMEM((H + 2, Wc + 2, Cp), jnp.float32)],
        compiler_params=pltpu.CompilerParams(
            dimension_semantics=("parallel",),     # shards the batch over v7x's 2 TCs
            vmem_limit_bytes=vmem_limit),
        cost_estimate=pl.CostEstimate(flops=int(flops), transcendentals=0,
                                      bytes_accessed=int(bytes_accessed)),
    )(*args)
    if not isinstance(res, (tuple, list)):
        res = (res,)
    return tuple(res)


def res_block_forward(x_nchw, p, stride):
    """Pallas implementation of ResBlock.forward (training-mode BN). NCHW in/out."""
    x = jnp.transpose(x_nchw, (0, 2, 3, 1)).astype(jnp.float32)        # NCHW -> NHWC
    N, H, W, Cin = x.shape
    Cout = p["conv1_w"].shape[0]
    Ho, Wo = H // stride, W // stride

    # conv weights: torch OIHW -> (ky, kx*Cin + c, o) for the kx-fused matmuls
    def conv3x3_w(w):
        return jnp.transpose(w, (2, 3, 1, 0)).reshape(
            3, 3 * w.shape[1], w.shape[0]).astype(jnp.float32)

    # BN1 batch stats (shared by bn1 and the shortcut BN: same input x), folded
    # into per-channel scale/shift.  Cheap memory-bound reduction in XLA.
    mean1 = jnp.mean(x, axis=(0, 1, 2))
    var1 = jnp.mean(jnp.square(x - mean1), axis=(0, 1, 2))
    inv1 = jax.lax.rsqrt(var1 + _EPS)
    scale1 = p["bn1_g"].astype(jnp.float32) * inv1
    shift1 = p["bn1_b"].astype(jnp.float32) - mean1 * scale1

    x_bf16 = x.astype(jnp.bfloat16)

    needs_shortcut = (stride != 1) or (Cin != Cout)
    if needs_shortcut:
        scale_s = p["bn_s_g"].astype(jnp.float32) * inv1
        shift_s = p["bn_s_b"].astype(jnp.float32) - mean1 * scale_s
        ws = jnp.transpose(p["conv_s_w"][:, :, 0, 0], (1, 0)).astype(jnp.float32)
        y1, identity, stats = _conv_stage(
            x_bf16, scale1, shift1, conv3x3_w(p["conv1_w"]), p["conv1_b"],
            stride=stride, scale_s=scale_s, shift_s=shift_s, ws=ws,
            emit_stats=True, out_dtype=jnp.bfloat16)
    else:
        identity = x_bf16
        y1, stats = _conv_stage(
            x_bf16, scale1, shift1, conv3x3_w(p["conv1_w"]), p["conv1_b"],
            stride=stride, emit_stats=True, out_dtype=jnp.bfloat16)

    # BN2 batch stats from the kernel's per-image partial sums (no extra HBM
    # pass over y1).  Biased variance, matching PyTorch training-mode BN.
    cnt = float(N * Ho * Wo)
    tot = jnp.sum(stats, axis=0)                       # (2, Cout)
    mean2 = tot[0] / cnt
    var2 = jnp.maximum(tot[1] / cnt - mean2 * mean2, 0.0)
    inv2 = jax.lax.rsqrt(var2 + _EPS)
    scale2 = p["bn2_g"].astype(jnp.float32) * inv2
    shift2 = p["bn2_b"].astype(jnp.float32) - mean2 * scale2

    y2 = _conv_stage(y1, scale2, shift2, conv3x3_w(p["conv2_w"]), p["conv2_b"],
                     stride=1, residual=identity, out_dtype=jnp.float32)[0]

    return jnp.transpose(y2, (0, 3, 1, 2))                             # NHWC -> NCHW


def reference_forward(x, p, stride):
    """Pure-JAX (XLA) reference with PyTorch semantics, NCHW throughout."""
    def bn(v, g, b):
        mean = jnp.mean(v, axis=(0, 2, 3), keepdims=True)
        var = jnp.mean((v - mean) ** 2, axis=(0, 2, 3), keepdims=True)
        return (v - mean) / jnp.sqrt(var + _EPS) * g.reshape(1, -1, 1, 1) + b.reshape(1, -1, 1, 1)

    def conv(v, w, b, s, pad):
        y = jax.lax.conv_general_dilated(v, w, (s, s), ((pad, pad), (pad, pad)),
                                         dimension_numbers=("NCHW", "OIHW", "NCHW"))
        if b is not None:
            y = y + b.reshape(1, -1, 1, 1)
        return y

    in_c, out_c = x.shape[1], p["conv1_w"].shape[0]
    if stride != 1 or in_c != out_c:
        identity = conv(bn(x, p["bn_s_g"], p["bn_s_b"]), p["conv_s_w"], None, stride, 0)
    else:
        identity = x
    h = conv(jax.nn.relu(bn(x, p["bn1_g"], p["bn1_b"])), p["conv1_w"], p["conv1_b"], stride, 1)
    h = conv(jax.nn.relu(bn(h, p["bn2_g"], p["bn2_b"])), p["conv2_w"], p["conv2_b"], 1, 1)
    return h + identity


if __name__ == "__main__":
    def make_params(key, in_c, out_c):
        ks = jax.random.split(key, 11)
        return {
            "bn1_g":    jax.random.normal(ks[0], (in_c,), jnp.float32) * 0.1 + 1.0,
            "bn1_b":    jax.random.normal(ks[1], (in_c,), jnp.float32) * 0.1,
            "conv1_w":  jax.random.normal(ks[2], (out_c, in_c, 3, 3), jnp.float32) * 0.1,
            "conv1_b":  jax.random.normal(ks[3], (out_c,), jnp.float32) * 0.1,
            "bn2_g":    jax.random.normal(ks[4], (out_c,), jnp.float32) * 0.1 + 1.0,
            "bn2_b":    jax.random.normal(ks[5], (out_c,), jnp.float32) * 0.1,
            "conv2_w":  jax.random.normal(ks[6], (out_c, out_c, 3, 3), jnp.float32) * 0.1,
            "conv2_b":  jax.random.normal(ks[7], (out_c,), jnp.float32) * 0.1,
            "bn_s_g":   jax.random.normal(ks[8], (in_c,), jnp.float32) * 0.1 + 1.0,
            "bn_s_b":   jax.random.normal(ks[9], (in_c,), jnp.float32) * 0.1,
            "conv_s_w": jax.random.normal(ks[10], (out_c, in_c, 1, 1), jnp.float32) * 0.1,
        }

    key = jax.random.PRNGKey(0)
    k1, k2, kx1, kx2 = jax.random.split(key, 4)
    fwd = jax.jit(res_block_forward, static_argnums=(2,))

    # Tolerance covers bf16 activation/weight storage + bf16 MXU inputs
    # (f32 accumulation) vs. the all-f32 XLA reference.
    TOL = 7.5e-2
    N, H, W = 2, 16, 16

    # Config 1: downsampling block (stride 2, 4 -> 8 channels, shortcut branch).
    p1 = make_params(k1, 4, 8)
    x1 = jax.random.normal(kx1, (N, 4, H, W), jnp.float32)
    out1 = jax.block_until_ready(fwd(x1, p1, 2))
    ref1 = jax.block_until_ready(reference_forward(x1, p1, 2))
    assert out1.shape == (N, 8, H // 2, W // 2), out1.shape
    np.testing.assert_allclose(np.asarray(out1), np.asarray(ref1), rtol=TOL, atol=TOL)

    # Config 2: identity block (stride 1, 8 -> 8 channels, no shortcut conv).
    p2 = make_params(k2, 8, 8)
    x2 = jax.random.normal(kx2, (N, 8, H, W), jnp.float32)
    out2 = jax.block_until_ready(fwd(x2, p2, 1))
    ref2 = jax.block_until_ready(reference_forward(x2, p2, 1))
    assert out2.shape == (N, 8, H, W), out2.shape
    np.testing.assert_allclose(np.asarray(out2), np.asarray(ref2), rtol=TOL, atol=TOL)

    print("KERNEL_OK")
</pallas_src>

<mosaic_0001>
module attributes {stable_mosaic.version = 11 : i64} {
  func.func @kernel(%arg0: i32, %arg1: memref<1x16x8x8xbf16, #tpu.memory_space<vmem>>, %arg2: memref<1x1x8xf32, #tpu.memory_space<vmem>>, %arg3: memref<1x1x8xf32, #tpu.memory_space<vmem>>, %arg4: memref<3x12x8xbf16, #tpu.memory_space<vmem>>, %arg5: memref<1x8xf32, #tpu.memory_space<vmem>>, %arg6: memref<1x1x4xf32, #tpu.memory_space<vmem>>, %arg7: memref<1x1x4xf32, #tpu.memory_space<vmem>>, %arg8: memref<4x8xbf16, #tpu.memory_space<vmem>>, %arg9: memref<1x8x8x8xbf16, #tpu.memory_space<vmem>>, %arg10: memref<1x8x8x8xbf16, #tpu.memory_space<vmem>>, %arg11: memref<1x2x8xf32, #tpu.memory_space<vmem>>, %arg12: memref<18x10x8xf32, #tpu.memory_space<vmem>>) attributes {dimension_semantics = [#tpu.dimension_semantics<parallel>], iteration_bounds = array<i64: 2>, scalar_prefetch = 0 : i64, scratch_operands = 1 : i64, tpu.core_type = #tpu.core_type<tc>, window_params = [{transform_indices = @transform_0, window_bounds = array<i64: 1, 16, 8, 8>}, {pipeline_mode = #tpu.pipeline_mode<synchronous>, transform_indices = @transform_1, window_bounds = array<i64: 1, 1, 8>}, {pipeline_mode = #tpu.pipeline_mode<synchronous>, transform_indices = @transform_2, window_bounds = array<i64: 1, 1, 8>}, {pipeline_mode = #tpu.pipeline_mode<synchronous>, transform_indices = @transform_3, window_bounds = array<i64: 3, 12, 8>}, {pipeline_mode = #tpu.pipeline_mode<synchronous>, transform_indices = @transform_4, window_bounds = array<i64: 1, 8>}, {pipeline_mode = #tpu.pipeline_mode<synchronous>, transform_indices = @transform_5, window_bounds = array<i64: 1, 1, 4>}, {pipeline_mode = #tpu.pipeline_mode<synchronous>, transform_indices = @transform_6, window_bounds = array<i64: 1, 1, 4>}, {pipeline_mode = #tpu.pipeline_mode<synchronous>, transform_indices = @transform_7, window_bounds = array<i64: 4, 8>}, {transform_indices = @transform_8, window_bounds = array<i64: 1, 8, 8, 8>}, {transform_indices = @transform_9, window_bounds = array<i64: 1, 8, 8, 8>}, {transform_indices = @transform_10, window_bounds = array<i64: 1, 2, 8>}]} {
    %c0 = arith.constant 0 : index
    %c0_0 = arith.constant 0 : index
    %c0_1 = arith.constant 0 : index
    %c0_2 = arith.constant 0 : index
    %0 = vector.load %arg1[%c0, %c0_0, %c0_1, %c0_2] : memref<1x16x8x8xbf16, #tpu.memory_space<vmem>>, vector<1x16x8x8xbf16>
    %1 = vector.shape_cast %0 : vector<1x16x8x8xbf16> to vector<16x8x8xbf16>
    %2 = arith.extf %1 : vector<16x8x8xbf16> to vector<16x8x8xf32>
    %c0_3 = arith.constant 0 : index
    %c0_4 = arith.constant 0 : index
    %c0_5 = arith.constant 0 : index
    %3 = vector.load %arg2[%c0_3, %c0_4, %c0_5] : memref<1x1x8xf32, #tpu.memory_space<vmem>>, vector<1x1x8xf32>
    %4 = vector.broadcast %3 : vector<1x1x8xf32> to vector<16x8x8xf32>
    %5 = arith.mulf %2, %4 : vector<16x8x8xf32>
    %c0_6 = arith.constant 0 : index
    %c0_7 = arith.constant 0 : index
    %c0_8 = arith.constant 0 : index
    %6 = vector.load %arg3[%c0_6, %c0_7, %c0_8] : memref<1x1x8xf32, #tpu.memory_space<vmem>>, vector<1x1x8xf32>
    %7 = vector.broadcast %6 : vector<1x1x8xf32> to vector<16x8x8xf32>
    %8 = arith.addf %5, %7 : vector<16x8x8xf32>
    %cst = arith.constant 0.000000e+00 : f32
    %9 = vector.broadcast %cst : f32 to vector<16x8x8xf32>
    %10 = arith.maximumf %8, %9 : vector<16x8x8xf32>
    %cst_9 = arith.constant 0.000000e+00 : f32
    %11 = vector.broadcast %cst_9 : f32 to vector<1x10x8xf32>
    %cst_10 = arith.constant 0.000000e+00 : f32
    %12 = vector.broadcast %cst_10 : f32 to vector<18x1x8xf32>
    %c0_11 = arith.constant 0 : index
    %c0_12 = arith.constant 0 : index
    %c0_13 = arith.constant 0 : index
    %13 = vector.load %arg12[%c0_11, %c0_12, %c0_13] : memref<18x10x8xf32, #tpu.memory_space<vmem>>, vector<1x10x8xf32>
    tpu.vector_store %arg12[%c0_11, %c0_12, %c0_13], %11 {strides = array<i32>} : memref<18x10x8xf32, #tpu.memory_space<vmem>>, vector<1x10x8xf32>,
    %c17 = arith.constant 17 : index
    %c0_14 = arith.constant 0 : index
    %c0_15 = arith.constant 0 : index
    %14 = vector.load %arg12[%c17, %c0_14, %c0_15] : memref<18x10x8xf32, #tpu.memory_space<vmem>>, vector<1x10x8xf32>
    tpu.vector_store %arg12[%c17, %c0_14, %c0_15], %11 {strides = array<i32>} : memref<18x10x8xf32, #tpu.memory_space<vmem>>, vector<1x10x8xf32>,
    %c0_16 = arith.constant 0 : index
    %c0_17 = arith.constant 0 : index
    %c0_18 = arith.constant 0 : index
    %15 = vector.load %arg12[%c0_16, %c0_17, %c0_18] : memref<18x10x8xf32, #tpu.memory_space<vmem>>, vector<18x1x8xf32>
    tpu.vector_store %arg12[%c0_16, %c0_17, %c0_18], %12 {strides = array<i32>} : memref<18x10x8xf32, #tpu.memory_space<vmem>>, vector<18x1x8xf32>,
    %c0_19 = arith.constant 0 : index
    %c9 = arith.constant 9 : index
    %c0_20 = arith.constant 0 : index
    %16 = vector.load %arg12[%c0_19, %c9, %c0_20] : memref<18x10x8xf32, #tpu.memory_space<vmem>>, vector<18x1x8xf32>
    tpu.vector_store %arg12[%c0_19, %c9, %c0_20], %12 {strides = array<i32>} : memref<18x10x8xf32, #tpu.memory_space<vmem>>, vector<18x1x8xf32>,
    %c1 = arith.constant 1 : index
    %c1_21 = arith.constant 1 : index
    %c0_22 = arith.constant 0 : index
    %17 = vector.load %arg12[%c1, %c1_21, %c0_22] : memref<18x10x8xf32, #tpu.memory_space<vmem>>, vector<16x8x8xf32>
    tpu.vector_store %arg12[%c1, %c1_21, %c0_22], %10 {strides = array<i32>} : memref<18x10x8xf32, #tpu.memory_space<vmem>>, vector<16x8x8xf32>,
    %cst_23 = arith.constant 0.000000e+00 : f32
    %18 = vector.broadcast %cst_23 : f32 to vector<64x8xf32>
    %c0_24 = arith.constant 0 : index
    %c0_25 = arith.constant 0 : index
    %c0_26 = arith.constant 0 : index
    %19 = vector.load %arg12[%c0_24, %c0_25, %c0_26] : memref<18x10x8xf32, #tpu.memory_space<vmem>>, vector<16x10x8xf32>
    %20 = vector.shape_cast %19 : vector<16x10x8xf32> to vector<8x2x10x8xf32>
    %21 = vector.extract_strided_slice %20 {offsets = [0, 0, 0, 0], sizes = [8, 1, 10, 8], strides = [1, 1, 1, 1]} : vector<8x2x10x8xf32> to vector<8x1x10x8xf32>
    %22 = vector.shape_cast %21 : vector<8x1x10x8xf32> to vector<8x10x8xf32>
    %23 = vector.extract_strided_slice %22 {offsets = [0, 0, 4], sizes = [8, 8, 4], strides = [1, 1, 1]} : vector<8x10x8xf32> to vector<8x8x4xf32>
    %24 = vector.extract_strided_slice %22 {offsets = [0, 1, 0], sizes = [8, 8, 4], strides = [1, 1, 1]} : vector<8x10x8xf32> to vector<8x8x4xf32>
    %25 = vector.extract_strided_slice %22 {offsets = [0, 1, 4], sizes = [8, 8, 4], strides = [1, 1, 1]} : vector<8x10x8xf32> to vector<8x8x4xf32>
    %26 = tpu.concatenate %23, %24, %25 in 2 : vector<8x8x4xf32>, vector<8x8x4xf32>, vector<8x8x4xf32> -> vector<8x8x12xf32>
    %27 = vector.shape_cast %26 : vector<8x8x12xf32> to vector<64x12xf32>
    %28 = arith.truncf %27 : vector<64x12xf32> to vector<64x12xbf16>
    %c0_27 = arith.constant 0 : index
    %c0_28 = arith.constant 0 : index
    %c0_29 = arith.constant 0 : index
    %29 = vector.load %arg4[%c0_27, %c0_28, %c0_29] : memref<3x12x8xbf16, #tpu.memory_space<vmem>>, vector<1x12x8xbf16>
    %30 = vector.shape_cast %29 : vector<1x12x8xbf16> to vector<12x8xbf16>
    %cst_30 = arith.constant dense<0.000000e+00> : vector<64x8xf32>
    %31 = tpu.matmul %28, %30, %cst_30 {dimension_numbers = #tpu.dot_dimension_numbers<[1], [0], [0], [1], [0, 0, 1, 1], [], []>} : vector<64x12xbf16>, vector<12x8xbf16>, vector<64x8xf32> -> vector<64x8xf32>
    %32 = arith.addf %18, %31 : vector<64x8xf32>
    %c1_31 = arith.constant 1 : index
    %c0_32 = arith.constant 0 : index
    %c0_33 = arith.constant 0 : index
    %33 = vector.load %arg12[%c1_31, %c0_32, %c0_33] : memref<18x10x8xf32, #tpu.memory_space<vmem>>, vector<16x10x8xf32>
    %34 = vector.shape_cast %33 : vector<16x10x8xf32> to vector<8x2x10x8xf32>
    %35 = vector.extract_strided_slice %34 {offsets = [0, 0, 0, 0], sizes = [8, 1, 10, 8], strides = [1, 1, 1, 1]} : vector<8x2x10x8xf32> to vector<8x1x10x8xf32>
    %36 = vector.shape_cast %35 : vector<8x1x10x8xf32> to vector<8x10x8xf32>
    %37 = vector.extract_strided_slice %36 {offsets = [0, 0, 4], sizes = [8, 8, 4], strides = [1, 1, 1]} : vector<8x10x8xf32> to vector<8x8x4xf32>
    %38 = vector.extract_strided_slice %36 {offsets = [0, 1, 0], sizes = [8, 8, 4], strides = [1, 1, 1]} : vector<8x10x8xf32> to vector<8x8x4xf32>
    %39 = vector.extract_strided_slice %36 {offsets = [0, 1, 4], sizes = [8, 8, 4], strides = [1, 1, 1]} : vector<8x10x8xf32> to vector<8x8x4xf32>
    %40 = tpu.concatenate %37, %38, %39 in 2 : vector<8x8x4xf32>, vector<8x8x4xf32>, vector<8x8x4xf32> -> vector<8x8x12xf32>
    %41 = vector.shape_cast %40 : vector<8x8x12xf32> to vector<64x12xf32>
    %42 = arith.truncf %41 : vector<64x12xf32> to vector<64x12xbf16>
    %c1_34 = arith.constant 1 : index
    %c0_35 = arith.constant 0 : index
    %c0_36 = arith.constant 0 : index
    %43 = vector.load %arg4[%c1_34, %c0_35, %c0_36] : memref<3x12x8xbf16, #tpu.memory_space<vmem>>, vector<1x12x8xbf16>
    %44 = vector.shape_cast %43 : vector<1x12x8xbf16> to vector<12x8xbf16>
    %cst_37 = arith.constant dense<0.000000e+00> : vector<64x8xf32>
    %45 = tpu.matmul %42, %44, %cst_37 {dimension_numbers = #tpu.dot_dimension_numbers<[1], [0], [0], [1], [0, 0, 1, 1], [], []>} : vector<64x12xbf16>, vector<12x8xbf16>, vector<64x8xf32> -> vector<64x8xf32>
    %46 = arith.addf %32, %45 : vector<64x8xf32>
    %c2 = arith.constant 2 : index
    %c0_38 = arith.constant 0 : index
    %c0_39 = arith.constant 0 : index
    %47 = vector.load %arg12[%c2, %c0_38, %c0_39] : memref<18x10x8xf32, #tpu.memory_space<vmem>>, vector<16x10x8xf32>
    %48 = vector.shape_cast %47 : vector<16x10x8xf32> to vector<8x2x10x8xf32>
    %49 = vector.extract_strided_slice %48 {offsets = [0, 0, 0, 0], sizes = [8, 1, 10, 8], strides = [1, 1, 1, 1]} : vector<8x2x10x8xf32> to vector<8x1x10x8xf32>
    %50 = vector.shape_cast %49 : vector<8x1x10x8xf32> to vector<8x10x8xf32>
    %51 = vector.extract_strided_slice %50 {offsets = [0, 0, 4], sizes = [8, 8, 4], strides = [1, 1, 1]} : vector<8x10x8xf32> to vector<8x8x4xf32>
    %52 = vector.extract_strided_slice %50 {offsets = [0, 1, 0], sizes = [8, 8, 4], strides = [1, 1, 1]} : vector<8x10x8xf32> to vector<8x8x4xf32>
    %53 = vector.extract_strided_slice %50 {offsets = [0, 1, 4], sizes = [8, 8, 4], strides = [1, 1, 1]} : vector<8x10x8xf32> to vector<8x8x4xf32>
    %54 = tpu.concatenate %51, %52, %53 in 2 : vector<8x8x4xf32>, vector<8x8x4xf32>, vector<8x8x4xf32> -> vector<8x8x12xf32>
    %55 = vector.shape_cast %54 : vector<8x8x12xf32> to vector<64x12xf32>
    %56 = arith.truncf %55 : vector<64x12xf32> to vector<64x12xbf16>
    %c2_40 = arith.constant 2 : index
    %c0_41 = arith.constant 0 : index
    %c0_42 = arith.constant 0 : index
    %57 = vector.load %arg4[%c2_40, %c0_41, %c0_42] : memref<3x12x8xbf16, #tpu.memory_space<vmem>>, vector<1x12x8xbf16>
    %58 = vector.shape_cast %57 : vector<1x12x8xbf16> to vector<12x8xbf16>
    %cst_43 = arith.constant dense<0.000000e+00> : vector<64x8xf32>
    %59 = tpu.matmul %56, %58, %cst_43 {dimension_numbers = #tpu.dot_dimension_numbers<[1], [0], [0], [1], [0, 0, 1, 1], [], []>} : vector<64x12xbf16>, vector<12x8xbf16>, vector<64x8xf32> -> vector<64x8xf32>
    %60 = arith.addf %46, %59 : vector<64x8xf32>
    %c0_44 = arith.constant 0 : index
    %c0_45 = arith.constant 0 : index
    %61 = vector.load %arg5[%c0_44, %c0_45] : memref<1x8xf32, #tpu.memory_space<vmem>>, vector<1x8xf32>
    %62 = vector.broadcast %61 : vector<1x8xf32> to vector<64x8xf32>
    %63 = arith.addf %60, %62 : vector<64x8xf32>
    %cst_46 = arith.constant dense<0.000000e+00> : vector<8xf32>
    %64 = vector.multi_reduction <add>, %63, %cst_46 [0] : vector<64x8xf32> to vector<8xf32>
    %65 = vector.shape_cast %64 : vector<8xf32> to vector<1x8xf32>
    %66 = arith.mulf %63, %63 : vector<64x8xf32>
    %cst_47 = arith.constant dense<0.000000e+00> : vector<8xf32>
    %67 = vector.multi_reduction <add>, %66, %cst_47 [0] : vector<64x8xf32> to vector<8xf32>
    %68 = vector.shape_cast %67 : vector<8xf32> to vector<1x8xf32>
    %69 = vector.shape_cast %65 : vector<1x8xf32> to vector<1x1x8xf32>
    %c0_48 = arith.constant 0 : index
    %c0_49 = arith.constant 0 : index
    %c0_50 = arith.constant 0 : index
    %70 = vector.load %arg11[%c0_48, %c0_49, %c0_50] : memref<1x2x8xf32, #tpu.memory_space<vmem>>, vector<1x1x8xf32>
    tpu.vector_store %arg11[%c0_48, %c0_49, %c0_50], %69 {strides = array<i32>} : memref<1x2x8xf32, #tpu.memory_space<vmem>>, vector<1x1x8xf32>,
    %71 = vector.shape_cast %68 : vector<1x8xf32> to vector<1x1x8xf32>
    %c0_51 = arith.constant 0 : index
    %c1_52 = arith.constant 1 : index
    %c0_53 = arith.constant 0 : index
    %72 = vector.load %arg11[%c0_51, %c1_52, %c0_53] : memref<1x2x8xf32, #tpu.memory_space<vmem>>, vector<1x1x8xf32>
    tpu.vector_store %arg11[%c0_51, %c1_52, %c0_53], %71 {strides = array<i32>} : memref<1x2x8xf32, #tpu.memory_space<vmem>>, vector<1x1x8xf32>,
    %73 = vector.shape_cast %63 : vector<64x8xf32> to vector<8x8x8xf32>
    %74 = arith.truncf %73 : vector<8x8x8xf32> to vector<8x8x8xbf16>
    %c0_54 = arith.constant 0 : index
    %c0_55 = arith.constant 0 : index
    %c0_56 = arith.constant 0 : index
    %c0_57 = arith.constant 0 : index
    %75 = vector.load %arg9[%c0_54, %c0_55, %c0_56, %c0_57] : memref<1x8x8x8xbf16, #tpu.memory_space<vmem>>, vector<1x8x8x8xbf16>
    %76 = vector.shape_cast %75 : vector<1x8x8x8xbf16> to vector<8x8x8xbf16>
    %77 = vector.shape_cast %74 : vector<8x8x8xbf16> to vector<1x8x8x8xbf16>
    tpu.vector_store %arg9[%c0_54, %c0_55, %c0_56, %c0_57], %77 {strides = array<i32>} : memref<1x8x8x8xbf16, #tpu.memory_space<vmem>>, vector<1x8x8x8xbf16>,
    %78 = vector.shape_cast %2 : vector<16x8x8xf32> to vector<8x2x8x8xf32>
    %79 = vector.extract_strided_slice %78 {offsets = [0, 0, 0, 0], sizes = [8, 1, 8, 8], strides = [1, 1, 1, 1]} : vector<8x2x8x8xf32> to vector<8x1x8x8xf32>
    %80 = vector.shape_cast %79 : vector<8x1x8x8xf32> to vector<8x8x8xf32>
    %81 = vector.extract_strided_slice %80 {offsets = [0, 0, 0], sizes = [8, 8, 4], strides = [1, 1, 1]} : vector<8x8x8xf32> to vector<8x8x4xf32>
    %c0_58 = arith.constant 0 : index
    %c0_59 = arith.constant 0 : index
    %c0_60 = arith.constant 0 : index
    %82 = vector.load %arg6[%c0_58, %c0_59, %c0_60] : memref<1x1x4xf32, #tpu.memory_space<vmem>>, vector<1x1x4xf32>
    %83 = vector.broadcast %82 : vector<1x1x4xf32> to vector<8x8x4xf32>
    %84 = arith.mulf %81, %83 : vector<8x8x4xf32>
    %c0_61 = arith.constant 0 : index
    %c0_62 = arith.constant 0 : index
    %c0_63 = arith.constant 0 : index
    %85 = vector.load %arg7[%c0_61, %c0_62, %c0_63] : memref<1x1x4xf32, #tpu.memory_space<vmem>>, vector<1x1x4xf32>
    %86 = vector.broadcast %85 : vector<1x1x4xf32> to vector<8x8x4xf32>
    %87 = arith.addf %84, %86 : vector<8x8x4xf32>
    %88 = vector.shape_cast %87 : vector<8x8x4xf32> to vector<64x4xf32>
    %89 = arith.truncf %88 : vector<64x4xf32> to vector<64x4xbf16>
    %c0_64 = arith.constant 0 : index
    %c0_65 = arith.constant 0 : index
    %90 = vector.load %arg8[%c0_64, %c0_65] : memref<4x8xbf16, #tpu.memory_space<vmem>>, vector<4x8xbf16>
    %cst_66 = arith.constant dense<0.000000e+00> : vector<64x8xf32>
    %91 = tpu.matmul %89, %90, %cst_66 {dimension_numbers = #tpu.dot_dimension_numbers<[1], [0], [0], [1], [0, 0, 1, 1], [], []>} : vector<64x4xbf16>, vector<4x8xbf16>, vector<64x8xf32> -> vector<64x8xf32>
    %92 = vector.shape_cast %91 : vector<64x8xf32> to vector<8x8x8xf32>
    %93 = arith.truncf %92 : vector<8x8x8xf32> to vector<8x8x8xbf16>
    %c0_67 = arith.constant 0 : index
    %c0_68 = arith.constant 0 : index
    %c0_69 = arith.constant 0 : index
    %c0_70 = arith.constant 0 : index
    %94 = vector.load %arg10[%c0_67, %c0_68, %c0_69, %c0_70] : memref<1x8x8x8xbf16, #tpu.memory_space<vmem>>, vector<1x8x8x8xbf16>
    %95 = vector.shape_cast %94 : vector<1x8x8x8xbf16> to vector<8x8x8xbf16>
    %96 = vector.shape_cast %93 : vector<8x8x8xbf16> to vector<1x8x8x8xbf16>
    tpu.vector_store %arg10[%c0_67, %c0_68, %c0_69, %c0_70], %96 {strides = array<i32>} : memref<1x8x8x8xbf16, #tpu.memory_space<vmem>>, vector<1x8x8x8xbf16>,
    return
  }
  func.func @transform_0(%arg0: i32) -> (i32, i32, i32, i32) {
    %c0_i32 = arith.constant 0 : i32
    %c0_i32_0 = arith.constant 0 : i32
    %c0_i32_1 = arith.constant 0 : i32
    %c0_i32_2 = arith.constant 0 : i32
    return %arg0, %c0_i32, %c0_i32_0, %c0_i32_1 : i32, i32, i32, i32
  }
  func.func @transform_1(%arg0: i32) -> (i32, i32, i32) {
    %c0_i32 = arith.constant 0 : i32
    %c0_i32_0 = arith.constant 0 : i32
    %c0_i32_1 = arith.constant 0 : i32
    %c0_i32_2 = arith.constant 0 : i32
    return %c0_i32, %c0_i32_0, %c0_i32_1 : i32, i32, i32
  }
  func.func @transform_2(%arg0: i32) -> (i32, i32, i32) {
    %c0_i32 = arith.constant 0 : i32
    %c0_i32_0 = arith.constant 0 : i32
    %c0_i32_1 = arith.constant 0 : i32
    %c0_i32_2 = arith.constant 0 : i32
    return %c0_i32, %c0_i32_0, %c0_i32_1 : i32, i32, i32
  }
  func.func @transform_3(%arg0: i32) -> (i32, i32, i32) {
    %c0_i32 = arith.constant 0 : i32
    %c0_i32_0 = arith.constant 0 : i32
    %c0_i32_1 = arith.constant 0 : i32
    %c0_i32_2 = arith.constant 0 : i32
    return %c0_i32, %c0_i32_0, %c0_i32_1 : i32, i32, i32
  }
  func.func @transform_4(%arg0: i32) -> (i32, i32) {
    %c0_i32 = arith.constant 0 : i32
    %c0_i32_0 = arith.constant 0 : i32
    %c0_i32_1 = arith.constant 0 : i32
    return %c0_i32, %c0_i32_0 : i32, i32
  }
  func.func @transform_5(%arg0: i32) -> (i32, i32, i32) {
    %c0_i32 = arith.constant 0 : i32
    %c0_i32_0 = arith.constant 0 : i32
    %c0_i32_1 = arith.constant 0 : i32
    %c0_i32_2 = arith.constant 0 : i32
    return %c0_i32, %c0_i32_0, %c0_i32_1 : i32, i32, i32
  }
  func.func @transform_6(%arg0: i32) -> (i32, i32, i32) {
    %c0_i32 = arith.constant 0 : i32
    %c0_i32_0 = arith.constant 0 : i32
    %c0_i32_1 = arith.constant 0 : i32
    %c0_i32_2 = arith.constant 0 : i32
    return %c0_i32, %c0_i32_0, %c0_i32_1 : i32, i32, i32
  }
  func.func @transform_7(%arg0: i32) -> (i32, i32) {
    %c0_i32 = arith.constant 0 : i32
    %c0_i32_0 = arith.constant 0 : i32
    %c0_i32_1 = arith.constant 0 : i32
    return %c0_i32, %c0_i32_0 : i32, i32
  }
  func.func @transform_8(%arg0: i32) -> (i32, i32, i32, i32) {
    %c0_i32 = arith.constant 0 : i32
    %c0_i32_0 = arith.constant 0 : i32
    %c0_i32_1 = arith.constant 0 : i32
    %c0_i32_2 = arith.constant 0 : i32
    return %arg0, %c0_i32, %c0_i32_0, %c0_i32_1 : i32, i32, i32, i32
  }
  func.func @transform_9(%arg0: i32) -> (i32, i32, i32, i32) {
    %c0_i32 = arith.constant 0 : i32
    %c0_i32_0 = arith.constant 0 : i32
    %c0_i32_1 = arith.constant 0 : i32
    %c0_i32_2 = arith.constant 0 : i32
    return %arg0, %c0_i32, %c0_i32_0, %c0_i32_1 : i32, i32, i32, i32
  }
  func.func @transform_10(%arg0: i32) -> (i32, i32, i32) {
    %c0_i32 = arith.constant 0 : i32
    %c0_i32_0 = arith.constant 0 : i32
    %c0_i32_1 = arith.constant 0 : i32
    return %arg0, %c0_i32, %c0_i32_0 : i32, i32, i32
  }
}

module attributes {stable_mosaic.version = 11 : i64} {
  func.func @kernel(%arg0: i32, %arg1: memref<1x8x8x8xbf16, #tpu.memory_space<vmem>>, %arg2: memref<1x1x8xf32, #tpu.memory_space<vmem>>, %arg3: memref<1x1x8xf32, #tpu.memory_space<vmem>>, %arg4: memref<3x24x8xbf16, #tpu.memory_space<vmem>>, %arg5: memref<1x8xf32, #tpu.memory_space<vmem>>, %arg6: memref<1x8x8x8xbf16, #tpu.memory_space<vmem>>, %arg7: memref<1x8x8x8xf32, #tpu.memory_space<vmem>>, %arg8: memref<10x10x8xf32, #tpu.memory_space<vmem>>) attributes {dimension_semantics = [#tpu.dimension_semantics<parallel>], iteration_bounds = array<i64: 2>, scalar_prefetch = 0 : i64, scratch_operands = 1 : i64, tpu.core_type = #tpu.core_type<tc>, window_params = [{transform_indices = @transform_0, window_bounds = array<i64: 1, 8, 8, 8>}, {pipeline_mode = #tpu.pipeline_mode<synchronous>, transform_indices = @transform_1, window_bounds = array<i64: 1, 1, 8>}, {pipeline_mode = #tpu.pipeline_mode<synchronous>, transform_indices = @transform_2, window_bounds = array<i64: 1, 1, 8>}, {pipeline_mode = #tpu.pipeline_mode<synchronous>, transform_indices = @transform_3, window_bounds = array<i64: 3, 24, 8>}, {pipeline_mode = #tpu.pipeline_mode<synchronous>, transform_indices = @transform_4, window_bounds = array<i64: 1, 8>}, {transform_indices = @transform_5, window_bounds = array<i64: 1, 8, 8, 8>}, {transform_indices = @transform_6, window_bounds = array<i64: 1, 8, 8, 8>}]} {
    %c0 = arith.constant 0 : index
    %c0_0 = arith.constant 0 : index
    %c0_1 = arith.constant 0 : index
    %c0_2 = arith.constant 0 : index
    %0 = vector.load %arg1[%c0, %c0_0, %c0_1, %c0_2] : memref<1x8x8x8xbf16, #tpu.memory_space<vmem>>, vector<1x8x8x8xbf16>
    %1 = vector.shape_cast %0 : vector<1x8x8x8xbf16> to vector<8x8x8xbf16>
    %2 = arith.extf %1 : vector<8x8x8xbf16> to vector<8x8x8xf32>
    %c0_3 = arith.constant 0 : index
    %c0_4 = arith.constant 0 : index
    %c0_5 = arith.constant 0 : index
    %3 = vector.load %arg2[%c0_3, %c0_4, %c0_5] : memref<1x1x8xf32, #tpu.memory_space<vmem>>, vector<1x1x8xf32>
    %4 = vector.broadcast %3 : vector<1x1x8xf32> to vector<8x8x8xf32>
    %5 = arith.mulf %2, %4 : vector<8x8x8xf32>
    %c0_6 = arith.constant 0 : index
    %c0_7 = arith.constant 0 : index
    %c0_8 = arith.constant 0 : index
    %6 = vector.load %arg3[%c0_6, %c0_7, %c0_8] : memref<1x1x8xf32, #tpu.memory_space<vmem>>, vector<1x1x8xf32>
    %7 = vector.broadcast %6 : vector<1x1x8xf32> to vector<8x8x8xf32>
    %8 = arith.addf %5, %7 : vector<8x8x8xf32>
    %cst = arith.constant 0.000000e+00 : f32
    %9 = vector.broadcast %cst : f32 to vector<8x8x8xf32>
    %10 = arith.maximumf %8, %9 : vector<8x8x8xf32>
    %cst_9 = arith.constant 0.000000e+00 : f32
    %11 = vector.broadcast %cst_9 : f32 to vector<1x10x8xf32>
    %cst_10 = arith.constant 0.000000e+00 : f32
    %12 = vector.broadcast %cst_10 : f32 to vector<10x1x8xf32>
    %c0_11 = arith.constant 0 : index
    %c0_12 = arith.constant 0 : index
    %c0_13 = arith.constant 0 : index
    %13 = vector.load %arg8[%c0_11, %c0_12, %c0_13] : memref<10x10x8xf32, #tpu.memory_space<vmem>>, vector<1x10x8xf32>
    tpu.vector_store %arg8[%c0_11, %c0_12, %c0_13], %11 {strides = array<i32>} : memref<10x10x8xf32, #tpu.memory_space<vmem>>, vector<1x10x8xf32>,
    %c9 = arith.constant 9 : index
    %c0_14 = arith.constant 0 : index
    %c0_15 = arith.constant 0 : index
    %14 = vector.load %arg8[%c9, %c0_14, %c0_15] : memref<10x10x8xf32, #tpu.memory_space<vmem>>, vector<1x10x8xf32>
    tpu.vector_store %arg8[%c9, %c0_14, %c0_15], %11 {strides = array<i32>} : memref<10x10x8xf32, #tpu.memory_space<vmem>>, vector<1x10x8xf32>,
    %c0_16 = arith.constant 0 : index
    %c0_17 = arith.constant 0 : index
    %c0_18 = arith.constant 0 : index
    %15 = vector.load %arg8[%c0_16, %c0_17, %c0_18] : memref<10x10x8xf32, #tpu.memory_space<vmem>>, vector<10x1x8xf32>
    tpu.vector_store %arg8[%c0_16, %c0_17, %c0_18], %12 {strides = array<i32>} : memref<10x10x8xf32, #tpu.memory_space<vmem>>, vector<10x1x8xf32>,
    %c0_19 = arith.constant 0 : index
    %c9_20 = arith.constant 9 : index
    %c0_21 = arith.constant 0 : index
    %16 = vector.load %arg8[%c0_19, %c9_20, %c0_21] : memref<10x10x8xf32, #tpu.memory_space<vmem>>, vector<10x1x8xf32>
    tpu.vector_store %arg8[%c0_19, %c9_20, %c0_21], %12 {strides = array<i32>} : memref<10x10x8xf32, #tpu.memory_space<vmem>>, vector<10x1x8xf32>,
    %c1 = arith.constant 1 : index
    %c1_22 = arith.constant 1 : index
    %c0_23 = arith.constant 0 : index
    %17 = vector.load %arg8[%c1, %c1_22, %c0_23] : memref<10x10x8xf32, #tpu.memory_space<vmem>>, vector<8x8x8xf32>
    tpu.vector_store %arg8[%c1, %c1_22, %c0_23], %10 {strides = array<i32>} : memref<10x10x8xf32, #tpu.memory_space<vmem>>, vector<8x8x8xf32>,
    %cst_24 = arith.constant 0.000000e+00 : f32
    %18 = vector.broadcast %cst_24 : f32 to vector<64x8xf32>
    %c0_25 = arith.constant 0 : index
    %c0_26 = arith.constant 0 : index
    %c0_27 = arith.constant 0 : index
    %19 = vector.load %arg8[%c0_25, %c0_26, %c0_27] : memref<10x10x8xf32, #tpu.memory_space<vmem>>, vector<8x10x8xf32>
    %20 = vector.extract_strided_slice %19 {offsets = [0, 0, 0], sizes = [8, 8, 8], strides = [1, 1, 1]} : vector<8x10x8xf32> to vector<8x8x8xf32>
    %21 = vector.extract_strided_slice %19 {offsets = [0, 1, 0], sizes = [8, 8, 8], strides = [1, 1, 1]} : vector<8x10x8xf32> to vector<8x8x8xf32>
    %22 = vector.extract_strided_slice %19 {offsets = [0, 2, 0], sizes = [8, 8, 8], strides = [1, 1, 1]} : vector<8x10x8xf32> to vector<8x8x8xf32>
    %23 = tpu.concatenate %20, %21, %22 in 2 : vector<8x8x8xf32>, vector<8x8x8xf32>, vector<8x8x8xf32> -> vector<8x8x24xf32>
    %24 = vector.shape_cast %23 : vector<8x8x24xf32> to vector<64x24xf32>
    %25 = arith.truncf %24 : vector<64x24xf32> to vector<64x24xbf16>
    %c0_28 = arith.constant 0 : index
    %c0_29 = arith.constant 0 : index
    %c0_30 = arith.constant 0 : index
    %26 = vector.load %arg4[%c0_28, %c0_29, %c0_30] : memref<3x24x8xbf16, #tpu.memory_space<vmem>>, vector<1x24x8xbf16>
    %27 = vector.shape_cast %26 : vector<1x24x8xbf16> to vector<24x8xbf16>
    %cst_31 = arith.constant dense<0.000000e+00> : vector<64x8xf32>
    %28 = tpu.matmul %25, %27, %cst_31 {dimension_numbers = #tpu.dot_dimension_numbers<[1], [0], [0], [1], [0, 0, 1, 1], [], []>} : vector<64x24xbf16>, vector<24x8xbf16>, vector<64x8xf32> -> vector<64x8xf32>
    %29 = arith.addf %18, %28 : vector<64x8xf32>
    %c1_32 = arith.constant 1 : index
    %c0_33 = arith.constant 0 : index
    %c0_34 = arith.constant 0 : index
    %30 = vector.load %arg8[%c1_32, %c0_33, %c0_34] : memref<10x10x8xf32, #tpu.memory_space<vmem>>, vector<8x10x8xf32>
    %31 = vector.extract_strided_slice %30 {offsets = [0, 0, 0], sizes = [8, 8, 8], strides = [1, 1, 1]} : vector<8x10x8xf32> to vector<8x8x8xf32>
    %32 = vector.extract_strided_slice %30 {offsets = [0, 1, 0], sizes = [8, 8, 8], strides = [1, 1, 1]} : vector<8x10x8xf32> to vector<8x8x8xf32>
    %33 = vector.extract_strided_slice %30 {offsets = [0, 2, 0], sizes = [8, 8, 8], strides = [1, 1, 1]} : vector<8x10x8xf32> to vector<8x8x8xf32>
    %34 = tpu.concatenate %31, %32, %33 in 2 : vector<8x8x8xf32>, vector<8x8x8xf32>, vector<8x8x8xf32> -> vector<8x8x24xf32>
    %35 = vector.shape_cast %34 : vector<8x8x24xf32> to vector<64x24xf32>
    %36 = arith.truncf %35 : vector<64x24xf32> to vector<64x24xbf16>
    %c1_35 = arith.constant 1 : index
    %c0_36 = arith.constant 0 : index
    %c0_37 = arith.constant 0 : index
    %37 = vector.load %arg4[%c1_35, %c0_36, %c0_37] : memref<3x24x8xbf16, #tpu.memory_space<vmem>>, vector<1x24x8xbf16>
    %38 = vector.shape_cast %37 : vector<1x24x8xbf16> to vector<24x8xbf16>
    %cst_38 = arith.constant dense<0.000000e+00> : vector<64x8xf32>
    %39 = tpu.matmul %36, %38, %cst_38 {dimension_numbers = #tpu.dot_dimension_numbers<[1], [0], [0], [1], [0, 0, 1, 1], [], []>} : vector<64x24xbf16>, vector<24x8xbf16>, vector<64x8xf32> -> vector<64x8xf32>
    %40 = arith.addf %29, %39 : vector<64x8xf32>
    %c2 = arith.constant 2 : index
    %c0_39 = arith.constant 0 : index
    %c0_40 = arith.constant 0 : index
    %41 = vector.load %arg8[%c2, %c0_39, %c0_40] : memref<10x10x8xf32, #tpu.memory_space<vmem>>, vector<8x10x8xf32>
    %42 = vector.extract_strided_slice %41 {offsets = [0, 0, 0], sizes = [8, 8, 8], strides = [1, 1, 1]} : vector<8x10x8xf32> to vector<8x8x8xf32>
    %43 = vector.extract_strided_slice %41 {offsets = [0, 1, 0], sizes = [8, 8, 8], strides = [1, 1, 1]} : vector<8x10x8xf32> to vector<8x8x8xf32>
    %44 = vector.extract_strided_slice %41 {offsets = [0, 2, 0], sizes = [8, 8, 8], strides = [1, 1, 1]} : vector<8x10x8xf32> to vector<8x8x8xf32>
    %45 = tpu.concatenate %42, %43, %44 in 2 : vector<8x8x8xf32>, vector<8x8x8xf32>, vector<8x8x8xf32> -> vector<8x8x24xf32>
    %46 = vector.shape_cast %45 : vector<8x8x24xf32> to vector<64x24xf32>
    %47 = arith.truncf %46 : vector<64x24xf32> to vector<64x24xbf16>
    %c2_41 = arith.constant 2 : index
    %c0_42 = arith.constant 0 : index
    %c0_43 = arith.constant 0 : index
    %48 = vector.load %arg4[%c2_41, %c0_42, %c0_43] : memref<3x24x8xbf16, #tpu.memory_space<vmem>>, vector<1x24x8xbf16>
    %49 = vector.shape_cast %48 : vector<1x24x8xbf16> to vector<24x8xbf16>
    %cst_44 = arith.constant dense<0.000000e+00> : vector<64x8xf32>
    %50 = tpu.matmul %47, %49, %cst_44 {dimension_numbers = #tpu.dot_dimension_numbers<[1], [0], [0], [1], [0, 0, 1, 1], [], []>} : vector<64x24xbf16>, vector<24x8xbf16>, vector<64x8xf32> -> vector<64x8xf32>
    %51 = arith.addf %40, %50 : vector<64x8xf32>
    %c0_45 = arith.constant 0 : index
    %c0_46 = arith.constant 0 : index
    %52 = vector.load %arg5[%c0_45, %c0_46] : memref<1x8xf32, #tpu.memory_space<vmem>>, vector<1x8xf32>
    %53 = vector.broadcast %52 : vector<1x8xf32> to vector<64x8xf32>
    %54 = arith.addf %51, %53 : vector<64x8xf32>
    %55 = vector.shape_cast %54 : vector<64x8xf32> to vector<8x8x8xf32>
    %c0_47 = arith.constant 0 : index
    %c0_48 = arith.constant 0 : index
    %c0_49 = arith.constant 0 : index
    %c0_50 = arith.constant 0 : index
    %56 = vector.load %arg6[%c0_47, %c0_48, %c0_49, %c0_50] : memref<1x8x8x8xbf16, #tpu.memory_space<vmem>>, vector<1x8x8x8xbf16>
    %57 = vector.shape_cast %56 : vector<1x8x8x8xbf16> to vector<8x8x8xbf16>
    %58 = arith.extf %57 : vector<8x8x8xbf16> to vector<8x8x8xf32>
    %59 = arith.addf %55, %58 : vector<8x8x8xf32>
    %c0_51 = arith.constant 0 : index
    %c0_52 = arith.constant 0 : index
    %c0_53 = arith.constant 0 : index
    %c0_54 = arith.constant 0 : index
    %60 = vector.load %arg7[%c0_51, %c0_52, %c0_53, %c0_54] : memref<1x8x8x8xf32, #tpu.memory_space<vmem>>, vector<1x8x8x8xf32>
    %61 = vector.shape_cast %60 : vector<1x8x8x8xf32> to vector<8x8x8xf32>
    %62 = vector.shape_cast %59 : vector<8x8x8xf32> to vector<1x8x8x8xf32>
    tpu.vector_store %arg7[%c0_51, %c0_52, %c0_53, %c0_54], %62 {strides = array<i32>} : memref<1x8x8x8xf32, #tpu.memory_space<vmem>>, vector<1x8x8x8xf32>,
    return
  }
  func.func @transform_0(%arg0: i32) -> (i32, i32, i32, i32) {
    %c0_i32 = arith.constant 0 : i32
    %c0_i32_0 = arith.constant 0 : i32
    %c0_i32_1 = arith.constant 0 : i32
    %c0_i32_2 = arith.constant 0 : i32
    return %arg0, %c0_i32, %c0_i32_0, %c0_i32_1 : i32, i32, i32, i32
  }
  func.func @transform_1(%arg0: i32) -> (i32, i32, i32) {
    %c0_i32 = arith.constant 0 : i32
    %c0_i32_0 = arith.constant 0 : i32
    %c0_i32_1 = arith.constant 0 : i32
    %c0_i32_2 = arith.constant 0 : i32
    return %c0_i32, %c0_i32_0, %c0_i32_1 : i32, i32, i32
  }
  func.func @transform_2(%arg0: i32) -> (i32, i32, i32) {
    %c0_i32 = arith.constant 0 : i32
    %c0_i32_0 = arith.constant 0 : i32
    %c0_i32_1 = arith.constant 0 : i32
    %c0_i32_2 = arith.constant 0 : i32
    return %c0_i32, %c0_i32_0, %c0_i32_1 : i32, i32, i32
  }
  func.func @transform_3(%arg0: i32) -> (i32, i32, i32) {
    %c0_i32 = arith.constant 0 : i32
    %c0_i32_0 = arith.constant 0 : i32
    %c0_i32_1 = arith.constant 0 : i32
    %c0_i32_2 = arith.constant 0 : i32
    return %c0_i32, %c0_i32_0, %c0_i32_1 : i32, i32, i32
  }
  func.func @transform_4(%arg0: i32) -> (i32, i32) {
    %c0_i32 = arith.constant 0 : i32
    %c0_i32_0 = arith.constant 0 : i32
    %c0_i32_1 = arith.constant 0 : i32
    return %c0_i32, %c0_i32_0 : i32, i32
  }
  func.func @transform_5(%arg0: i32) -> (i32, i32, i32, i32) {
    %c0_i32 = arith.constant 0 : i32
    %c0_i32_0 = arith.constant 0 : i32
    %c0_i32_1 = arith.constant 0 : i32
    %c0_i32_2 = arith.constant 0 : i32
    return %arg0, %c0_i32, %c0_i32_0, %c0_i32_1 : i32, i32, i32, i32
  }
  func.func @transform_6(%arg0: i32) -> (i32, i32, i32, i32) {
    %c0_i32 = arith.constant 0 : i32
    %c0_i32_0 = arith.constant 0 : i32
    %c0_i32_1 = arith.constant 0 : i32
    %c0_i32_2 = arith.constant 0 : i32
    return %arg0, %c0_i32, %c0_i32_0, %c0_i32_1 : i32, i32, i32, i32
  }
}

</mosaic_0001>

<llo_original>
// kernel: tile.13
$region0: #{tile.13}
  #allocation0 [shape = 's32[1]{0}', space=sflag, size = 0x4, scoped, tag = 'scoped memory for tile.13']
  %s0 = inlined_call_operand.vmem [shape: f32[4], index: 0, kind: input, shape index: {}]
  %s1 = inlined_call_operand.vmem [shape: f32[2,4], index: 1, kind: output, shape index: {}]
  // Predicated region
  $region2: #{tile.13} parent=0 // pred_check
    _
  $region3: #{tile.13} parent=0 // pred_check_branch
    %3 = sbr.rel (0) target = $region5
  $region4: #{tile.13} parent=0 // pred_region
    _
  $region5: #{tile.13} parent=0 // pred_fallthru
    _
  %v4 = vld [vmem:[%s0] ss:$0 sm:$0xff]
  %5 = vst [vmem:[%s1] sm:$0x3] %v4

// kernel: tile.18
$region0: #{tile.18}
  %s0 = inlined_call_operand.vmem [shape: f32[2,4], index: 0, kind: input, shape index: {}]
  %s1 = inlined_call_operand.vmem [shape: f32[1,1,8], index: 1, kind: output, shape index: {}]
  $region1: #{tile.18} parent=0
    #allocation0 [shape = 'u8[4096]{0}', space=vmem, size = 0x1000, scoped, tag = 'scoped mem for output reshape']
    #allocation1 [shape = 'u8[4096]{0}', space=vmem, size = 0x1000, scoped, tag = 'scoped mem for input reshape']
    %s3 = sshllo.u32 0, 2
    %v4 = vld [vmem:[%s0] sm:%s3]
    %5 = vst [vmem:[#allocation1] sm:%s3] %v4
    %v6 = vld [vmem:[#allocation1] sm:$0x1]
    %vm7 = vcmask 31744
    %8 = vst.msk [vmem:[#allocation0] sm:$0x1] %vm7, %v6
    %s9 = scalar_lea.vmem [#allocation1], 1
    %v10 = vld [vmem:[%s9] sm:$0x1]
    %11 = vrot.lane.b32.xlu0 %v10, 4
    %v12 = vpop.permute.xlu0 %11
    %vm13 = vcmask 64544
    %14 = vst.msk [vmem:[#allocation0] sm:$0x1] %vm13, %v12
    %s16 = sshllo.u32 0, 1
    %v18 = vld [vmem:[#allocation0] sm:%s16]
    %s19 = sshllo.u32 0, 1
    %20 = vst [vmem:[%s1] sm:%s19] %v18

// kernel: res_block_forward.2
$region0: #{res_block_forward.2}
  #allocation0 [shape = 'u32[]', space=smem, size = 0x4, offset = 0x4, fixed_abs, tag = 'smem constant byte address 0x4 - core index']
  #allocation1 [shape = 'u32[144,128]{1,0:T(1,128)}', space=vmem, size = 0x12000, scoped, tag = 'internal scratch']
  #allocation2 [shape = 'f32[18,10,8]{2,1,0:T(8,128)}', space=vmem, size = 0x24000, scoped, tag = 'scratch operand']
  %s0 = inlined_call_operand.vmem [shape: bf16[2,16,8,8], index: 0, kind: input, shape index: {}]
  %s1 = inlined_call_operand.vmem [shape: f32[1,1,8], index: 1, kind: input, shape index: {}]
  %s2 = inlined_call_operand.vmem [shape: f32[1,1,8], index: 2, kind: input, shape index: {}]
  %s3 = inlined_call_operand.vmem [shape: bf16[3,12,8], index: 3, kind: input, shape index: {}]
  %s4 = inlined_call_operand.vmem [shape: f32[1,8], index: 4, kind: input, shape index: {}]
  %s5 = inlined_call_operand.vmem [shape: f32[1,1,4], index: 5, kind: input, shape index: {}]
  %s6 = inlined_call_operand.vmem [shape: f32[1,1,4], index: 6, kind: input, shape index: {}]
  %s7 = inlined_call_operand.vmem [shape: bf16[4,8], index: 7, kind: input, shape index: {}]
  %s8 = inlined_call_operand.vmem [shape: bf16[2,8,8,8], index: 8, kind: output, shape index: {0}]
  %s9 = inlined_call_operand.vmem [shape: bf16[2,8,8,8], index: 9, kind: output, shape index: {1}]
  %s10 = inlined_call_operand.vmem [shape: f32[2,2,8], index: 10, kind: output, shape index: {2}]
  %11 = xla_tuple %s8, %s9, %s10
  %s12 = sld [smem:[#allocation0]]
  $region81: #{res_block_forward.2} parent=0
    _
  %s14 = ssub.s32 1, %s12
  %s15 = scalar_select 0, %s14, %s12
  loop: start=0, step=1, limit=4
  $region2: #{res_block_forward.2} parent=0 // loop_pre_header
    _
  $region3: #{res_block_forward.2} parent=0 // loop_header
    %s17 = sphi 0, %s21
    %p18 = scmp.ge.s32.totalorder %s17, 4
    %s27 = sphi 0, %s29
    %s30 = sphi 0, %s27
    %s31 = sphi 0, %s30
    %s47 = sphi 0, %s31
    %s51 = sphi 0, %s51
    %s53 = sphi 0, %s51
    %s54 = sphi 0, %s53
    %s68 = sphi 0, %s54
    %s72 = sphi 0, %s72
    %s74 = sphi 0, %s72
    %s75 = sphi 0, %s74
    %s89 = sphi 0, %s75
    %s93 = sphi 0, %s93
    %s95 = sphi 0, %s93
    %s96 = sphi 0, %s95
    %s110 = sphi 0, %s96
    %s114 = sphi 0, %s114
    %s116 = sphi 0, %s114
    %s117 = sphi 0, %s116
    %s131 = sphi 0, %s117
    %s135 = sphi 0, %s135
    %s137 = sphi 0, %s135
    %s138 = sphi 0, %s137
    %s152 = sphi 0, %s138
    %s156 = sphi 0, %s156
    %s158 = sphi 0, %s156
    %s159 = sphi 0, %s158
    %s173 = sphi 0, %s159
    %s177 = sphi 0, %s177
    %s179 = sphi 0, %s177
    %s180 = sphi 0, %s179
    %s194 = sphi 0, %s180
    %s200 = sphi 0, %s202
    %s203 = sphi 0, %s200
    %s204 = sphi 0, %s203
    %s220 = sphi 0, %s204
    %s226 = sphi 0, %s228
    %s229 = sphi 0, %s226
    %s230 = sphi 0, %s229
    %s246 = sphi 0, %s230
    %s252 = sphi 0, %s254
    %s255 = sphi 0, %s252
    %s256 = sphi 0, %s255
    %s272 = sphi 0, %s256
  $region4: #{res_block_forward.2} parent=0 // loop_header_branch
    %20 = sbr.rel (%p18) target = $region8
  $region5: #{res_block_forward.2} parent=0 // loop_body
    %s22 = ssub.s32 %s17, 1
    %s23 = ssub.s32 %s17, 2
    %s24 = sadd.s32 %s17, 1
    %s25 = ssub.s32 %s17, %s24
    %p26 = scmp.eq.s32.totalorder %s25, 0
    %s28 = sadd.s32 %s27, 1
    %s29 = scalar_select %p26, %s27, %s28
    %p32 = pneg %p26
    %p33 = scmp.eq.s32.totalorder %s17, 1
    %p34 = por %p32, %p33
    %p35 = scmp.ne.s32.totalorder %s27, %s30
    %p36 = scmp.eq.s32.totalorder %s17, 0
    %p37 = por %p35, %p36
    %p38 = scmp.ne.s32.totalorder %s27, %s30
    %p39 = scmp.eq.s32.totalorder %s22, 1
    %p40 = por %p38, %p39
    %p41 = scmp.ne.s32.totalorder %s30, %s31
    %p42 = scmp.eq.s32.totalorder %s22, 0
    %p43 = por %p41, %p42
    %p44 = scmp.ne.s32.totalorder %s30, %s31
    %p45 = scmp.eq.s32.totalorder %s23, 1
    %p46 = por %p44, %p45
    %p48 = scmp.ne.s32.totalorder %s31, %s47
    %p49 = scmp.eq.s32.totalorder %s23, 0
    %p50 = por %p48, %p49
    %s52 = sadd.s32 %s51, 1
    %p55 = scmp.eq.s32.totalorder %s17, 1
    %p56 = scmp.ne.s32.totalorder %s51, %s53
    %p57 = scmp.eq.s32.totalorder %s17, 0
    %p58 = por %p56, %p57
    %p59 = scmp.ne.s32.totalorder %s51, %s53
    %p60 = scmp.eq.s32.totalorder %s22, 1
    %p61 = por %p59, %p60
    %p62 = scmp.ne.s32.totalorder %s53, %s54
    %p63 = scmp.eq.s32.totalorder %s22, 0
    %p64 = por %p62, %p63
    %p65 = scmp.ne.s32.totalorder %s53, %s54
    %p66 = scmp.eq.s32.totalorder %s23, 1
    %p67 = por %p65, %p66
    %p69 = scmp.ne.s32.totalorder %s54, %s68
    %p70 = scmp.eq.s32.totalorder %s23, 0
    %p71 = por %p69, %p70
    %s73 = sadd.s32 %s72, 1
    %p76 = scmp.eq.s32.totalorder %s17, 1
    %p77 = scmp.ne.s32.totalorder %s72, %s74
    %p78 = scmp.eq.s32.totalorder %s17, 0
    %p79 = por %p77, %p78
    %p80 = scmp.ne.s32.totalorder %s72, %s74
    %p81 = scmp.eq.s32.totalorder %s22, 1
    %p82 = por %p80, %p81
    %p83 = scmp.ne.s32.totalorder %s74, %s75
    %p84 = scmp.eq.s32.totalorder %s22, 0
    %p85 = por %p83, %p84
    %p86 = scmp.ne.s32.totalorder %s74, %s75
    %p87 = scmp.eq.s32.totalorder %s23, 1
    %p88 = por %p86, %p87
    %p90 = scmp.ne.s32.totalorder %s75, %s89
    %p91 = scmp.eq.s32.totalorder %s23, 0
    %p92 = por %p90, %p91
    %s94 = sadd.s32 %s93, 1
    %p97 = scmp.eq.s32.totalorder %s17, 1
    %p98 = scmp.ne.s32.totalorder %s93, %s95
    %p99 = scmp.eq.s32.totalorder %s17, 0
    %p100 = por %p98, %p99
    %p101 = scmp.ne.s32.totalorder %s93, %s95
    %p102 = scmp.eq.s32.totalorder %s22, 1
    %p103 = por %p101, %p102
    %p104 = scmp.ne.s32.totalorder %s95, %s96
    %p105 = scmp.eq.s32.totalorder %s22, 0
    %p106 = por %p104, %p105
    %p107 = scmp.ne.s32.totalorder %s95, %s96
    %p108 = scmp.eq.s32.totalorder %s23, 1
    %p109 = por %p107, %p108
    %p111 = scmp.ne.s32.totalorder %s96, %s110
    %p112 = scmp.eq.s32.totalorder %s23, 0
    %p113 = por %p111, %p112
    %s115 = sadd.s32 %s114, 1
    %p118 = scmp.eq.s32.totalorder %s17, 1
    %p119 = scmp.ne.s32.totalorder %s114, %s116
    %p120 = scmp.eq.s32.totalorder %s17, 0
    %p121 = por %p119, %p120
    %p122 = scmp.ne.s32.totalorder %s114, %s116
    %p123 = scmp.eq.s32.totalorder %s22, 1
    %p124 = por %p122, %p123
    %p125 = scmp.ne.s32.totalorder %s116, %s117
    %p126 = scmp.eq.s32.totalorder %s22, 0
    %p127 = por %p125, %p126
    %p128 = scmp.ne.s32.totalorder %s116, %s117
    %p129 = scmp.eq.s32.totalorder %s23, 1
    %p130 = por %p128, %p129
    %p132 = scmp.ne.s32.totalorder %s117, %s131
    %p133 = scmp.eq.s32.totalorder %s23, 0
    %p134 = por %p132, %p133
    %s136 = sadd.s32 %s135, 1
    %p139 = scmp.eq.s32.totalorder %s17, 1
    %p140 = scmp.ne.s32.totalorder %s135, %s137
    %p141 = scmp.eq.s32.totalorder %s17, 0
    %p142 = por %p140, %p141
    %p143 = scmp.ne.s32.totalorder %s135, %s137
    %p144 = scmp.eq.s32.totalorder %s22, 1
    %p145 = por %p143, %p144
    %p146 = scmp.ne.s32.totalorder %s137, %s138
    %p147 = scmp.eq.s32.totalorder %s22, 0
    %p148 = por %p146, %p147
    %p149 = scmp.ne.s32.totalorder %s137, %s138
    %p150 = scmp.eq.s32.totalorder %s23, 1
    %p151 = por %p149, %p150
    %p153 = scmp.ne.s32.totalorder %s138, %s152
    %p154 = scmp.eq.s32.totalorder %s23, 0
    %p155 = por %p153, %p154
    %s157 = sadd.s32 %s156, 1
    %p160 = scmp.eq.s32.totalorder %s17, 1
    %p161 = scmp.ne.s32.totalorder %s156, %s158
    %p162 = scmp.eq.s32.totalorder %s17, 0
    %p163 = por %p161, %p162
    %p164 = scmp.ne.s32.totalorder %s156, %s158
    %p165 = scmp.eq.s32.totalorder %s22, 1
    %p166 = por %p164, %p165
    %p167 = scmp.ne.s32.totalorder %s158, %s159
    %p168 = scmp.eq.s32.totalorder %s22, 0
    %p169 = por %p167, %p168
    %p170 = scmp.ne.s32.totalorder %s158, %s159
    %p171 = scmp.eq.s32.totalorder %s23, 1
    %p172 = por %p170, %p171
    %p174 = scmp.ne.s32.totalorder %s159, %s173
    %p175 = scmp.eq.s32.totalorder %s23, 0
    %p176 = por %p174, %p175
    %s178 = sadd.s32 %s177, 1
    %p181 = scmp.eq.s32.totalorder %s17, 1
    %p182 = scmp.ne.s32.totalorder %s177, %s179
    %p183 = scmp.eq.s32.totalorder %s17, 0
    %p184 = por %p182, %p183
    %p185 = scmp.ne.s32.totalorder %s177, %s179
    %p186 = scmp.eq.s32.totalorder %s22, 1
    %p187 = por %p185, %p186
    %p188 = scmp.ne.s32.totalorder %s179, %s180
    %p189 = scmp.eq.s32.totalorder %s22, 0
    %p190 = por %p188, %p189
    %p191 = scmp.ne.s32.totalorder %s179, %s180
    %p192 = scmp.eq.s32.totalorder %s23, 1
    %p193 = por %p191, %p192
    %p195 = scmp.ne.s32.totalorder %s180, %s194
    %p196 = scmp.eq.s32.totalorder %s23, 0
    %p197 = por %p195, %p196
    %s198 = ssub.s32 %s17, %s24
    %p199 = scmp.eq.s32.totalorder %s198, 0
    %s201 = sadd.s32 %s200, 1
    %s202 = scalar_select %p199, %s200, %s201
    %p205 = pneg %p199
    %p206 = scmp.eq.s32.totalorder %s17, 1
    %p207 = por %p205, %p206
    %p208 = scmp.ne.s32.totalorder %s200, %s203
    %p209 = scmp.eq.s32.totalorder %s17, 0
    %p210 = por %p208, %p209
    %p211 = scmp.ne.s32.totalorder %s200, %s203
    %p212 = scmp.eq.s32.totalorder %s22, 1
    %p213 = por %p211, %p212
    %p214 = scmp.ne.s32.totalorder %s203, %s204
    %p215 = scmp.eq.s32.totalorder %s22, 0
    %p216 = por %p214, %p215
    %p217 = scmp.ne.s32.totalorder %s203, %s204
    %p218 = scmp.eq.s32.totalorder %s23, 1
    %p219 = por %p217, %p218
    %p221 = scmp.ne.s32.totalorder %s204, %s220
    %p222 = scmp.eq.s32.totalorder %s23, 0
    %p223 = por %p221, %p222
    %s224 = ssub.s32 %s17, %s24
    %p225 = scmp.eq.s32.totalorder %s224, 0
    %s227 = sadd.s32 %s226, 1
    %s228 = scalar_select %p225, %s226, %s227
    %p231 = pneg %p225
    %p232 = scmp.eq.s32.totalorder %s17, 1
    %p233 = por %p231, %p232
    %p234 = scmp.ne.s32.totalorder %s226, %s229
    %p235 = scmp.eq.s32.totalorder %s17, 0
    %p236 = por %p234, %p235
    %p237 = scmp.ne.s32.totalorder %s226, %s229
    %p238 = scmp.eq.s32.totalorder %s22, 1
    %p239 = por %p237, %p238
    %p240 = scmp.ne.s32.totalorder %s229, %s230
    %p241 = scmp.eq.s32.totalorder %s22, 0
    %p242 = por %p240, %p241
    %p243 = scmp.ne.s32.totalorder %s229, %s230
    %p244 = scmp.eq.s32.totalorder %s23, 1
    %p245 = por %p243, %p244
    %p247 = scmp.ne.s32.totalorder %s230, %s246
    %p248 = scmp.eq.s32.totalorder %s23, 0
    %p249 = por %p247, %p248
    %s250 = ssub.s32 %s17, %s24
    %p251 = scmp.eq.s32.totalorder %s250, 0
    %s253 = sadd.s32 %s252, 1
    %s254 = scalar_select %p251, %s252, %s253
    %p257 = pneg %p251
    %p258 = scmp.eq.s32.totalorder %s17, 1
    %p259 = por %p257, %p258
    %p260 = scmp.ne.s32.totalorder %s252, %s255
    %p261 = scmp.eq.s32.totalorder %s17, 0
    %p262 = por %p260, %p261
    %p263 = scmp.ne.s32.totalorder %s252, %s255
    %p264 = scmp.eq.s32.totalorder %s22, 1
    %p265 = por %p263, %p264
    %p266 = scmp.ne.s32.totalorder %s255, %s256
    %p267 = scmp.eq.s32.totalorder %s22, 0
    %p268 = por %p266, %p267
    %p269 = scmp.ne.s32.totalorder %s255, %s256
    %p270 = scmp.eq.s32.totalorder %s23, 1
    %p271 = por %p269, %p270
    %p273 = scmp.ne.s32.totalorder %s256, %s272
    %p274 = scmp.eq.s32.totalorder %s23, 0
    %p275 = por %p273, %p274
    %p276 = scmp.le.s32.totalorder 1, %s17
    %p277 = scmp.lt.s32.totalorder %s17, 3
    %p278 = pnand %p276, %p277
    %p279 = pneg %p278
    // Predicated region
    $region9: #{res_block_forward.2} parent=5 // pred_check
      _
    $region10: #{res_block_forward.2} parent=5 // pred_check_branch
      %281 = sbr.rel (%p278) target = $region12
    $region11: #{res_block_forward.2} parent=5 // pred_region
      %s282 = ssub.s32 %s17, 1
      // Predicated region
      $region13: #{res_block_forward.2} parent=11 // pred_check
        %p283 = pneg %p64
      $region14: #{res_block_forward.2} parent=11 // pred_check_branch
        %285 = sbr.rel (%p283) target = $region16
      $region15: #{res_block_forward.2} parent=11 // pred_region
        _
      $region16: #{res_block_forward.2} parent=11 // pred_fallthru
        _
      // Predicated region
      $region17: #{res_block_forward.2} parent=11 // pred_check
        %p286 = pneg %p85
      $region18: #{res_block_forward.2} parent=11 // pred_check_branch
        %288 = sbr.rel (%p286) target = $region20
      $region19: #{res_block_forward.2} parent=11 // pred_region
        _
      $region20: #{res_block_forward.2} parent=11 // pred_fallthru
        _
      // Predicated region
      $region21: #{res_block_forward.2} parent=11 // pred_check
        %p289 = pneg %p106
      $region22: #{res_block_forward.2} parent=11 // pred_check_branch
        %291 = sbr.rel (%p289) target = $region24
      $region23: #{res_block_forward.2} parent=11 // pred_region
        _
      $region24: #{res_block_forward.2} parent=11 // pred_fallthru
        _
      // Predicated region
      $region25: #{res_block_forward.2} parent=11 // pred_check
        %p292 = pneg %p127
      $region26: #{res_block_forward.2} parent=11 // pred_check_branch
        %294 = sbr.rel (%p292) target = $region28
      $region27: #{res_block_forward.2} parent=11 // pred_region
        _
      $region28: #{res_block_forward.2} parent=11 // pred_fallthru
        _
      // Predicated region
      $region29: #{res_block_forward.2} parent=11 // pred_check
        %p295 = pneg %p148
      $region30: #{res_block_forward.2} parent=11 // pred_check_branch
        %297 = sbr.rel (%p295) target = $region32
      $region31: #{res_block_forward.2} parent=11 // pred_region
        _
      $region32: #{res_block_forward.2} parent=11 // pred_fallthru
        _
      // Predicated region
      $region33: #{res_block_forward.2} parent=11 // pred_check
        %p298 = pneg %p169
      $region34: #{res_block_forward.2} parent=11 // pred_check_branch
        %300 = sbr.rel (%p298) target = $region36
      $region35: #{res_block_forward.2} parent=11 // pred_region
        _
      $region36: #{res_block_forward.2} parent=11 // pred_fallthru
        _
      // Predicated region
      $region37: #{res_block_forward.2} parent=11 // pred_check
        %p301 = pneg %p190
      $region38: #{res_block_forward.2} parent=11 // pred_check_branch
        %303 = sbr.rel (%p301) target = $region40
      $region39: #{res_block_forward.2} parent=11 // pred_region
        _
      $region40: #{res_block_forward.2} parent=11 // pred_fallthru
        _
    $region12: #{res_block_forward.2} parent=5 // pred_fallthru
      _
    %p304 = scmp.lt.s32.totalorder %s17, 2
    // Predicated region
    $region41: #{res_block_forward.2} parent=5 // pred_check
      %p305 = pneg %p304
    $region42: #{res_block_forward.2} parent=5 // pred_check_branch
      %307 = sbr.rel (%p305) target = $region44
    $region43: #{res_block_forward.2} parent=5 // pred_region
      // Predicated region
      $region45: #{res_block_forward.2} parent=43 // pred_check
        %p308 = pneg %p37
      $region46: #{res_block_forward.2} parent=43 // pred_check_branch
        %310 = sbr.rel (%p308) target = $region48
      $region47: #{res_block_forward.2} parent=43 // pred_region
        %p311 = scmp.lt.s32.totalorder %s17, 1
        %s312 = scalar_select %p311, %s17, 1
        %s313 = smul.addr %s312, 16
        %s314 = smul.addr %s313, 4
        %s315 = scalar_lea.vmem %s0, %s314
      $region48: #{res_block_forward.2} parent=43 // pred_fallthru
        _
    $region44: #{res_block_forward.2} parent=5 // pred_fallthru
      _
    %p316 = scmp.le.s32.totalorder 1, %s17
    %p317 = scmp.lt.s32.totalorder %s17, 3
    %p318 = pnand %p316, %p317
    %p319 = pneg %p318
    // Predicated region
    $region49: #{res_block_forward.2} parent=5 // pred_check
      _
    $region50: #{res_block_forward.2} parent=5 // pred_check_branch
      %321 = sbr.rel (%p318) target = $region52
    $region51: #{res_block_forward.2} parent=5 // pred_region
      %s322 = ssub.s32 %s17, 1
      %p323 = scmp.lt.s32.totalorder %s22, 1
      %s324 = scalar_select %p323, %s22, 1
      %s325 = smul.addr %s324, 16
      %s326 = smul.addr %s325, 4
      %s327 = scalar_lea.vmem %s0, %s326
      %p328 = pneg %p43
      %p329 = pneg %p40
      %p330 = pneg %p64
      %p331 = pneg %p61
      %p332 = pneg %p85
      %p333 = pneg %p82
      %p334 = pneg %p106
      %p335 = pneg %p103
      %p336 = pneg %p127
      %p337 = pneg %p124
      %p338 = pneg %p148
      %p339 = pneg %p145
      %p340 = pneg %p169
      %p341 = pneg %p166
      %p342 = pneg %p190
      %p343 = pneg %p187
      %p344 = pneg %p216
      %p345 = pneg %p213
      %p346 = scmp.lt.s32.totalorder %s22, 1
      %s347 = scalar_select %p346, %s22, 1
      %s348 = smul.addr %s347, 8
      %s349 = smul.addr %s348, 4
      %s350 = scalar_lea.vmem %s8, %s349
      %p351 = pneg %p242
      %p352 = pneg %p239
      %p353 = scmp.lt.s32.totalorder %s22, 1
      %s354 = scalar_select %p353, %s22, 1
      %s355 = smul.addr %s354, 8
      %s356 = smul.addr %s355, 4
      %s357 = scalar_lea.vmem %s9, %s356
      %p358 = pneg %p268
      %p359 = pneg %p265
      %p360 = scmp.lt.s32.totalorder %s22, 1
      %s361 = scalar_select %p360, %s22, 1
      %s362 = smul.addr %s361, 2
      %s363 = scalar_lea.vmem %s10, %s362
      %p364 = scmp.lt.s32.totalorder %s22, 1
      %s365 = scalar_select %p364, %s22, 1
      %s366 = smul.addr %s365, 16
      %s367 = smul.addr %s366, 4
      %s368 = scalar_lea.vmem %s0, %s367
      %p369 = scmp.lt.s32.totalorder %s22, 1
      %s370 = scalar_select %p369, %s22, 1
      %s371 = smul.addr %s370, 8
      %s372 = smul.addr %s371, 4
      %s373 = scalar_lea.vmem %s8, %s372
      %p374 = scmp.lt.s32.totalorder %s22, 1
      %s375 = scalar_select %p374, %s22, 1
      %s376 = smul.addr %s375, 8
      %s377 = smul.addr %s376, 4
      %s378 = scalar_lea.vmem %s9, %s377
      %p379 = scmp.lt.s32.totalorder %s22, 1
      %s380 = scalar_select %p379, %s22, 1
      %s381 = smul.addr %s380, 2
      %s382 = scalar_lea.vmem %s10, %s381
      %v384 = vld [vmem:[%s368] sm:$0xf]
      %v385 = vld [vmem:[%s368 + $0x4] sm:$0xf]
      %v386 = vld [vmem:[%s368 + $0x8] sm:$0xf]
      %v387 = vld [vmem:[%s368 + $0xc] sm:$0xf]
      %v388 = vld [vmem:[%s368 + $0x10] sm:$0xf]
      %v389 = vld [vmem:[%s368 + $0x14] sm:$0xf]
      %v390 = vld [vmem:[%s368 + $0x18] sm:$0xf]
      %v391 = vld [vmem:[%s368 + $0x1c] sm:$0xf]
      %v392 = vld [vmem:[%s368 + $0x20] sm:$0xf]
      %v393 = vld [vmem:[%s368 + $0x24] sm:$0xf]
      %v394 = vld [vmem:[%s368 + $0x28] sm:$0xf]
      %v395 = vld [vmem:[%s368 + $0x2c] sm:$0xf]
      %v396 = vld [vmem:[%s368 + $0x30] sm:$0xf]
      %v397 = vld [vmem:[%s368 + $0x34] sm:$0xf]
      %v398 = vld [vmem:[%s368 + $0x38] sm:$0xf]
      %v399 = vld [vmem:[%s368 + $0x3c] sm:$0xf]
      %v400 = vunpack.c.l.bf16 %v384
      %v401 = vunpack.c.l.bf16 %v385
      %v402 = vunpack.c.l.bf16 %v386
      %v403 = vunpack.c.l.bf16 %v387
      %v404 = vunpack.c.l.bf16 %v388
      %v405 = vunpack.c.l.bf16 %v389
      %v406 = vunpack.c.l.bf16 %v390
      %v407 = vunpack.c.l.bf16 %v391
      %v408 = vunpack.c.l.bf16 %v392
      %v409 = vunpack.c.l.bf16 %v393
      %v410 = vunpack.c.l.bf16 %v394
      %v411 = vunpack.c.l.bf16 %v395
      %v412 = vunpack.c.l.bf16 %v396
      %v413 = vunpack.c.l.bf16 %v397
      %v414 = vunpack.c.l.bf16 %v398
      %v415 = vunpack.c.l.bf16 %v399
      %v416 = vld [vmem:[%s1] sm:$0x1]
      %v418 = vlaneseq
      %v419 = vshrl.u32 %v418, 7
      %v420 = vsub.s32 0, %v419
      %v421 = vrot.slane %v416, %v420
      %v423 = vmul.f32 %v400, %v421
      %v424 = vmul.f32 %v401, %v421
      %v425 = vmul.f32 %v402, %v421
      %v426 = vmul.f32 %v403, %v421
      %v427 = vmul.f32 %v404, %v421
      %v428 = vmul.f32 %v405, %v421
      %v429 = vmul.f32 %v406, %v421
      %v430 = vmul.f32 %v407, %v421
      %v431 = vmul.f32 %v408, %v421
      %v432 = vmul.f32 %v409, %v421
      %v433 = vmul.f32 %v410, %v421
      %v434 = vmul.f32 %v411, %v421
      %v435 = vmul.f32 %v412, %v421
      %v436 = vmul.f32 %v413, %v421
      %v437 = vmul.f32 %v414, %v421
      %v438 = vmul.f32 %v415, %v421
      %v439 = vld [vmem:[%s2] sm:$0x1]
      %v441 = vlaneseq
      %v442 = vshrl.u32 %v441, 7
      %v443 = vsub.s32 0, %v442
      %v444 = vrot.slane %v439, %v443
      %v446 = vadd.f32 %v423, %v444
      %v447 = vadd.f32 %v424, %v444
      %v448 = vadd.f32 %v425, %v444
      %v449 = vadd.f32 %v426, %v444
      %v450 = vadd.f32 %v427, %v444
      %v451 = vadd.f32 %v428, %v444
      %v452 = vadd.f32 %v429, %v444
      %v453 = vadd.f32 %v430, %v444
      %v454 = vadd.f32 %v431, %v444
      %v455 = vadd.f32 %v432, %v444
      %v456 = vadd.f32 %v433, %v444
      %v457 = vadd.f32 %v434, %v444
      %v458 = vadd.f32 %v435, %v444
      %v459 = vadd.f32 %v436, %v444
      %v460 = vadd.f32 %v437, %v444
      %v461 = vadd.f32 %v438, %v444
      %v462 = vmax.f32 %v446, 0.0
      %v463 = vmax.f32 %v447, 0.0
      %v464 = vmax.f32 %v448, 0.0
      %v465 = vmax.f32 %v449, 0.0
      %v466 = vmax.f32 %v450, 0.0
      %v467 = vmax.f32 %v451, 0.0
      %v468 = vmax.f32 %v452, 0.0
      %v469 = vmax.f32 %v453, 0.0
      %v470 = vmax.f32 %v454, 0.0
      %v471 = vmax.f32 %v455, 0.0
      %v472 = vmax.f32 %v456, 0.0
      %v473 = vmax.f32 %v457, 0.0
      %v474 = vmax.f32 %v458, 0.0
      %v475 = vmax.f32 %v459, 0.0
      %v476 = vmax.f32 %v460, 0.0
      %v477 = vmax.f32 %v461, 0.0
      %vm478 = vcmask 64512
      %479 = vst.msk [vmem:[#allocation2] sm:$0xff] %vm478, 0.0
      %vm480 = vcmask 58368
      %481 = vst.msk [vmem:[#allocation2 + $0x8] sm:$0x3] %vm480, 0.0
      %s482 = scalar_lea.vmem [#allocation2], 272
      %483 = vst.msk [vmem:[%s482] sm:$0xff] %vm478, 0.0
      %484 = vst.msk [vmem:[%s482 + $0x8] sm:$0x3] %vm480, 0.0
      %vm485 = vcmask 57344
      %486 = vst.msk [vmem:[#allocation2] sm:$0x1] %vm485, 0.0
      %487 = vst.msk [vmem:[#allocation2 + $0x10] sm:$0x1] %vm485, 0.0
      %488 = vst.msk [vmem:[#allocation2 + $0x20] sm:$0x1] %vm485, 0.0
      %489 = vst.msk [vmem:[#allocation2 + $0x30] sm:$0x1] %vm485, 0.0
      %490 = vst.msk [vmem:[#allocation2 + $0x40] sm:$0x1] %vm485, 0.0
      %491 = vst.msk [vmem:[#allocation2 + $0x50] sm:$0x1] %vm485, 0.0
      %492 = vst.msk [vmem:[#allocation2 + $0x60] sm:$0x1] %vm485, 0.0
      %493 = vst.msk [vmem:[#allocation2 + $0x70] sm:$0x1] %vm485, 0.0
      %494 = vst.msk [vmem:[#allocation2 + $0x80] sm:$0x1] %vm485, 0.0
      %495 = vst.msk [vmem:[#allocation2 + $0x90] sm:$0x1] %vm485, 0.0
      %496 = vst.msk [vmem:[#allocation2 + $0xa0] sm:$0x1] %vm485, 0.0
      %497 = vst.msk [vmem:[#allocation2 + $0xb0] sm:$0x1] %vm485, 0.0
      %498 = vst.msk [vmem:[#allocation2 + $0xc0] sm:$0x1] %vm485, 0.0
      %499 = vst.msk [vmem:[#allocation2 + $0xd0] sm:$0x1] %vm485, 0.0
      %500 = vst.msk [vmem:[#allocation2 + $0xe0] sm:$0x1] %vm485, 0.0
      %501 = vst.msk [vmem:[#allocation2 + $0xf0] sm:$0x1] %vm485, 0.0
      %502 = vst.msk [vmem:[#allocation2 + $0x100] sm:$0x1] %vm485, 0.0
      %503 = vst.msk [vmem:[#allocation2 + $0x110] sm:$0x1] %vm485, 0.0
      %504 = vst.msk [vmem:[#allocation2 + $0x9] sm:$0x1] %vm485, 0.0
      %505 = vst.msk [vmem:[#allocation2 + $0x19] sm:$0x1] %vm485, 0.0
      %506 = vst.msk [vmem:[#allocation2 + $0x29] sm:$0x1] %vm485, 0.0
      %507 = vst.msk [vmem:[#allocation2 + $0x39] sm:$0x1] %vm485, 0.0
      %508 = vst.msk [vmem:[#allocation2 + $0x49] sm:$0x1] %vm485, 0.0
      %509 = vst.msk [vmem:[#allocation2 + $0x59] sm:$0x1] %vm485, 0.0
      %510 = vst.msk [vmem:[#allocation2 + $0x69] sm:$0x1] %vm485, 0.0
      %511 = vst.msk [vmem:[#allocation2 + $0x79] sm:$0x1] %vm485, 0.0
      %512 = vst.msk [vmem:[#allocation2 + $0x89] sm:$0x1] %vm485, 0.0
      %513 = vst.msk [vmem:[#allocation2 + $0x99] sm:$0x1] %vm485, 0.0
      %514 = vst.msk [vmem:[#allocation2 + $0xa9] sm:$0x1] %vm485, 0.0
      %515 = vst.msk [vmem:[#allocation2 + $0xb9] sm:$0x1] %vm485, 0.0
      %516 = vst.msk [vmem:[#allocation2 + $0xc9] sm:$0x1] %vm485, 0.0
      %517 = vst.msk [vmem:[#allocation2 + $0xd9] sm:$0x1] %vm485, 0.0
      %518 = vst.msk [vmem:[#allocation2 + $0xe9] sm:$0x1] %vm485, 0.0
      %519 = vst.msk [vmem:[#allocation2 + $0xf9] sm:$0x1] %vm485, 0.0
      %520 = vst.msk [vmem:[#allocation2 + $0x109] sm:$0x1] %vm485, 0.0
      %521 = vst.msk [vmem:[#allocation2 + $0x119] sm:$0x1] %vm485, 0.0
      %s522 = scalar_lea.vmem [#allocation2], 16
      %523 = vst.msk [vmem:[%s522 + $0x1] sm:$0xff] %vm478, %v462
      %524 = vst.msk [vmem:[%s522 + $0x11] sm:$0xff] %vm478, %v463
      %525 = vst.msk [vmem:[%s522 + $0x21] sm:$0xff] %vm478, %v464
      %526 = vst.msk [vmem:[%s522 + $0x31] sm:$0xff] %vm478, %v465
      %527 = vst.msk [vmem:[%s522 + $0x41] sm:$0xff] %vm478, %v466
      %528 = vst.msk [vmem:[%s522 + $0x51] sm:$0xff] %vm478, %v467
      %529 = vst.msk [vmem:[%s522 + $0x61] sm:$0xff] %vm478, %v468
      %530 = vst.msk [vmem:[%s522 + $0x71] sm:$0xff] %vm478, %v469
      %531 = vst.msk [vmem:[%s522 + $0x81] sm:$0xff] %vm478, %v470
      %532 = vst.msk [vmem:[%s522 + $0x91] sm:$0xff] %vm478, %v471
      %533 = vst.msk [vmem:[%s522 + $0xa1] sm:$0xff] %vm478, %v472
      %534 = vst.msk [vmem:[%s522 + $0xb1] sm:$0xff] %vm478, %v473
      %535 = vst.msk [vmem:[%s522 + $0xc1] sm:$0xff] %vm478, %v474
      %536 = vst.msk [vmem:[%s522 + $0xd1] sm:$0xff] %vm478, %v475
      %537 = vst.msk [vmem:[%s522 + $0xe1] sm:$0xff] %vm478, %v476
      %538 = vst.msk [vmem:[%s522 + $0xf1] sm:$0xff] %vm478, %v477
      %v539 = vld [vmem:[#allocation2] sm:$0xff]
      %v540 = vld [vmem:[#allocation2 + $0x8] sm:$0x3]
      %v541 = vld [vmem:[#allocation2 + $0x20] sm:$0xff]
      %v542 = vld [vmem:[#allocation2 + $0x28] sm:$0x3]
      %v543 = vld [vmem:[#allocation2 + $0x40] sm:$0xff]
      %v544 = vld [vmem:[#allocation2 + $0x48] sm:$0x3]
      %v545 = vld [vmem:[#allocation2 + $0x60] sm:$0xff]
      %v546 = vld [vmem:[#allocation2 + $0x68] sm:$0x3]
      %v547 = vld [vmem:[#allocation2 + $0x80] sm:$0xff]
      %v548 = vld [vmem:[#allocation2 + $0x88] sm:$0x3]
      %v549 = vld [vmem:[#allocation2 + $0xa0] sm:$0xff]
      %v550 = vld [vmem:[#allocation2 + $0xa8] sm:$0x3]
      %v551 = vld [vmem:[#allocation2 + $0xc0] sm:$0xff]
      %v552 = vld [vmem:[#allocation2 + $0xc8] sm:$0x3]
      %v553 = vld [vmem:[#allocation2 + $0xe0] sm:$0xff]
      %v554 = vld [vmem:[#allocation2 + $0xe8] sm:$0x3]
      %563 = vrot.lane.b32.xlu0 %v539, 124
      %v564 = vpop.permute.xlu0 %563
      %565 = vrot.lane.b32.xlu0 %v541, 124
      %v566 = vpop.permute.xlu0 %565
      %567 = vrot.lane.b32.xlu0 %v543, 124
      %v568 = vpop.permute.xlu0 %567
      %569 = vrot.lane.b32.xlu0 %v545, 124
      %v570 = vpop.permute.xlu0 %569
      %571 = vrot.lane.b32.xlu0 %v547, 124
      %v572 = vpop.permute.xlu0 %571
      %573 = vrot.lane.b32.xlu0 %v549, 124
      %v574 = vpop.permute.xlu0 %573
      %575 = vrot.lane.b32.xlu0 %v551, 124
      %v576 = vpop.permute.xlu0 %575
      %577 = vrot.lane.b32.xlu0 %v553, 124
      %v578 = vpop.permute.xlu0 %577
      %vm595 = vcmask 1046528
      %v596 = vrot.slane %v539, 1
      %v597 = vrot.slane %v540, 1
      %v598 = vsel %vm595, %v596, %v597
      %v599 = vrot.slane %v541, 1
      %v600 = vrot.slane %v542, 1
      %v601 = vsel %vm595, %v599, %v600
      %v602 = vrot.slane %v543, 1
      %v603 = vrot.slane %v544, 1
      %v604 = vsel %vm595, %v602, %v603
      %v605 = vrot.slane %v545, 1
      %v606 = vrot.slane %v546, 1
      %v607 = vsel %vm595, %v605, %v606
      %v608 = vrot.slane %v547, 1
      %v609 = vrot.slane %v548, 1
      %v610 = vsel %vm595, %v608, %v609
      %v611 = vrot.slane %v549, 1
      %v612 = vrot.slane %v550, 1
      %v613 = vsel %vm595, %v611, %v612
      %v614 = vrot.slane %v551, 1
      %v615 = vrot.slane %v552, 1
      %v616 = vsel %vm595, %v614, %v615
      %v617 = vrot.slane %v553, 1
      %v618 = vrot.slane %v554, 1
      %v619 = vsel %vm595, %v617, %v618
      %620 = vrot.lane.b32.xlu0 %v598, 4
      %v621 = vpop.permute.xlu0 %620
      %622 = vrot.lane.b32.xlu0 %v601, 4
      %v623 = vpop.permute.xlu0 %622
      %624 = vrot.lane.b32.xlu0 %v604, 4
      %v625 = vpop.permute.xlu0 %624
      %626 = vrot.lane.b32.xlu0 %v607, 4
      %v627 = vpop.permute.xlu0 %626
      %628 = vrot.lane.b32.xlu0 %v610, 4
      %v629 = vpop.permute.xlu0 %628
      %630 = vrot.lane.b32.xlu0 %v613, 4
      %v631 = vpop.permute.xlu0 %630
      %632 = vrot.lane.b32.xlu0 %v616, 4
      %v633 = vpop.permute.xlu0 %632
      %634 = vrot.lane.b32.xlu0 %v619, 4
      %v635 = vpop.permute.xlu0 %634
      %vm644 = vcmask 31744
      %v645 = vsel %vm644, %v564, %v621
      %v646 = vsel %vm644, %v566, %v623
      %v647 = vsel %vm644, %v568, %v625
      %v648 = vsel %vm644, %v570, %v627
      %v649 = vsel %vm644, %v572, %v629
      %v650 = vsel %vm644, %v574, %v631
      %v651 = vsel %vm644, %v576, %v633
      %v652 = vsel %vm644, %v578, %v635
      %v653 = vsel %vm478, %v645, %v621
      %v654 = vsel %vm478, %v646, %v623
      %v655 = vsel %vm478, %v647, %v625
      %v656 = vsel %vm478, %v648, %v627
      %v657 = vsel %vm478, %v649, %v629
      %v658 = vsel %vm478, %v650, %v631
      %v659 = vsel %vm478, %v651, %v633
      %v660 = vsel %vm478, %v652, %v635
      %v661 = vpack.c.bf16 %v654, %v653
      %v662 = vpack.c.bf16 %v656, %v655
      %v663 = vpack.c.bf16 %v658, %v657
      %v664 = vpack.c.bf16 %v660, %v659
      %v665 = vld [vmem:[%s3] sm:$0xf]
      %v666 = vld [vmem:[%s3 + $0x4] sm:$0x3]
      %v667 = vld [vmem:[%s522] sm:$0xff]
      %v668 = vld [vmem:[%s522 + $0x8] sm:$0x3]
      %v669 = vld [vmem:[%s522 + $0x20] sm:$0xff]
      %v670 = vld [vmem:[%s522 + $0x28] sm:$0x3]
      %v671 = vld [vmem:[%s522 + $0x40] sm:$0xff]
      %v672 = vld [vmem:[%s522 + $0x48] sm:$0x3]
      %v673 = vld [vmem:[%s522 + $0x60] sm:$0xff]
      %v674 = vld [vmem:[%s522 + $0x68] sm:$0x3]
      %v675 = vld [vmem:[%s522 + $0x80] sm:$0xff]
      %v676 = vld [vmem:[%s522 + $0x88] sm:$0x3]
      %v677 = vld [vmem:[%s522 + $0xa0] sm:$0xff]
      %v678 = vld [vmem:[%s522 + $0xa8] sm:$0x3]
      %v679 = vld [vmem:[%s522 + $0xc0] sm:$0xff]
      %v680 = vld [vmem:[%s522 + $0xc8] sm:$0x3]
      %v681 = vld [vmem:[%s522 + $0xe0] sm:$0xff]
      %v682 = vld [vmem:[%s522 + $0xe8] sm:$0x3]
      %691 = vrot.lane.b32.xlu0 %v667, 124
      %v692 = vpop.permute.xlu0 %691
      %693 = vrot.lane.b32.xlu0 %v669, 124
      %v694 = vpop.permute.xlu0 %693
      %695 = vrot.lane.b32.xlu0 %v671, 124
      %v696 = vpop.permute.xlu0 %695
      %697 = vrot.lane.b32.xlu0 %v673, 124
      %v698 = vpop.permute.xlu0 %697
      %699 = vrot.lane.b32.xlu0 %v675, 124
      %v700 = vpop.permute.xlu0 %699
      %701 = vrot.lane.b32.xlu0 %v677, 124
      %v702 = vpop.permute.xlu0 %701
      %703 = vrot.lane.b32.xlu0 %v679, 124
      %v704 = vpop.permute.xlu0 %703
      %705 = vrot.lane.b32.xlu0 %v681, 124
      %v706 = vpop.permute.xlu0 %705
      %v723 = vrot.slane %v667, 1
      %v724 = vrot.slane %v668, 1
      %v725 = vsel %vm595, %v723, %v724
      %v726 = vrot.slane %v669, 1
      %v727 = vrot.slane %v670, 1
      %v728 = vsel %vm595, %v726, %v727
      %v729 = vrot.slane %v671, 1
      %v730 = vrot.slane %v672, 1
      %v731 = vsel %vm595, %v729, %v730
      %v732 = vrot.slane %v673, 1
      %v733 = vrot.slane %v674, 1
      %v734 = vsel %vm595, %v732, %v733
      %v735 = vrot.slane %v675, 1
      %v736 = vrot.slane %v676, 1
      %v737 = vsel %vm595, %v735, %v736
      %v738 = vrot.slane %v677, 1
      %v739 = vrot.slane %v678, 1
      %v740 = vsel %vm595, %v738, %v739
      %v741 = vrot.slane %v679, 1
      %v742 = vrot.slane %v680, 1
      %v743 = vsel %vm595, %v741, %v742
      %v744 = vrot.slane %v681, 1
      %v745 = vrot.slane %v682, 1
      %v746 = vsel %vm595, %v744, %v745
      %747 = vrot.lane.b32.xlu0 %v725, 4
      %v748 = vpop.permute.xlu0 %747
      %749 = vrot.lane.b32.xlu0 %v728, 4
      %v750 = vpop.permute.xlu0 %749
      %751 = vrot.lane.b32.xlu0 %v731, 4
      %v752 = vpop.permute.xlu0 %751
      %753 = vrot.lane.b32.xlu0 %v734, 4
      %v754 = vpop.permute.xlu0 %753
      %755 = vrot.lane.b32.xlu0 %v737, 4
      %v756 = vpop.permute.xlu0 %755
      %757 = vrot.lane.b32.xlu0 %v740, 4
      %v758 = vpop.permute.xlu0 %757
      %759 = vrot.lane.b32.xlu0 %v743, 4
      %v760 = vpop.permute.xlu0 %759
      %761 = vrot.lane.b32.xlu0 %v746, 4
      %v762 = vpop.permute.xlu0 %761
      %v771 = vsel %vm644, %v692, %v748
      %v772 = vsel %vm644, %v694, %v750
      %v773 = vsel %vm644, %v696, %v752
      %v774 = vsel %vm644, %v698, %v754
      %v775 = vsel %vm644, %v700, %v756
      %v776 = vsel %vm644, %v702, %v758
      %v777 = vsel %vm644, %v704, %v760
      %v778 = vsel %vm644, %v706, %v762
      %v779 = vsel %vm478, %v771, %v748
      %v780 = vsel %vm478, %v772, %v750
      %v781 = vsel %vm478, %v773, %v752
      %v782 = vsel %vm478, %v774, %v754
      %v783 = vsel %vm478, %v775, %v756
      %v784 = vsel %vm478, %v776, %v758
      %v785 = vsel %vm478, %v777, %v760
      %v786 = vsel %vm478, %v778, %v762
      %v787 = vpack.c.bf16 %v780, %v779
      %v788 = vpack.c.bf16 %v782, %v781
      %v789 = vpack.c.bf16 %v784, %v783
      %v790 = vpack.c.bf16 %v786, %v785
      %s791 = scalar_lea.vmem %s3, 8
      %v792 = vld [vmem:[%s791] sm:$0xf]
      %v793 = vld [vmem:[%s791 + $0x4] sm:$0x3]
      %v796 = vunpack.c.l.b16 %v792
      %v797 = vunpack.c.l.b16 %v793
      %v798 = vpack.c.b16 %v797, %v796
      %vm799 = vcmask 97280
      %v801 = vsel %vm799, %v787, 0
      %v804 = vsel %vm799, %v788, 0
      %v807 = vsel %vm799, %v789, 0
      %v810 = vsel %vm799, %v790, 0
      %vm812 = vcmask 1045504
      %v814 = vsel %vm812, %v798, 0
      %816 = vmatprep.subr.bf16.mxu0 0
      %817 = vmatpush1.bf16.msra.mxu0 %v814
      %818 = vmatprep.subr.bf16.mxu0 0
      %819 = vmatpush1.bf16.msra.mxu0 0
      %820 = vmatprep.subr.bf16.mxu0 0
      %821 = vmatpush1.bf16.msra.mxu0 0
      %822 = vmatprep.subr.bf16.mxu0 0
      %823 = vmatpush1.bf16.msra.mxu0 0
      %824 = vmatprep.subr.bf16.mxu0 0
      %825 = vmatpush1.bf16.msra.mxu0 0
      %826 = vmatprep.subr.bf16.mxu0 0
      %827 = vmatpush1.bf16.msra.mxu0 0
      %828 = vmatprep.subr.bf16.mxu0 0
      %829 = vmatpush1.bf16.msra.mxu0 0
      %830 = vmatprep.subr.bf16.mxu0 0
      %831 = vmatpush1.bf16.msra.mxu0 0
      %832 = vmatprep.subr.bf16.mxu0 0
      %833 = vmatpush1.bf16.msra.mxu0 0
      %834 = vmatprep.subr.bf16.mxu0 0
      %835 = vmatpush1.bf16.msra.mxu0 0
      %836 = vmatprep.subr.bf16.mxu0 0
      %837 = vmatpush1.bf16.msra.mxu0 0
      %838 = vmatprep.subr.bf16.mxu0 0
      %839 = vmatpush1.bf16.msra.mxu0 0
      %840 = vmatprep.subr.bf16.mxu0 0
      %841 = vmatpush1.bf16.msra.mxu0 0
      %842 = vmatprep.subr.bf16.mxu0 0
      %843 = vmatpush1.bf16.msra.mxu0 0
      %844 = vmatprep.subr.bf16.mxu0 0
      %845 = vmatpush1.bf16.msra.mxu0 0
      %846 = vmatprep.subr.bf16.mxu0 0
      %847 = vmatpush1.bf16.msra.mxu0 0
      %848 = vmatprep.mubr.bf16.mxu0 0
      %849 = vmatmul.mubr.bf16.gmra.mrb[0].mxu0 %v801
      %v850 = vpop.f32.mrb[0].mxu0
      %v851 = vadd.f32 0.0, %v850
      %v852 = vpop.f32.mrb[0].mxu0
      %v853 = vpop.f32.mrb[0].mxu0
      %v854 = vadd.f32 0.0, %v853
      %v855 = vpop.f32.mrb[0].mxu0
      %856 = vmatprep.mubr.bf16.mxu0 0
      %857 = vmatmul.mubr.bf16.gmra.mrb[0].mxu0 %v804
      %v858 = vpop.f32.mrb[0].mxu0
      %v859 = vadd.f32 0.0, %v858
      %v860 = vpop.f32.mrb[0].mxu0
      %v861 = vpop.f32.mrb[0].mxu0
      %v862 = vadd.f32 0.0, %v861
      %v863 = vpop.f32.mrb[0].mxu0
      %864 = vmatprep.mubr.bf16.mxu0 0
      %865 = vmatmul.mubr.bf16.gmra.mrb[0].mxu0 %v807
      %v866 = vpop.f32.mrb[0].mxu0
      %v867 = vadd.f32 0.0, %v866
      %v868 = vpop.f32.mrb[0].mxu0
      %v869 = vpop.f32.mrb[0].mxu0
      %v870 = vadd.f32 0.0, %v869
      %v871 = vpop.f32.mrb[0].mxu0
      %872 = vmatprep.mubr.bf16.mxu0 0
      %873 = vmatmul.mubr.bf16.gmra.mrb[0].mxu0 %v810
      %v874 = vpop.f32.mrb[0].mxu0
      %v875 = vadd.f32 0.0, %v874
      %v876 = vpop.f32.mrb[0].mxu0
      %v877 = vpop.f32.mrb[0].mxu0
      %v878 = vadd.f32 0.0, %v877
      %v879 = vpop.f32.mrb[0].mxu0
      %880 = vdwg.mxu0
      %v883 = vunpack.c.l.b16 %v665
      %v884 = vunpack.c.l.b16 %v666
      %v885 = vpack.c.b16 %v884, %v883
      %v887 = vsel %vm799, %v661, 0
      %v890 = vsel %vm799, %v662, 0
      %v893 = vsel %vm799, %v663, 0
      %v896 = vsel %vm799, %v664, 0
      %v899 = vsel %vm812, %v885, 0
      %901 = vmatprep.subr.bf16.mxu0 0
      %902 = vmatpush1.bf16.msra.mxu0 %v899
      %903 = vmatprep.subr.bf16.mxu0 0
      %904 = vmatpush1.bf16.msra.mxu0 0
      %905 = vmatprep.subr.bf16.mxu0 0
      %906 = vmatpush1.bf16.msra.mxu0 0
      %907 = vmatprep.subr.bf16.mxu0 0
      %908 = vmatpush1.bf16.msra.mxu0 0
      %909 = vmatprep.subr.bf16.mxu0 0
      %910 = vmatpush1.bf16.msra.mxu0 0
      %911 = vmatprep.subr.bf16.mxu0 0
      %912 = vmatpush1.bf16.msra.mxu0 0
      %913 = vmatprep.subr.bf16.mxu0 0
      %914 = vmatpush1.bf16.msra.mxu0 0
      %915 = vmatprep.subr.bf16.mxu0 0
      %916 = vmatpush1.bf16.msra.mxu0 0
      %917 = vmatprep.subr.bf16.mxu0 0
      %918 = vmatpush1.bf16.msra.mxu0 0
      %919 = vmatprep.subr.bf16.mxu0 0
      %920 = vmatpush1.bf16.msra.mxu0 0
      %921 = vmatprep.subr.bf16.mxu0 0
      %922 = vmatpush1.bf16.msra.mxu0 0
      %923 = vmatprep.subr.bf16.mxu0 0
      %924 = vmatpush1.bf16.msra.mxu0 0
      %925 = vmatprep.subr.bf16.mxu0 0
      %926 = vmatpush1.bf16.msra.mxu0 0
      %927 = vmatprep.subr.bf16.mxu0 0
      %928 = vmatpush1.bf16.msra.mxu0 0
      %929 = vmatprep.subr.bf16.mxu0 0
      %930 = vmatpush1.bf16.msra.mxu0 0
      %931 = vmatprep.subr.bf16.mxu0 0
      %932 = vmatpush1.bf16.msra.mxu0 0
      %933 = vmatprep.mubr.bf16.mxu0 0
      %934 = vmatmul.mubr.bf16.gmra.mrb[0].mxu0 %v887
      %v935 = vpop.f32.mrb[0].mxu0
      %v936 = vadd.f32 %v851, %v935
      %v937 = vpop.f32.mrb[0].mxu0
      %v938 = vpop.f32.mrb[0].mxu0
      %v939 = vadd.f32 %v854, %v938
      %v940 = vpop.f32.mrb[0].mxu0
      %941 = vmatprep.mubr.bf16.mxu0 0
      %942 = vmatmul.mubr.bf16.gmra.mrb[0].mxu0 %v890
      %v943 = vpop.f32.mrb[0].mxu0
      %v944 = vadd.f32 %v859, %v943
      %v945 = vpop.f32.mrb[0].mxu0
      %v946 = vpop.f32.mrb[0].mxu0
      %v947 = vadd.f32 %v862, %v946
      %v948 = vpop.f32.mrb[0].mxu0
      %949 = vmatprep.mubr.bf16.mxu0 0
      %950 = vmatmul.mubr.bf16.gmra.mrb[0].mxu0 %v893
      %v951 = vpop.f32.mrb[0].mxu0
      %v952 = vadd.f32 %v867, %v951
      %v953 = vpop.f32.mrb[0].mxu0
      %v954 = vpop.f32.mrb[0].mxu0
      %v955 = vadd.f32 %v870, %v954
      %v956 = vpop.f32.mrb[0].mxu0
      %957 = vmatprep.mubr.bf16.mxu0 0
      %958 = vmatmul.mubr.bf16.gmra.mrb[0].mxu0 %v896
      %v959 = vpop.f32.mrb[0].mxu0
      %v960 = vadd.f32 %v875, %v959
      %v961 = vpop.f32.mrb[0].mxu0
      %v962 = vpop.f32.mrb[0].mxu0
      %v963 = vadd.f32 %v878, %v962
      %v964 = vpop.f32.mrb[0].mxu0
      %965 = vdwg.mxu0
      %s966 = scalar_lea.vmem [#allocation2], 32
      %v967 = vld [vmem:[%s966] sm:$0xff]
      %v968 = vld [vmem:[%s966 + $0x8] sm:$0x3]
      %v969 = vld [vmem:[%s966 + $0x20] sm:$0xff]
      %v970 = vld [vmem:[%s966 + $0x28] sm:$0x3]
      %v971 = vld [vmem:[%s966 + $0x40] sm:$0xff]
      %v972 = vld [vmem:[%s966 + $0x48] sm:$0x3]
      %v973 = vld [vmem:[%s966 + $0x60] sm:$0xff]
      %v974 = vld [vmem:[%s966 + $0x68] sm:$0x3]
      %v975 = vld [vmem:[%s966 + $0x80] sm:$0xff]
      %v976 = vld [vmem:[%s966 + $0x88] sm:$0x3]
      %v977 = vld [vmem:[%s966 + $0xa0] sm:$0xff]
      %v978 = vld [vmem:[%s966 + $0xa8] sm:$0x3]
      %v979 = vld [vmem:[%s966 + $0xc0] sm:$0xff]
      %v980 = vld [vmem:[%s966 + $0xc8] sm:$0x3]
      %v981 = vld [vmem:[%s966 + $0xe0] sm:$0xff]
      %v982 = vld [vmem:[%s966 + $0xe8] sm:$0x3]
      %991 = vrot.lane.b32.xlu0 %v967, 124
      %v992 = vpop.permute.xlu0 %991
      %993 = vrot.lane.b32.xlu0 %v969, 124
      %v994 = vpop.permute.xlu0 %993
      %995 = vrot.lane.b32.xlu0 %v971, 124
      %v996 = vpop.permute.xlu0 %995
      %997 = vrot.lane.b32.xlu0 %v973, 124
      %v998 = vpop.permute.xlu0 %997
      %999 = vrot.lane.b32.xlu0 %v975, 124
      %v1000 = vpop.permute.xlu0 %999
      %1001 = vrot.lane.b32.xlu0 %v977, 124
      %v1002 = vpop.permute.xlu0 %1001
      %1003 = vrot.lane.b32.xlu0 %v979, 124
      %v1004 = vpop.permute.xlu0 %1003
      %1005 = vrot.lane.b32.xlu0 %v981, 124
      %v1006 = vpop.permute.xlu0 %1005
      %v1023 = vrot.slane %v967, 1
      %v1024 = vrot.slane %v968, 1
      %v1025 = vsel %vm595, %v1023, %v1024
      %v1026 = vrot.slane %v969, 1
      %v1027 = vrot.slane %v970, 1
      %v1028 = vsel %vm595, %v1026, %v1027
      %v1029 = vrot.slane %v971, 1
      %v1030 = vrot.slane %v972, 1
      %v1031 = vsel %vm595, %v1029, %v1030
      %v1032 = vrot.slane %v973, 1
      %v1033 = vrot.slane %v974, 1
      %v1034 = vsel %vm595, %v1032, %v1033
      %v1035 = vrot.slane %v975, 1
      %v1036 = vrot.slane %v976, 1
      %v1037 = vsel %vm595, %v1035, %v1036
      %v1038 = vrot.slane %v977, 1
      %v1039 = vrot.slane %v978, 1
      %v1040 = vsel %vm595, %v1038, %v1039
      %v1041 = vrot.slane %v979, 1
      %v1042 = vrot.slane %v980, 1
      %v1043 = vsel %vm595, %v1041, %v1042
      %v1044 = vrot.slane %v981, 1
      %v1045 = vrot.slane %v982, 1
      %v1046 = vsel %vm595, %v1044, %v1045
      %1047 = vrot.lane.b32.xlu0 %v1025, 4
      %v1048 = vpop.permute.xlu0 %1047
      %1049 = vrot.lane.b32.xlu0 %v1028, 4
      %v1050 = vpop.permute.xlu0 %1049
      %1051 = vrot.lane.b32.xlu0 %v1031, 4
      %v1052 = vpop.permute.xlu0 %1051
      %1053 = vrot.lane.b32.xlu0 %v1034, 4
      %v1054 = vpop.permute.xlu0 %1053
      %1055 = vrot.lane.b32.xlu0 %v1037, 4
      %v1056 = vpop.permute.xlu0 %1055
      %1057 = vrot.lane.b32.xlu0 %v1040, 4
      %v1058 = vpop.permute.xlu0 %1057
      %1059 = vrot.lane.b32.xlu0 %v1043, 4
      %v1060 = vpop.permute.xlu0 %1059
      %1061 = vrot.lane.b32.xlu0 %v1046, 4
      %v1062 = vpop.permute.xlu0 %1061
      %v1071 = vsel %vm644, %v992, %v1048
      %v1072 = vsel %vm644, %v994, %v1050
      %v1073 = vsel %vm644, %v996, %v1052
      %v1074 = vsel %vm644, %v998, %v1054
      %v1075 = vsel %vm644, %v1000, %v1056
      %v1076 = vsel %vm644, %v1002, %v1058
      %v1077 = vsel %vm644, %v1004, %v1060
      %v1078 = vsel %vm644, %v1006, %v1062
      %v1079 = vsel %vm478, %v1071, %v1048
      %v1080 = vsel %vm478, %v1072, %v1050
      %v1081 = vsel %vm478, %v1073, %v1052
      %v1082 = vsel %vm478, %v1074, %v1054
      %v1083 = vsel %vm478, %v1075, %v1056
      %v1084 = vsel %vm478, %v1076, %v1058
      %v1085 = vsel %vm478, %v1077, %v1060
      %v1086 = vsel %vm478, %v1078, %v1062
      %v1087 = vpack.c.bf16 %v1080, %v1079
      %v1088 = vpack.c.bf16 %v1082, %v1081
      %v1089 = vpack.c.bf16 %v1084, %v1083
      %v1090 = vpack.c.bf16 %v1086, %v1085
      %s1091 = scalar_lea.vmem %s3, 16
      %v1092 = vld [vmem:[%s1091] sm:$0xf]
      %v1093 = vld [vmem:[%s1091 + $0x4] sm:$0x3]
      %v1096 = vunpack.c.l.b16 %v1092
      %v1097 = vunpack.c.l.b16 %v1093
      %v1098 = vpack.c.b16 %v1097, %v1096
      %v1100 = vsel %vm799, %v1087, 0
      %v1103 = vsel %vm799, %v1088, 0
      %v1106 = vsel %vm799, %v1089, 0
      %v1109 = vsel %vm799, %v1090, 0
      %v1112 = vsel %vm812, %v1098, 0
      %1114 = vmatprep.subr.bf16.mxu0 0
      %1115 = vmatpush1.bf16.msra.mxu0 %v1112
      %1116 = vmatprep.subr.bf16.mxu0 0
      %1117 = vmatpush1.bf16.msra.mxu0 0
      %1118 = vmatprep.subr.bf16.mxu0 0
      %1119 = vmatpush1.bf16.msra.mxu0 0
      %1120 = vmatprep.subr.bf16.mxu0 0
      %1121 = vmatpush1.bf16.msra.mxu0 0
      %1122 = vmatprep.subr.bf16.mxu0 0
      %1123 = vmatpush1.bf16.msra.mxu0 0
      %1124 = vmatprep.subr.bf16.mxu0 0
      %1125 = vmatpush1.bf16.msra.mxu0 0
      %1126 = vmatprep.subr.bf16.mxu0 0
      %1127 = vmatpush1.bf16.msra.mxu0 0
      %1128 = vmatprep.subr.bf16.mxu0 0
      %1129 = vmatpush1.bf16.msra.mxu0 0
      %1130 = vmatprep.subr.bf16.mxu0 0
      %1131 = vmatpush1.bf16.msra.mxu0 0
      %1132 = vmatprep.subr.bf16.mxu0 0
      %1133 = vmatpush1.bf16.msra.mxu0 0
      %1134 = vmatprep.subr.bf16.mxu0 0
      %1135 = vmatpush1.bf16.msra.mxu0 0
      %1136 = vmatprep.subr.bf16.mxu0 0
      %1137 = vmatpush1.bf16.msra.mxu0 0
      %1138 = vmatprep.subr.bf16.mxu0 0
      %1139 = vmatpush1.bf16.msra.mxu0 0
      %1140 = vmatprep.subr.bf16.mxu0 0
      %1141 = vmatpush1.bf16.msra.mxu0 0
      %1142 = vmatprep.subr.bf16.mxu0 0
      %1143 = vmatpush1.bf16.msra.mxu0 0
      %1144 = vmatprep.subr.bf16.mxu0 0
      %1145 = vmatpush1.bf16.msra.mxu0 0
      %1146 = vmatprep.mubr.bf16.mxu0 0
      %1147 = vmatmul.mubr.bf16.gmra.mrb[0].mxu0 %v1100
      %v1148 = vpop.f32.mrb[0].mxu0
      %v1149 = vadd.f32 0.0, %v1148
      %v1150 = vpop.f32.mrb[0].mxu0
      %v1151 = vpop.f32.mrb[0].mxu0
      %v1152 = vadd.f32 0.0, %v1151
      %v1153 = vpop.f32.mrb[0].mxu0
      %1154 = vmatprep.mubr.bf16.mxu0 0
      %1155 = vmatmul.mubr.bf16.gmra.mrb[0].mxu0 %v1103
      %v1156 = vpop.f32.mrb[0].mxu0
      %v1157 = vadd.f32 0.0, %v1156
      %v1158 = vpop.f32.mrb[0].mxu0
      %v1159 = vpop.f32.mrb[0].mxu0
      %v1160 = vadd.f32 0.0, %v1159
      %v1161 = vpop.f32.mrb[0].mxu0
      %1162 = vmatprep.mubr.bf16.mxu0 0
      %1163 = vmatmul.mubr.bf16.gmra.mrb[0].mxu0 %v1106
      %v1164 = vpop.f32.mrb[0].mxu0
      %v1165 = vadd.f32 0.0, %v1164
      %v1166 = vpop.f32.mrb[0].mxu0
      %v1167 = vpop.f32.mrb[0].mxu0
      %v1168 = vadd.f32 0.0, %v1167
      %v1169 = vpop.f32.mrb[0].mxu0
      %1170 = vmatprep.mubr.bf16.mxu0 0
      %1171 = vmatmul.mubr.bf16.gmra.mrb[0].mxu0 %v1109
      %v1172 = vpop.f32.mrb[0].mxu0
      %v1173 = vadd.f32 0.0, %v1172
      %v1174 = vpop.f32.mrb[0].mxu0
      %v1175 = vpop.f32.mrb[0].mxu0
      %v1176 = vadd.f32 0.0, %v1175
      %v1177 = vpop.f32.mrb[0].mxu0
      %1178 = vdwg.mxu0
      %v1179 = vadd.f32 %v936, %v1149
      %v1180 = vadd.f32 %v939, %v1152
      %v1181 = vadd.f32 %v944, %v1157
      %v1182 = vadd.f32 %v947, %v1160
      %v1183 = vadd.f32 %v952, %v1165
      %v1184 = vadd.f32 %v955, %v1168
      %v1185 = vadd.f32 %v960, %v1173
      %v1186 = vadd.f32 %v963, %v1176
      %v1187 = vld [vmem:[%s4] sm:$0x1]
      %v1189 = vlaneseq
      %v1190 = vshrl.u32 %v1189, 7
      %v1191 = vsub.s32 0, %v1190
      %v1192 = vrot.slane %v1187, %v1191
      %v1194 = vadd.f32 %v1179, %v1192
      %v1195 = vadd.f32 %v1180, %v1192
      %v1196 = vadd.f32 %v1181, %v1192
      %v1197 = vadd.f32 %v1182, %v1192
      %v1198 = vadd.f32 %v1183, %v1192
      %v1199 = vadd.f32 %v1184, %v1192
      %v1200 = vadd.f32 %v1185, %v1192
      %v1201 = vadd.f32 %v1186, %v1192
      %v1202 = vsel %vm478, %v1194, 0.0
      %v1203 = vsel %vm478, %v1195, 0.0
      %v1204 = vadd.f32 %v1202, %v1203
      %v1205 = vsel %vm478, %v1196, 0.0
      %v1206 = vadd.f32 %v1204, %v1205
      %v1207 = vsel %vm478, %v1197, 0.0
      %v1208 = vadd.f32 %v1206, %v1207
      %v1209 = vsel %vm478, %v1198, 0.0
      %v1210 = vadd.f32 %v1208, %v1209
      %v1211 = vsel %vm478, %v1199, 0.0
      %v1212 = vadd.f32 %v1210, %v1211
      %v1213 = vsel %vm478, %v1200, 0.0
      %v1214 = vadd.f32 %v1212, %v1213
      %v1215 = vsel %vm478, %v1201, 0.0
      %v1216 = vadd.f32 %v1214, %v1215
      %v1217 = vrot.slane %v1216, 4
      %v1218 = vadd.f32 %v1216, %v1217
      %v1219 = vrot.slane %v1218, 2
      %v1220 = vadd.f32 %v1218, %v1219
      %v1221 = vrot.slane %v1220, 1
      %v1222 = vadd.f32 %v1220, %v1221
      %v1223 = vmul.f32 %v1194, %v1194
      %v1224 = vmul.f32 %v1195, %v1195
      %v1225 = vmul.f32 %v1196, %v1196
      %v1226 = vmul.f32 %v1197, %v1197
      %v1227 = vmul.f32 %v1198, %v1198
      %v1228 = vmul.f32 %v1199, %v1199
      %v1229 = vmul.f32 %v1200, %v1200
      %v1230 = vmul.f32 %v1201, %v1201
      %v1231 = vsel %vm478, %v1223, 0.0
      %v1232 = vsel %vm478, %v1224, 0.0
      %v1233 = vadd.f32 %v1231, %v1232
      %v1234 = vsel %vm478, %v1225, 0.0
      %v1235 = vadd.f32 %v1233, %v1234
      %v1236 = vsel %vm478, %v1226, 0.0
      %v1237 = vadd.f32 %v1235, %v1236
      %v1238 = vsel %vm478, %v1227, 0.0
      %v1239 = vadd.f32 %v1237, %v1238
      %v1240 = vsel %vm478, %v1228, 0.0
      %v1241 = vadd.f32 %v1239, %v1240
      %v1242 = vsel %vm478, %v1229, 0.0
      %v1243 = vadd.f32 %v1241, %v1242
      %v1244 = vsel %vm478, %v1230, 0.0
      %v1245 = vadd.f32 %v1243, %v1244
      %v1246 = vrot.slane %v1245, 4
      %v1247 = vadd.f32 %v1245, %v1246
      %v1248 = vrot.slane %v1247, 2
      %v1249 = vadd.f32 %v1247, %v1248
      %v1250 = vrot.slane %v1249, 1
      %v1251 = vadd.f32 %v1249, %v1250
      %1252 = vst.msk [vmem:[%s382] sm:$0x1] %vm485, %v1222
      %1253 = vst.msk [vmem:[%s382 + $0x1] sm:$0x1] %vm485, %v1251
      %v1254 = vpack.c.bf16 %v1194, %v1194
      %v1255 = vpack.c.bf16 %v1195, %v1195
      %v1256 = vpack.c.bf16 %v1196, %v1196
      %v1257 = vpack.c.bf16 %v1197, %v1197
      %v1258 = vpack.c.bf16 %v1198, %v1198
      %v1259 = vpack.c.bf16 %v1199, %v1199
      %v1260 = vpack.c.bf16 %v1200, %v1200
      %v1261 = vpack.c.bf16 %v1201, %v1201
      %vm1262 = vcmask 60416
      %1263 = vst.msk [vmem:[%s373] sm:$0xf] %vm1262, %v1254
      %1264 = vst.msk [vmem:[%s373 + $0x4] sm:$0xf] %vm1262, %v1255
      %1265 = vst.msk [vmem:[%s373 + $0x8] sm:$0xf] %vm1262, %v1256
      %1266 = vst.msk [vmem:[%s373 + $0xc] sm:$0xf] %vm1262, %v1257
      %1267 = vst.msk [vmem:[%s373 + $0x10] sm:$0xf] %vm1262, %v1258
      %1268 = vst.msk [vmem:[%s373 + $0x14] sm:$0xf] %vm1262, %v1259
      %1269 = vst.msk [vmem:[%s373 + $0x18] sm:$0xf] %vm1262, %v1260
      %1270 = vst.msk [vmem:[%s373 + $0x1c] sm:$0xf] %vm1262, %v1261
      %v1271 = vld [vmem:[%s5] sm:$0x1]
      %v1273 = vlaneseq
      %v1274 = vshrl.u32 %v1273, 7
      %v1275 = vsub.s32 0, %v1274
      %v1276 = vrot.slane %v1271, %v1275
      %v1278 = vmul.f32 %v400, %v1276
      %v1279 = vmul.f32 %v402, %v1276
      %v1280 = vmul.f32 %v404, %v1276
      %v1281 = vmul.f32 %v406, %v1276
      %v1282 = vmul.f32 %v408, %v1276
      %v1283 = vmul.f32 %v410, %v1276
      %v1284 = vmul.f32 %v412, %v1276
      %v1285 = vmul.f32 %v414, %v1276
      %v1286 = vld [vmem:[%s6] sm:$0x1]
      %v1288 = vlaneseq
      %v1289 = vshrl.u32 %v1288, 7
      %v1290 = vsub.s32 0, %v1289
      %v1291 = vrot.slane %v1286, %v1290
      %v1293 = vadd.f32 %v1278, %v1291
      %v1294 = vadd.f32 %v1279, %v1291
      %v1295 = vadd.f32 %v1280, %v1291
      %v1296 = vadd.f32 %v1281, %v1291
      %v1297 = vadd.f32 %v1282, %v1291
      %v1298 = vadd.f32 %v1283, %v1291
      %v1299 = vadd.f32 %v1284, %v1291
      %v1300 = vadd.f32 %v1285, %v1291
      %v1301 = vpack.c.bf16 %v1294, %v1293
      %v1302 = vpack.c.bf16 %v1296, %v1295
      %v1303 = vpack.c.bf16 %v1298, %v1297
      %v1304 = vpack.c.bf16 %v1300, %v1299
      %v1305 = vld [vmem:[%s7] sm:$0x3]
      %v1307 = vsel %vm644, %v1301, 0
      %v1310 = vsel %vm644, %v1302, 0
      %v1313 = vsel %vm644, %v1303, 0
      %v1316 = vsel %vm644, %v1304, 0
      %vm1318 = vcmask 1041408
      %v1320 = vsel %vm1318, %v1305, 0
      %1322 = vmatprep.subr.bf16.mxu0 0
      %1323 = vmatpush1.bf16.msra.mxu0 %v1320
      %1324 = vmatprep.subr.bf16.mxu0 0
      %1325 = vmatpush1.bf16.msra.mxu0 0
      %1326 = vmatprep.subr.bf16.mxu0 0
      %1327 = vmatpush1.bf16.msra.mxu0 0
      %1328 = vmatprep.subr.bf16.mxu0 0
      %1329 = vmatpush1.bf16.msra.mxu0 0
      %1330 = vmatprep.subr.bf16.mxu0 0
      %1331 = vmatpush1.bf16.msra.mxu0 0
      %1332 = vmatprep.subr.bf16.mxu0 0
      %1333 = vmatpush1.bf16.msra.mxu0 0
      %1334 = vmatprep.subr.bf16.mxu0 0
      %1335 = vmatpush1.bf16.msra.mxu0 0
      %1336 = vmatprep.subr.bf16.mxu0 0
      %1337 = vmatpush1.bf16.msra.mxu0 0
      %1338 = vmatprep.subr.bf16.mxu0 0
      %1339 = vmatpush1.bf16.msra.mxu0 0
      %1340 = vmatprep.subr.bf16.mxu0 0
      %1341 = vmatpush1.bf16.msra.mxu0 0
      %1342 = vmatprep.subr.bf16.mxu0 0
      %1343 = vmatpush1.bf16.msra.mxu0 0
      %1344 = vmatprep.subr.bf16.mxu0 0
      %1345 = vmatpush1.bf16.msra.mxu0 0
      %1346 = vmatprep.subr.bf16.mxu0 0
      %1347 = vmatpush1.bf16.msra.mxu0 0
      %1348 = vmatprep.subr.bf16.mxu0 0
      %1349 = vmatpush1.bf16.msra.mxu0 0
      %1350 = vmatprep.subr.bf16.mxu0 0
      %1351 = vmatpush1.bf16.msra.mxu0 0
      %1352 = vmatprep.subr.bf16.mxu0 0
      %1353 = vmatpush1.bf16.msra.mxu0 0
      %1354 = vmatprep.mubr.bf16.mxu0 0
      %1355 = vmatmul.mubr.bf16.gmra.mrb[0].mxu0 %v1307
      %v1356 = vpop.f32.mrb[0].mxu0
      %v1357 = vadd.f32 0.0, %v1356
      %v1358 = vpop.f32.mrb[0].mxu0
      %v1359 = vpop.f32.mrb[0].mxu0
      %v1360 = vadd.f32 0.0, %v1359
      %v1361 = vpop.f32.mrb[0].mxu0
      %1362 = vmatprep.mubr.bf16.mxu0 0
      %1363 = vmatmul.mubr.bf16.gmra.mrb[0].mxu0 %v1310
      %v1364 = vpop.f32.mrb[0].mxu0
      %v1365 = vadd.f32 0.0, %v1364
      %v1366 = vpop.f32.mrb[0].mxu0
      %v1367 = vpop.f32.mrb[0].mxu0
      %v1368 = vadd.f32 0.0, %v1367
      %v1369 = vpop.f32.mrb[0].mxu0
      %1370 = vmatprep.mubr.bf16.mxu0 0
      %1371 = vmatmul.mubr.bf16.gmra.mrb[0].mxu0 %v1313
      %v1372 = vpop.f32.mrb[0].mxu0
      %v1373 = vadd.f32 0.0, %v1372
      %v1374 = vpop.f32.mrb[0].mxu0
      %v1375 = vpop.f32.mrb[0].mxu0
      %v1376 = vadd.f32 0.0, %v1375
      %v1377 = vpop.f32.mrb[0].mxu0
      %1378 = vmatprep.mubr.bf16.mxu0 0
      %1379 = vmatmul.mubr.bf16.gmra.mrb[0].mxu0 %v1316
      %v1380 = vpop.f32.mrb[0].mxu0
      %v1381 = vadd.f32 0.0, %v1380
      %v1382 = vpop.f32.mrb[0].mxu0
      %v1383 = vpop.f32.mrb[0].mxu0
      %v1384 = vadd.f32 0.0, %v1383
      %v1385 = vpop.f32.mrb[0].mxu0
      %1386 = vdwg.mxu0
      %v1387 = vpack.c.bf16 %v1357, %v1357
      %v1388 = vpack.c.bf16 %v1360, %v1360
      %v1389 = vpack.c.bf16 %v1365, %v1365
      %v1390 = vpack.c.bf16 %v1368, %v1368
      %v1391 = vpack.c.bf16 %v1373, %v1373
      %v1392 = vpack.c.bf16 %v1376, %v1376
      %v1393 = vpack.c.bf16 %v1381, %v1381
      %v1394 = vpack.c.bf16 %v1384, %v1384
      %1395 = vst.msk [vmem:[%s378] sm:$0xf] %vm1262, %v1387
      %1396 = vst.msk [vmem:[%s378 + $0x4] sm:$0xf] %vm1262, %v1388
      %1397 = vst.msk [vmem:[%s378 + $0x8] sm:$0xf] %vm1262, %v1389
      %1398 = vst.msk [vmem:[%s378 + $0xc] sm:$0xf] %vm1262, %v1390
      %1399 = vst.msk [vmem:[%s378 + $0x10] sm:$0xf] %vm1262, %v1391
      %1400 = vst.msk [vmem:[%s378 + $0x14] sm:$0xf] %vm1262, %v1392
      %1401 = vst.msk [vmem:[%s378 + $0x18] sm:$0xf] %vm1262, %v1393
      %1402 = vst.msk [vmem:[%s378 + $0x1c] sm:$0xf] %vm1262, %v1394
      %p1403 = scmp.lt.s32.totalorder %s22, 1
      %s1404 = scalar_select %p1403, %s22, 1
      %s1405 = smul.addr %s1404, 8
      %s1406 = smul.addr %s1405, 4
      %s1407 = scalar_lea.vmem %s8, %s1406
      %p1408 = scmp.lt.s32.totalorder %s22, 1
      %s1409 = scalar_select %p1408, %s22, 1
      %s1410 = smul.addr %s1409, 8
      %s1411 = smul.addr %s1410, 4
      %s1412 = scalar_lea.vmem %s9, %s1411
      %p1413 = scmp.lt.s32.totalorder %s22, 1
      %s1414 = scalar_select %p1413, %s22, 1
      %s1415 = smul.addr %s1414, 2
      %s1416 = scalar_lea.vmem %s10, %s1415
      // Predicated region
      $region53: #{res_block_forward.2} parent=51 // pred_check
        %p1417 = pneg %p213
      $region54: #{res_block_forward.2} parent=51 // pred_check_branch
        %1419 = sbr.rel (%p1417) target = $region56
      $region55: #{res_block_forward.2} parent=51 // pred_region
        _
      $region56: #{res_block_forward.2} parent=51 // pred_fallthru
        _
      // Predicated region
      $region57: #{res_block_forward.2} parent=51 // pred_check
        %p1420 = pneg %p239
      $region58: #{res_block_forward.2} parent=51 // pred_check_branch
        %1422 = sbr.rel (%p1420) target = $region60
      $region59: #{res_block_forward.2} parent=51 // pred_region
        _
      $region60: #{res_block_forward.2} parent=51 // pred_fallthru
        _
      // Predicated region
      $region61: #{res_block_forward.2} parent=51 // pred_check
        %p1423 = pneg %p265
      $region62: #{res_block_forward.2} parent=51 // pred_check_branch
        %1425 = sbr.rel (%p1423) target = $region64
      $region63: #{res_block_forward.2} parent=51 // pred_region
        _
      $region64: #{res_block_forward.2} parent=51 // pred_fallthru
        _
    $region52: #{res_block_forward.2} parent=5 // pred_fallthru
      _
    %p1426 = scmp.le.s32.totalorder 2, %s17
    // Predicated region
    $region65: #{res_block_forward.2} parent=5 // pred_check
      %p1427 = pneg %p1426
    $region66: #{res_block_forward.2} parent=5 // pred_check_branch
      %1429 = sbr.rel (%p1427) target = $region68
    $region67: #{res_block_forward.2} parent=5 // pred_region
      %s1430 = ssub.s32 %s17, 2
      // Predicated region
      $region69: #{res_block_forward.2} parent=67 // pred_check
        %p1431 = pneg %p219
      $region70: #{res_block_forward.2} parent=67 // pred_check_branch
        %1433 = sbr.rel (%p1431) target = $region72
      $region71: #{res_block_forward.2} parent=67 // pred_region
        %p1434 = scmp.lt.s32.totalorder %s23, 1
        %s1435 = scalar_select %p1434, %s23, 1
        %s1436 = smul.addr %s1435, 8
        %s1437 = smul.addr %s1436, 4
        %s1438 = scalar_lea.vmem %s8, %s1437
      $region72: #{res_block_forward.2} parent=67 // pred_fallthru
        _
      // Predicated region
      $region73: #{res_block_forward.2} parent=67 // pred_check
        %p1439 = pneg %p245
      $region74: #{res_block_forward.2} parent=67 // pred_check_branch
        %1441 = sbr.rel (%p1439) target = $region76
      $region75: #{res_block_forward.2} parent=67 // pred_region
        %p1442 = scmp.lt.s32.totalorder %s23, 1
        %s1443 = scalar_select %p1442, %s23, 1
        %s1444 = smul.addr %s1443, 8
        %s1445 = smul.addr %s1444, 4
        %s1446 = scalar_lea.vmem %s9, %s1445
      $region76: #{res_block_forward.2} parent=67 // pred_fallthru
        _
      // Predicated region
      $region77: #{res_block_forward.2} parent=67 // pred_check
        %p1447 = pneg %p271
      $region78: #{res_block_forward.2} parent=67 // pred_check_branch
        %1449 = sbr.rel (%p1447) target = $region80
      $region79: #{res_block_forward.2} parent=67 // pred_region
        %p1450 = scmp.lt.s32.totalorder %s23, 1
        %s1451 = scalar_select %p1450, %s23, 1
        %s1452 = smul.addr %s1451, 2
        %s1453 = scalar_lea.vmem %s10, %s1452
      $region80: #{res_block_forward.2} parent=67 // pred_fallthru
        _
    $region68: #{res_block_forward.2} parent=5 // pred_fallthru
      _
  $region6: #{res_block_forward.2} parent=0 // loop_footer
    %s21 = sadd.s32 1, %s17
  $region7: #{res_block_forward.2} parent=0 // loop_footer_branch
    %16 = sbr.rel target = $region3
  $region8: #{res_block_forward.2} parent=0 // loop_exit
    _

// kernel: res_block_forward.3
$region0: #{res_block_forward.3}
  #allocation0 [shape = 'u32[]', space=smem, size = 0x4, offset = 0x4, fixed_abs, tag = 'smem constant byte address 0x4 - core index']
  #allocation1 [shape = 'u32[144,128]{1,0:T(1,128)}', space=vmem, size = 0x12000, scoped, tag = 'internal scratch']
  #allocation2 [shape = 'f32[10,10,8]{2,1,0:T(8,128)}', space=vmem, size = 0x14000, scoped, tag = 'scratch operand']
  %s0 = inlined_call_operand.vmem [shape: bf16[2,8,8,8], index: 0, kind: input, shape index: {}]
  %s1 = inlined_call_operand.vmem [shape: f32[1,1,8], index: 1, kind: input, shape index: {}]
  %s2 = inlined_call_operand.vmem [shape: f32[1,1,8], index: 2, kind: input, shape index: {}]
  %s3 = inlined_call_operand.vmem [shape: bf16[3,24,8], index: 3, kind: input, shape index: {}]
  %s4 = inlined_call_operand.vmem [shape: f32[1,8], index: 4, kind: input, shape index: {}]
  %s5 = inlined_call_operand.vmem [shape: bf16[2,8,8,8], index: 5, kind: input, shape index: {}]
  %s6 = inlined_call_operand.vmem [shape: f32[2,8,8,8], index: 6, kind: output, shape index: {}]
  %s7 = sld [smem:[#allocation0]]
  $region57: #{res_block_forward.3} parent=0
    _
  %s9 = ssub.s32 1, %s7
  %s10 = scalar_select 0, %s9, %s7
  loop: start=0, step=1, limit=4
  $region2: #{res_block_forward.3} parent=0 // loop_pre_header
    _
  $region3: #{res_block_forward.3} parent=0 // loop_header
    %s12 = sphi 0, %s16
    %p13 = scmp.ge.s32.totalorder %s12, 4
    %s22 = sphi 0, %s24
    %s25 = sphi 0, %s22
    %s26 = sphi 0, %s25
    %s42 = sphi 0, %s26
    %s46 = sphi 0, %s46
    %s48 = sphi 0, %s46
    %s49 = sphi 0, %s48
    %s63 = sphi 0, %s49
    %s67 = sphi 0, %s67
    %s69 = sphi 0, %s67
    %s70 = sphi 0, %s69
    %s84 = sphi 0, %s70
    %s88 = sphi 0, %s88
    %s90 = sphi 0, %s88
    %s91 = sphi 0, %s90
    %s105 = sphi 0, %s91
    %s109 = sphi 0, %s109
    %s111 = sphi 0, %s109
    %s112 = sphi 0, %s111
    %s126 = sphi 0, %s112
    %s132 = sphi 0, %s134
    %s135 = sphi 0, %s132
    %s136 = sphi 0, %s135
    %s152 = sphi 0, %s136
    %s158 = sphi 0, %s160
    %s161 = sphi 0, %s158
    %s162 = sphi 0, %s161
    %s178 = sphi 0, %s162
  $region4: #{res_block_forward.3} parent=0 // loop_header_branch
    %15 = sbr.rel (%p13) target = $region8
  $region5: #{res_block_forward.3} parent=0 // loop_body
    %s17 = ssub.s32 %s12, 1
    %s18 = ssub.s32 %s12, 2
    %s19 = sadd.s32 %s12, 1
    %s20 = ssub.s32 %s12, %s19
    %p21 = scmp.eq.s32.totalorder %s20, 0
    %s23 = sadd.s32 %s22, 1
    %s24 = scalar_select %p21, %s22, %s23
    %p27 = pneg %p21
    %p28 = scmp.eq.s32.totalorder %s12, 1
    %p29 = por %p27, %p28
    %p30 = scmp.ne.s32.totalorder %s22, %s25
    %p31 = scmp.eq.s32.totalorder %s12, 0
    %p32 = por %p30, %p31
    %p33 = scmp.ne.s32.totalorder %s22, %s25
    %p34 = scmp.eq.s32.totalorder %s17, 1
    %p35 = por %p33, %p34
    %p36 = scmp.ne.s32.totalorder %s25, %s26
    %p37 = scmp.eq.s32.totalorder %s17, 0
    %p38 = por %p36, %p37
    %p39 = scmp.ne.s32.totalorder %s25, %s26
    %p40 = scmp.eq.s32.totalorder %s18, 1
    %p41 = por %p39, %p40
    %p43 = scmp.ne.s32.totalorder %s26, %s42
    %p44 = scmp.eq.s32.totalorder %s18, 0
    %p45 = por %p43, %p44
    %s47 = sadd.s32 %s46, 1
    %p50 = scmp.eq.s32.totalorder %s12, 1
    %p51 = scmp.ne.s32.totalorder %s46, %s48
    %p52 = scmp.eq.s32.totalorder %s12, 0
    %p53 = por %p51, %p52
    %p54 = scmp.ne.s32.totalorder %s46, %s48
    %p55 = scmp.eq.s32.totalorder %s17, 1
    %p56 = por %p54, %p55
    %p57 = scmp.ne.s32.totalorder %s48, %s49
    %p58 = scmp.eq.s32.totalorder %s17, 0
    %p59 = por %p57, %p58
    %p60 = scmp.ne.s32.totalorder %s48, %s49
    %p61 = scmp.eq.s32.totalorder %s18, 1
    %p62 = por %p60, %p61
    %p64 = scmp.ne.s32.totalorder %s49, %s63
    %p65 = scmp.eq.s32.totalorder %s18, 0
    %p66 = por %p64, %p65
    %s68 = sadd.s32 %s67, 1
    %p71 = scmp.eq.s32.totalorder %s12, 1
    %p72 = scmp.ne.s32.totalorder %s67, %s69
    %p73 = scmp.eq.s32.totalorder %s12, 0
    %p74 = por %p72, %p73
    %p75 = scmp.ne.s32.totalorder %s67, %s69
    %p76 = scmp.eq.s32.totalorder %s17, 1
    %p77 = por %p75, %p76
    %p78 = scmp.ne.s32.totalorder %s69, %s70
    %p79 = scmp.eq.s32.totalorder %s17, 0
    %p80 = por %p78, %p79
    %p81 = scmp.ne.s32.totalorder %s69, %s70
    %p82 = scmp.eq.s32.totalorder %s18, 1
    %p83 = por %p81, %p82
    %p85 = scmp.ne.s32.totalorder %s70, %s84
    %p86 = scmp.eq.s32.totalorder %s18, 0
    %p87 = por %p85, %p86
    %s89 = sadd.s32 %s88, 1
    %p92 = scmp.eq.s32.totalorder %s12, 1
    %p93 = scmp.ne.s32.totalorder %s88, %s90
    %p94 = scmp.eq.s32.totalorder %s12, 0
    %p95 = por %p93, %p94
    %p96 = scmp.ne.s32.totalorder %s88, %s90
    %p97 = scmp.eq.s32.totalorder %s17, 1
    %p98 = por %p96, %p97
    %p99 = scmp.ne.s32.totalorder %s90, %s91
    %p100 = scmp.eq.s32.totalorder %s17, 0
    %p101 = por %p99, %p100
    %p102 = scmp.ne.s32.totalorder %s90, %s91
    %p103 = scmp.eq.s32.totalorder %s18, 1
    %p104 = por %p102, %p103
    %p106 = scmp.ne.s32.totalorder %s91, %s105
    %p107 = scmp.eq.s32.totalorder %s18, 0
    %p108 = por %p106, %p107
    %s110 = sadd.s32 %s109, 1
    %p113 = scmp.eq.s32.totalorder %s12, 1
    %p114 = scmp.ne.s32.totalorder %s109, %s111
    %p115 = scmp.eq.s32.totalorder %s12, 0
    %p116 = por %p114, %p115
    %p117 = scmp.ne.s32.totalorder %s109, %s111
    %p118 = scmp.eq.s32.totalorder %s17, 1
    %p119 = por %p117, %p118
    %p120 = scmp.ne.s32.totalorder %s111, %s112
    %p121 = scmp.eq.s32.totalorder %s17, 0
    %p122 = por %p120, %p121
    %p123 = scmp.ne.s32.totalorder %s111, %s112
    %p124 = scmp.eq.s32.totalorder %s18, 1
    %p125 = por %p123, %p124
    %p127 = scmp.ne.s32.totalorder %s112, %s126
    %p128 = scmp.eq.s32.totalorder %s18, 0
    %p129 = por %p127, %p128
    %s130 = ssub.s32 %s12, %s19
    %p131 = scmp.eq.s32.totalorder %s130, 0
    %s133 = sadd.s32 %s132, 1
    %s134 = scalar_select %p131, %s132, %s133
    %p137 = pneg %p131
    %p138 = scmp.eq.s32.totalorder %s12, 1
    %p139 = por %p137, %p138
    %p140 = scmp.ne.s32.totalorder %s132, %s135
    %p141 = scmp.eq.s32.totalorder %s12, 0
    %p142 = por %p140, %p141
    %p143 = scmp.ne.s32.totalorder %s132, %s135
    %p144 = scmp.eq.s32.totalorder %s17, 1
    %p145 = por %p143, %p144
    %p146 = scmp.ne.s32.totalorder %s135, %s136
    %p147 = scmp.eq.s32.totalorder %s17, 0
    %p148 = por %p146, %p147
    %p149 = scmp.ne.s32.totalorder %s135, %s136
    %p150 = scmp.eq.s32.totalorder %s18, 1
    %p151 = por %p149, %p150
    %p153 = scmp.ne.s32.totalorder %s136, %s152
    %p154 = scmp.eq.s32.totalorder %s18, 0
    %p155 = por %p153, %p154
    %s156 = ssub.s32 %s12, %s19
    %p157 = scmp.eq.s32.totalorder %s156, 0
    %s159 = sadd.s32 %s158, 1
    %s160 = scalar_select %p157, %s158, %s159
    %p163 = pneg %p157
    %p164 = scmp.eq.s32.totalorder %s12, 1
    %p165 = por %p163, %p164
    %p166 = scmp.ne.s32.totalorder %s158, %s161
    %p167 = scmp.eq.s32.totalorder %s12, 0
    %p168 = por %p166, %p167
    %p169 = scmp.ne.s32.totalorder %s158, %s161
    %p170 = scmp.eq.s32.totalorder %s17, 1
    %p171 = por %p169, %p170
    %p172 = scmp.ne.s32.totalorder %s161, %s162
    %p173 = scmp.eq.s32.totalorder %s17, 0
    %p174 = por %p172, %p173
    %p175 = scmp.ne.s32.totalorder %s161, %s162
    %p176 = scmp.eq.s32.totalorder %s18, 1
    %p177 = por %p175, %p176
    %p179 = scmp.ne.s32.totalorder %s162, %s178
    %p180 = scmp.eq.s32.totalorder %s18, 0
    %p181 = por %p179, %p180
    %p182 = scmp.le.s32.totalorder 1, %s12
    %p183 = scmp.lt.s32.totalorder %s12, 3
    %p184 = pnand %p182, %p183
    %p185 = pneg %p184
    // Predicated region
    $region9: #{res_block_forward.3} parent=5 // pred_check
      _
    $region10: #{res_block_forward.3} parent=5 // pred_check_branch
      %187 = sbr.rel (%p184) target = $region12
    $region11: #{res_block_forward.3} parent=5 // pred_region
      %s188 = ssub.s32 %s12, 1
      // Predicated region
      $region13: #{res_block_forward.3} parent=11 // pred_check
        %p189 = pneg %p59
      $region14: #{res_block_forward.3} parent=11 // pred_check_branch
        %191 = sbr.rel (%p189) target = $region16
      $region15: #{res_block_forward.3} parent=11 // pred_region
        _
      $region16: #{res_block_forward.3} parent=11 // pred_fallthru
        _
      // Predicated region
      $region17: #{res_block_forward.3} parent=11 // pred_check
        %p192 = pneg %p80
      $region18: #{res_block_forward.3} parent=11 // pred_check_branch
        %194 = sbr.rel (%p192) target = $region20
      $region19: #{res_block_forward.3} parent=11 // pred_region
        _
      $region20: #{res_block_forward.3} parent=11 // pred_fallthru
        _
      // Predicated region
      $region21: #{res_block_forward.3} parent=11 // pred_check
        %p195 = pneg %p101
      $region22: #{res_block_forward.3} parent=11 // pred_check_branch
        %197 = sbr.rel (%p195) target = $region24
      $region23: #{res_block_forward.3} parent=11 // pred_region
        _
      $region24: #{res_block_forward.3} parent=11 // pred_fallthru
        _
      // Predicated region
      $region25: #{res_block_forward.3} parent=11 // pred_check
        %p198 = pneg %p122
      $region26: #{res_block_forward.3} parent=11 // pred_check_branch
        %200 = sbr.rel (%p198) target = $region28
      $region27: #{res_block_forward.3} parent=11 // pred_region
        _
      $region28: #{res_block_forward.3} parent=11 // pred_fallthru
        _
    $region12: #{res_block_forward.3} parent=5 // pred_fallthru
      _
    %p201 = scmp.lt.s32.totalorder %s12, 2
    // Predicated region
    $region29: #{res_block_forward.3} parent=5 // pred_check
      %p202 = pneg %p201
    $region30: #{res_block_forward.3} parent=5 // pred_check_branch
      %204 = sbr.rel (%p202) target = $region32
    $region31: #{res_block_forward.3} parent=5 // pred_region
      // Predicated region
      $region33: #{res_block_forward.3} parent=31 // pred_check
        %p205 = pneg %p32
      $region34: #{res_block_forward.3} parent=31 // pred_check_branch
        %207 = sbr.rel (%p205) target = $region36
      $region35: #{res_block_forward.3} parent=31 // pred_region
        %p208 = scmp.lt.s32.totalorder %s12, 1
        %s209 = scalar_select %p208, %s12, 1
        %s210 = smul.addr %s209, 8
        %s211 = smul.addr %s210, 4
        %s212 = scalar_lea.vmem %s0, %s211
      $region36: #{res_block_forward.3} parent=31 // pred_fallthru
        _
      // Predicated region
      $region37: #{res_block_forward.3} parent=31 // pred_check
        %p213 = pneg %p142
      $region38: #{res_block_forward.3} parent=31 // pred_check_branch
        %215 = sbr.rel (%p213) target = $region40
      $region39: #{res_block_forward.3} parent=31 // pred_region
        %p216 = scmp.lt.s32.totalorder %s12, 1
        %s217 = scalar_select %p216, %s12, 1
        %s218 = smul.addr %s217, 8
        %s219 = smul.addr %s218, 4
        %s220 = scalar_lea.vmem %s5, %s219
      $region40: #{res_block_forward.3} parent=31 // pred_fallthru
        _
    $region32: #{res_block_forward.3} parent=5 // pred_fallthru
      _
    %p221 = scmp.le.s32.totalorder 1, %s12
    %p222 = scmp.lt.s32.totalorder %s12, 3
    %p223 = pnand %p221, %p222
    %p224 = pneg %p223
    // Predicated region
    $region41: #{res_block_forward.3} parent=5 // pred_check
      _
    $region42: #{res_block_forward.3} parent=5 // pred_check_branch
      %226 = sbr.rel (%p223) target = $region44
    $region43: #{res_block_forward.3} parent=5 // pred_region
      %s227 = ssub.s32 %s12, 1
      %p228 = scmp.lt.s32.totalorder %s17, 1
      %s229 = scalar_select %p228, %s17, 1
      %s230 = smul.addr %s229, 8
      %s231 = smul.addr %s230, 4
      %s232 = scalar_lea.vmem %s0, %s231
      %p233 = pneg %p38
      %p234 = pneg %p35
      %p235 = pneg %p59
      %p236 = pneg %p56
      %p237 = pneg %p80
      %p238 = pneg %p77
      %p239 = pneg %p101
      %p240 = pneg %p98
      %p241 = pneg %p122
      %p242 = pneg %p119
      %p243 = scmp.lt.s32.totalorder %s17, 1
      %s244 = scalar_select %p243, %s17, 1
      %s245 = smul.addr %s244, 8
      %s246 = smul.addr %s245, 4
      %s247 = scalar_lea.vmem %s5, %s246
      %p248 = pneg %p148
      %p249 = pneg %p145
      %p250 = pneg %p174
      %p251 = pneg %p171
      %p252 = scmp.lt.s32.totalorder %s17, 1
      %s253 = scalar_select %p252, %s17, 1
      %s254 = smul.addr %s253, 8
      %s255 = smul.addr %s254, 8
      %s256 = scalar_lea.vmem %s6, %s255
      %p257 = scmp.lt.s32.totalorder %s17, 1
      %s258 = scalar_select %p257, %s17, 1
      %s259 = smul.addr %s258, 8
      %s260 = smul.addr %s259, 4
      %s261 = scalar_lea.vmem %s0, %s260
      %p262 = scmp.lt.s32.totalorder %s17, 1
      %s263 = scalar_select %p262, %s17, 1
      %s264 = smul.addr %s263, 8
      %s265 = smul.addr %s264, 4
      %s266 = scalar_lea.vmem %s5, %s265
      %p267 = scmp.lt.s32.totalorder %s17, 1
      %s268 = scalar_select %p267, %s17, 1
      %s269 = smul.addr %s268, 8
      %s270 = smul.addr %s269, 8
      %s271 = scalar_lea.vmem %s6, %s270
      %v273 = vld [vmem:[%s261] sm:$0xf]
      %v274 = vld [vmem:[%s261 + $0x4] sm:$0xf]
      %v275 = vld [vmem:[%s261 + $0x8] sm:$0xf]
      %v276 = vld [vmem:[%s261 + $0xc] sm:$0xf]
      %v277 = vld [vmem:[%s261 + $0x10] sm:$0xf]
      %v278 = vld [vmem:[%s261 + $0x14] sm:$0xf]
      %v279 = vld [vmem:[%s261 + $0x18] sm:$0xf]
      %v280 = vld [vmem:[%s261 + $0x1c] sm:$0xf]
      %v281 = vunpack.c.l.bf16 %v273
      %v282 = vunpack.c.l.bf16 %v274
      %v283 = vunpack.c.l.bf16 %v275
      %v284 = vunpack.c.l.bf16 %v276
      %v285 = vunpack.c.l.bf16 %v277
      %v286 = vunpack.c.l.bf16 %v278
      %v287 = vunpack.c.l.bf16 %v279
      %v288 = vunpack.c.l.bf16 %v280
      %v289 = vld [vmem:[%s1] sm:$0x1]
      %v291 = vlaneseq
      %v292 = vshrl.u32 %v291, 7
      %v293 = vsub.s32 0, %v292
      %v294 = vrot.slane %v289, %v293
      %v296 = vmul.f32 %v281, %v294
      %v297 = vmul.f32 %v282, %v294
      %v298 = vmul.f32 %v283, %v294
      %v299 = vmul.f32 %v284, %v294
      %v300 = vmul.f32 %v285, %v294
      %v301 = vmul.f32 %v286, %v294
      %v302 = vmul.f32 %v287, %v294
      %v303 = vmul.f32 %v288, %v294
      %v304 = vld [vmem:[%s2] sm:$0x1]
      %v306 = vlaneseq
      %v307 = vshrl.u32 %v306, 7
      %v308 = vsub.s32 0, %v307
      %v309 = vrot.slane %v304, %v308
      %v311 = vadd.f32 %v296, %v309
      %v312 = vadd.f32 %v297, %v309
      %v313 = vadd.f32 %v298, %v309
      %v314 = vadd.f32 %v299, %v309
      %v315 = vadd.f32 %v300, %v309
      %v316 = vadd.f32 %v301, %v309
      %v317 = vadd.f32 %v302, %v309
      %v318 = vadd.f32 %v303, %v309
      %v319 = vmax.f32 %v311, 0.0
      %v320 = vmax.f32 %v312, 0.0
      %v321 = vmax.f32 %v313, 0.0
      %v322 = vmax.f32 %v314, 0.0
      %v323 = vmax.f32 %v315, 0.0
      %v324 = vmax.f32 %v316, 0.0
      %v325 = vmax.f32 %v317, 0.0
      %v326 = vmax.f32 %v318, 0.0
      %vm327 = vcmask 64512
      %328 = vst.msk [vmem:[#allocation2] sm:$0xff] %vm327, 0.0
      %vm329 = vcmask 58368
      %330 = vst.msk [vmem:[#allocation2 + $0x8] sm:$0x3] %vm329, 0.0
      %s331 = scalar_lea.vmem [#allocation2], 144
      %332 = vst.msk [vmem:[%s331] sm:$0xff] %vm327, 0.0
      %333 = vst.msk [vmem:[%s331 + $0x8] sm:$0x3] %vm329, 0.0
      %vm334 = vcmask 57344
      %335 = vst.msk [vmem:[#allocation2] sm:$0x1] %vm334, 0.0
      %336 = vst.msk [vmem:[#allocation2 + $0x10] sm:$0x1] %vm334, 0.0
      %337 = vst.msk [vmem:[#allocation2 + $0x20] sm:$0x1] %vm334, 0.0
      %338 = vst.msk [vmem:[#allocation2 + $0x30] sm:$0x1] %vm334, 0.0
      %339 = vst.msk [vmem:[#allocation2 + $0x40] sm:$0x1] %vm334, 0.0
      %340 = vst.msk [vmem:[#allocation2 + $0x50] sm:$0x1] %vm334, 0.0
      %341 = vst.msk [vmem:[#allocation2 + $0x60] sm:$0x1] %vm334, 0.0
      %342 = vst.msk [vmem:[#allocation2 + $0x70] sm:$0x1] %vm334, 0.0
      %343 = vst.msk [vmem:[#allocation2 + $0x80] sm:$0x1] %vm334, 0.0
      %344 = vst.msk [vmem:[#allocation2 + $0x90] sm:$0x1] %vm334, 0.0
      %345 = vst.msk [vmem:[#allocation2 + $0x9] sm:$0x1] %vm334, 0.0
      %346 = vst.msk [vmem:[#allocation2 + $0x19] sm:$0x1] %vm334, 0.0
      %347 = vst.msk [vmem:[#allocation2 + $0x29] sm:$0x1] %vm334, 0.0
      %348 = vst.msk [vmem:[#allocation2 + $0x39] sm:$0x1] %vm334, 0.0
      %349 = vst.msk [vmem:[#allocation2 + $0x49] sm:$0x1] %vm334, 0.0
      %350 = vst.msk [vmem:[#allocation2 + $0x59] sm:$0x1] %vm334, 0.0
      %351 = vst.msk [vmem:[#allocation2 + $0x69] sm:$0x1] %vm334, 0.0
      %352 = vst.msk [vmem:[#allocation2 + $0x79] sm:$0x1] %vm334, 0.0
      %353 = vst.msk [vmem:[#allocation2 + $0x89] sm:$0x1] %vm334, 0.0
      %354 = vst.msk [vmem:[#allocation2 + $0x99] sm:$0x1] %vm334, 0.0
      %s355 = scalar_lea.vmem [#allocation2], 16
      %356 = vst.msk [vmem:[%s355 + $0x1] sm:$0xff] %vm327, %v319
      %357 = vst.msk [vmem:[%s355 + $0x11] sm:$0xff] %vm327, %v320
      %358 = vst.msk [vmem:[%s355 + $0x21] sm:$0xff] %vm327, %v321
      %359 = vst.msk [vmem:[%s355 + $0x31] sm:$0xff] %vm327, %v322
      %360 = vst.msk [vmem:[%s355 + $0x41] sm:$0xff] %vm327, %v323
      %361 = vst.msk [vmem:[%s355 + $0x51] sm:$0xff] %vm327, %v324
      %362 = vst.msk [vmem:[%s355 + $0x61] sm:$0xff] %vm327, %v325
      %363 = vst.msk [vmem:[%s355 + $0x71] sm:$0xff] %vm327, %v326
      %v364 = vld [vmem:[#allocation2] sm:$0xff]
      %v365 = vld [vmem:[#allocation2 + $0x8] sm:$0x3]
      %v366 = vld [vmem:[#allocation2 + $0x10] sm:$0xff]
      %v367 = vld [vmem:[#allocation2 + $0x18] sm:$0x3]
      %v368 = vld [vmem:[#allocation2 + $0x20] sm:$0xff]
      %v369 = vld [vmem:[#allocation2 + $0x28] sm:$0x3]
      %v370 = vld [vmem:[#allocation2 + $0x30] sm:$0xff]
      %v371 = vld [vmem:[#allocation2 + $0x38] sm:$0x3]
      %v372 = vld [vmem:[#allocation2 + $0x40] sm:$0xff]
      %v373 = vld [vmem:[#allocation2 + $0x48] sm:$0x3]
      %v374 = vld [vmem:[#allocation2 + $0x50] sm:$0xff]
      %v375 = vld [vmem:[#allocation2 + $0x58] sm:$0x3]
      %v376 = vld [vmem:[#allocation2 + $0x60] sm:$0xff]
      %v377 = vld [vmem:[#allocation2 + $0x68] sm:$0x3]
      %v378 = vld [vmem:[#allocation2 + $0x70] sm:$0xff]
      %v379 = vld [vmem:[#allocation2 + $0x78] sm:$0x3]
      %vm396 = vcmask 1046528
      %v397 = vrot.slane %v364, 1
      %v398 = vrot.slane %v365, 1
      %v399 = vsel %vm396, %v397, %v398
      %v400 = vrot.slane %v366, 1
      %v401 = vrot.slane %v367, 1
      %v402 = vsel %vm396, %v400, %v401
      %v403 = vrot.slane %v368, 1
      %v404 = vrot.slane %v369, 1
      %v405 = vsel %vm396, %v403, %v404
      %v406 = vrot.slane %v370, 1
      %v407 = vrot.slane %v371, 1
      %v408 = vsel %vm396, %v406, %v407
      %v409 = vrot.slane %v372, 1
      %v410 = vrot.slane %v373, 1
      %v411 = vsel %vm396, %v409, %v410
      %v412 = vrot.slane %v374, 1
      %v413 = vrot.slane %v375, 1
      %v414 = vsel %vm396, %v412, %v413
      %v415 = vrot.slane %v376, 1
      %v416 = vrot.slane %v377, 1
      %v417 = vsel %vm396, %v415, %v416
      %v418 = vrot.slane %v378, 1
      %v419 = vrot.slane %v379, 1
      %v420 = vsel %vm396, %v418, %v419
      %421 = vrot.lane.b32.xlu0 %v399, 8
      %v422 = vpop.permute.xlu0 %421
      %423 = vrot.lane.b32.xlu0 %v402, 8
      %v424 = vpop.permute.xlu0 %423
      %425 = vrot.lane.b32.xlu0 %v405, 8
      %v426 = vpop.permute.xlu0 %425
      %427 = vrot.lane.b32.xlu0 %v408, 8
      %v428 = vpop.permute.xlu0 %427
      %429 = vrot.lane.b32.xlu0 %v411, 8
      %v430 = vpop.permute.xlu0 %429
      %431 = vrot.lane.b32.xlu0 %v414, 8
      %v432 = vpop.permute.xlu0 %431
      %433 = vrot.lane.b32.xlu0 %v417, 8
      %v434 = vpop.permute.xlu0 %433
      %435 = vrot.lane.b32.xlu0 %v420, 8
      %v436 = vpop.permute.xlu0 %435
      %vm445 = vcmask 1045504
      %v446 = vrot.slane %v364, 2
      %v447 = vrot.slane %v365, 2
      %v448 = vsel %vm445, %v446, %v447
      %v449 = vrot.slane %v366, 2
      %v450 = vrot.slane %v367, 2
      %v451 = vsel %vm445, %v449, %v450
      %v452 = vrot.slane %v368, 2
      %v453 = vrot.slane %v369, 2
      %v454 = vsel %vm445, %v452, %v453
      %v455 = vrot.slane %v370, 2
      %v456 = vrot.slane %v371, 2
      %v457 = vsel %vm445, %v455, %v456
      %v458 = vrot.slane %v372, 2
      %v459 = vrot.slane %v373, 2
      %v460 = vsel %vm445, %v458, %v459
      %v461 = vrot.slane %v374, 2
      %v462 = vrot.slane %v375, 2
      %v463 = vsel %vm445, %v461, %v462
      %v464 = vrot.slane %v376, 2
      %v465 = vrot.slane %v377, 2
      %v466 = vsel %vm445, %v464, %v465
      %v467 = vrot.slane %v378, 2
      %v468 = vrot.slane %v379, 2
      %v469 = vsel %vm445, %v467, %v468
      %470 = vrot.lane.b32.xlu0 %v448, 16
      %v471 = vpop.permute.xlu0 %470
      %472 = vrot.lane.b32.xlu0 %v451, 16
      %v473 = vpop.permute.xlu0 %472
      %474 = vrot.lane.b32.xlu0 %v454, 16
      %v475 = vpop.permute.xlu0 %474
      %476 = vrot.lane.b32.xlu0 %v457, 16
      %v477 = vpop.permute.xlu0 %476
      %478 = vrot.lane.b32.xlu0 %v460, 16
      %v479 = vpop.permute.xlu0 %478
      %480 = vrot.lane.b32.xlu0 %v463, 16
      %v481 = vpop.permute.xlu0 %480
      %482 = vrot.lane.b32.xlu0 %v466, 16
      %v483 = vpop.permute.xlu0 %482
      %484 = vrot.lane.b32.xlu0 %v469, 16
      %v485 = vpop.permute.xlu0 %484
      %v494 = vsel %vm327, %v364, %v422
      %v495 = vsel %vm327, %v366, %v424
      %v496 = vsel %vm327, %v368, %v426
      %v497 = vsel %vm327, %v370, %v428
      %v498 = vsel %vm327, %v372, %v430
      %v499 = vsel %vm327, %v374, %v432
      %v500 = vsel %vm327, %v376, %v434
      %v501 = vsel %vm327, %v378, %v436
      %vm502 = vcmask 130048
      %v503 = vsel %vm502, %v494, %v471
      %v504 = vsel %vm502, %v495, %v473
      %v505 = vsel %vm502, %v496, %v475
      %v506 = vsel %vm502, %v497, %v477
      %v507 = vsel %vm502, %v498, %v479
      %v508 = vsel %vm502, %v499, %v481
      %v509 = vsel %vm502, %v500, %v483
      %v510 = vsel %vm502, %v501, %v485
      %v511 = vpack.c.bf16 %v504, %v503
      %v512 = vpack.c.bf16 %v506, %v505
      %v513 = vpack.c.bf16 %v508, %v507
      %v514 = vpack.c.bf16 %v510, %v509
      %v515 = vld [vmem:[%s3] sm:$0xf]
      %v516 = vld [vmem:[%s3 + $0x4] sm:$0xf]
      %v517 = vld [vmem:[%s3 + $0x8] sm:$0xf]
      %v518 = vld [vmem:[%s355] sm:$0xff]
      %v519 = vld [vmem:[%s355 + $0x8] sm:$0x3]
      %v520 = vld [vmem:[%s355 + $0x10] sm:$0xff]
      %v521 = vld [vmem:[%s355 + $0x18] sm:$0x3]
      %v522 = vld [vmem:[%s355 + $0x20] sm:$0xff]
      %v523 = vld [vmem:[%s355 + $0x28] sm:$0x3]
      %v524 = vld [vmem:[%s355 + $0x30] sm:$0xff]
      %v525 = vld [vmem:[%s355 + $0x38] sm:$0x3]
      %v526 = vld [vmem:[%s355 + $0x40] sm:$0xff]
      %v527 = vld [vmem:[%s355 + $0x48] sm:$0x3]
      %v528 = vld [vmem:[%s355 + $0x50] sm:$0xff]
      %v529 = vld [vmem:[%s355 + $0x58] sm:$0x3]
      %v530 = vld [vmem:[%s355 + $0x60] sm:$0xff]
      %v531 = vld [vmem:[%s355 + $0x68] sm:$0x3]
      %v532 = vld [vmem:[%s355 + $0x70] sm:$0xff]
      %v533 = vld [vmem:[%s355 + $0x78] sm:$0x3]
      %v550 = vrot.slane %v518, 1
      %v551 = vrot.slane %v519, 1
      %v552 = vsel %vm396, %v550, %v551
      %v553 = vrot.slane %v520, 1
      %v554 = vrot.slane %v521, 1
      %v555 = vsel %vm396, %v553, %v554
      %v556 = vrot.slane %v522, 1
      %v557 = vrot.slane %v523, 1
      %v558 = vsel %vm396, %v556, %v557
      %v559 = vrot.slane %v524, 1
      %v560 = vrot.slane %v525, 1
      %v561 = vsel %vm396, %v559, %v560
      %v562 = vrot.slane %v526, 1
      %v563 = vrot.slane %v527, 1
      %v564 = vsel %vm396, %v562, %v563
      %v565 = vrot.slane %v528, 1
      %v566 = vrot.slane %v529, 1
      %v567 = vsel %vm396, %v565, %v566
      %v568 = vrot.slane %v530, 1
      %v569 = vrot.slane %v531, 1
      %v570 = vsel %vm396, %v568, %v569
      %v571 = vrot.slane %v532, 1
      %v572 = vrot.slane %v533, 1
      %v573 = vsel %vm396, %v571, %v572
      %574 = vrot.lane.b32.xlu0 %v552, 8
      %v575 = vpop.permute.xlu0 %574
      %576 = vrot.lane.b32.xlu0 %v555, 8
      %v577 = vpop.permute.xlu0 %576
      %578 = vrot.lane.b32.xlu0 %v558, 8
      %v579 = vpop.permute.xlu0 %578
      %580 = vrot.lane.b32.xlu0 %v561, 8
      %v581 = vpop.permute.xlu0 %580
      %582 = vrot.lane.b32.xlu0 %v564, 8
      %v583 = vpop.permute.xlu0 %582
      %584 = vrot.lane.b32.xlu0 %v567, 8
      %v585 = vpop.permute.xlu0 %584
      %586 = vrot.lane.b32.xlu0 %v570, 8
      %v587 = vpop.permute.xlu0 %586
      %588 = vrot.lane.b32.xlu0 %v573, 8
      %v589 = vpop.permute.xlu0 %588
      %v598 = vrot.slane %v518, 2
      %v599 = vrot.slane %v519, 2
      %v600 = vsel %vm445, %v598, %v599
      %v601 = vrot.slane %v520, 2
      %v602 = vrot.slane %v521, 2
      %v603 = vsel %vm445, %v601, %v602
      %v604 = vrot.slane %v522, 2
      %v605 = vrot.slane %v523, 2
      %v606 = vsel %vm445, %v604, %v605
      %v607 = vrot.slane %v524, 2
      %v608 = vrot.slane %v525, 2
      %v609 = vsel %vm445, %v607, %v608
      %v610 = vrot.slane %v526, 2
      %v611 = vrot.slane %v527, 2
      %v612 = vsel %vm445, %v610, %v611
      %v613 = vrot.slane %v528, 2
      %v614 = vrot.slane %v529, 2
      %v615 = vsel %vm445, %v613, %v614
      %v616 = vrot.slane %v530, 2
      %v617 = vrot.slane %v531, 2
      %v618 = vsel %vm445, %v616, %v617
      %v619 = vrot.slane %v532, 2
      %v620 = vrot.slane %v533, 2
      %v621 = vsel %vm445, %v619, %v620
      %622 = vrot.lane.b32.xlu0 %v600, 16
      %v623 = vpop.permute.xlu0 %622
      %624 = vrot.lane.b32.xlu0 %v603, 16
      %v625 = vpop.permute.xlu0 %624
      %626 = vrot.lane.b32.xlu0 %v606, 16
      %v627 = vpop.permute.xlu0 %626
      %628 = vrot.lane.b32.xlu0 %v609, 16
      %v629 = vpop.permute.xlu0 %628
      %630 = vrot.lane.b32.xlu0 %v612, 16
      %v631 = vpop.permute.xlu0 %630
      %632 = vrot.lane.b32.xlu0 %v615, 16
      %v633 = vpop.permute.xlu0 %632
      %634 = vrot.lane.b32.xlu0 %v618, 16
      %v635 = vpop.permute.xlu0 %634
      %636 = vrot.lane.b32.xlu0 %v621, 16
      %v637 = vpop.permute.xlu0 %636
      %v646 = vsel %vm327, %v518, %v575
      %v647 = vsel %vm327, %v520, %v577
      %v648 = vsel %vm327, %v522, %v579
      %v649 = vsel %vm327, %v524, %v581
      %v650 = vsel %vm327, %v526, %v583
      %v651 = vsel %vm327, %v528, %v585
      %v652 = vsel %vm327, %v530, %v587
      %v653 = vsel %vm327, %v532, %v589
      %v654 = vsel %vm502, %v646, %v623
      %v655 = vsel %vm502, %v647, %v625
      %v656 = vsel %vm502, %v648, %v627
      %v657 = vsel %vm502, %v649, %v629
      %v658 = vsel %vm502, %v650, %v631
      %v659 = vsel %vm502, %v651, %v633
      %v660 = vsel %vm502, %v652, %v635
      %v661 = vsel %vm502, %v653, %v637
      %v662 = vpack.c.bf16 %v655, %v654
      %v663 = vpack.c.bf16 %v657, %v656
      %v664 = vpack.c.bf16 %v659, %v658
      %v665 = vpack.c.bf16 %v661, %v660
      %s666 = scalar_lea.vmem %s3, 12
      %v667 = vld [vmem:[%s666] sm:$0xf]
      %v668 = vld [vmem:[%s666 + $0x4] sm:$0xf]
      %v669 = vld [vmem:[%s666 + $0x8] sm:$0xf]
      %v673 = vunpack.c.l.b16 %v667
      %v674 = vunpack.c.l.b16 %v668
      %v675 = vunpack.c.l.b16 %v669
      %v676 = vpack.c.b16 %v674, %v673
      %v677 = vpack.c.b16 %v675, %v675
      %vm679 = vcmask 195584
      %v681 = vsel %vm679, %v662, 0
      %v684 = vsel %vm679, %v663, 0
      %v687 = vsel %vm679, %v664, 0
      %v690 = vsel %vm679, %v665, 0
      %vm692 = vcmask 1043456
      %v694 = vsel %vm692, %v677, 0
      %696 = vmatprep.subr.bf16.mxu0 0
      %697 = vmatpush1.bf16.msra.mxu0 %v676
      %698 = vmatprep.subr.bf16.mxu0 0
      %699 = vmatpush1.bf16.msra.mxu0 %v694
      %700 = vmatprep.subr.bf16.mxu0 0
      %701 = vmatpush1.bf16.msra.mxu0 0
      %702 = vmatprep.subr.bf16.mxu0 0
      %703 = vmatpush1.bf16.msra.mxu0 0
      %704 = vmatprep.subr.bf16.mxu0 0
      %705 = vmatpush1.bf16.msra.mxu0 0
      %706 = vmatprep.subr.bf16.mxu0 0
      %707 = vmatpush1.bf16.msra.mxu0 0
      %708 = vmatprep.subr.bf16.mxu0 0
      %709 = vmatpush1.bf16.msra.mxu0 0
      %710 = vmatprep.subr.bf16.mxu0 0
      %711 = vmatpush1.bf16.msra.mxu0 0
      %712 = vmatprep.subr.bf16.mxu0 0
      %713 = vmatpush1.bf16.msra.mxu0 0
      %714 = vmatprep.subr.bf16.mxu0 0
      %715 = vmatpush1.bf16.msra.mxu0 0
      %716 = vmatprep.subr.bf16.mxu0 0
      %717 = vmatpush1.bf16.msra.mxu0 0
      %718 = vmatprep.subr.bf16.mxu0 0
      %719 = vmatpush1.bf16.msra.mxu0 0
      %720 = vmatprep.subr.bf16.mxu0 0
      %721 = vmatpush1.bf16.msra.mxu0 0
      %722 = vmatprep.subr.bf16.mxu0 0
      %723 = vmatpush1.bf16.msra.mxu0 0
      %724 = vmatprep.subr.bf16.mxu0 0
      %725 = vmatpush1.bf16.msra.mxu0 0
      %726 = vmatprep.subr.bf16.mxu0 0
      %727 = vmatpush1.bf16.msra.mxu0 0
      %728 = vmatprep.mubr.bf16.mxu0 0
      %729 = vmatmul.mubr.bf16.gmra.mrb[0].mxu0 %v681
      %v730 = vpop.f32.mrb[0].mxu0
      %v731 = vadd.f32 0.0, %v730
      %v732 = vpop.f32.mrb[0].mxu0
      %v733 = vpop.f32.mrb[0].mxu0
      %v734 = vadd.f32 0.0, %v733
      %v735 = vpop.f32.mrb[0].mxu0
      %736 = vmatprep.mubr.bf16.mxu0 0
      %737 = vmatmul.mubr.bf16.gmra.mrb[0].mxu0 %v684
      %v738 = vpop.f32.mrb[0].mxu0
      %v739 = vadd.f32 0.0, %v738
      %v740 = vpop.f32.mrb[0].mxu0
      %v741 = vpop.f32.mrb[0].mxu0
      %v742 = vadd.f32 0.0, %v741
      %v743 = vpop.f32.mrb[0].mxu0
      %744 = vmatprep.mubr.bf16.mxu0 0
      %745 = vmatmul.mubr.bf16.gmra.mrb[0].mxu0 %v687
      %v746 = vpop.f32.mrb[0].mxu0
      %v747 = vadd.f32 0.0, %v746
      %v748 = vpop.f32.mrb[0].mxu0
      %v749 = vpop.f32.mrb[0].mxu0
      %v750 = vadd.f32 0.0, %v749
      %v751 = vpop.f32.mrb[0].mxu0
      %752 = vmatprep.mubr.bf16.mxu0 0
      %753 = vmatmul.mubr.bf16.gmra.mrb[0].mxu0 %v690
      %v754 = vpop.f32.mrb[0].mxu0
      %v755 = vadd.f32 0.0, %v754
      %v756 = vpop.f32.mrb[0].mxu0
      %v757 = vpop.f32.mrb[0].mxu0
      %v758 = vadd.f32 0.0, %v757
      %v759 = vpop.f32.mrb[0].mxu0
      %760 = vdwg.mxu0
      %v764 = vunpack.c.l.b16 %v515
      %v765 = vunpack.c.l.b16 %v516
      %v766 = vunpack.c.l.b16 %v517
      %v767 = vpack.c.b16 %v765, %v764
      %v768 = vpack.c.b16 %v766, %v766
      %v771 = vsel %vm679, %v511, 0
      %v774 = vsel %vm679, %v512, 0
      %v777 = vsel %vm679, %v513, 0
      %v780 = vsel %vm679, %v514, 0
      %v783 = vsel %vm692, %v768, 0
      %785 = vmatprep.subr.bf16.mxu0 0
      %786 = vmatpush1.bf16.msra.mxu0 %v767
      %787 = vmatprep.subr.bf16.mxu0 0
      %788 = vmatpush1.bf16.msra.mxu0 %v783
      %789 = vmatprep.subr.bf16.mxu0 0
      %790 = vmatpush1.bf16.msra.mxu0 0
      %791 = vmatprep.subr.bf16.mxu0 0
      %792 = vmatpush1.bf16.msra.mxu0 0
      %793 = vmatprep.subr.bf16.mxu0 0
      %794 = vmatpush1.bf16.msra.mxu0 0
      %795 = vmatprep.subr.bf16.mxu0 0
      %796 = vmatpush1.bf16.msra.mxu0 0
      %797 = vmatprep.subr.bf16.mxu0 0
      %798 = vmatpush1.bf16.msra.mxu0 0
      %799 = vmatprep.subr.bf16.mxu0 0
      %800 = vmatpush1.bf16.msra.mxu0 0
      %801 = vmatprep.subr.bf16.mxu0 0
      %802 = vmatpush1.bf16.msra.mxu0 0
      %803 = vmatprep.subr.bf16.mxu0 0
      %804 = vmatpush1.bf16.msra.mxu0 0
      %805 = vmatprep.subr.bf16.mxu0 0
      %806 = vmatpush1.bf16.msra.mxu0 0
      %807 = vmatprep.subr.bf16.mxu0 0
      %808 = vmatpush1.bf16.msra.mxu0 0
      %809 = vmatprep.subr.bf16.mxu0 0
      %810 = vmatpush1.bf16.msra.mxu0 0
      %811 = vmatprep.subr.bf16.mxu0 0
      %812 = vmatpush1.bf16.msra.mxu0 0
      %813 = vmatprep.subr.bf16.mxu0 0
      %814 = vmatpush1.bf16.msra.mxu0 0
      %815 = vmatprep.subr.bf16.mxu0 0
      %816 = vmatpush1.bf16.msra.mxu0 0
      %817 = vmatprep.mubr.bf16.mxu0 0
      %818 = vmatmul.mubr.bf16.gmra.mrb[0].mxu0 %v771
      %v819 = vpop.f32.mrb[0].mxu0
      %v820 = vadd.f32 %v731, %v819
      %v821 = vpop.f32.mrb[0].mxu0
      %v822 = vpop.f32.mrb[0].mxu0
      %v823 = vadd.f32 %v734, %v822
      %v824 = vpop.f32.mrb[0].mxu0
      %825 = vmatprep.mubr.bf16.mxu0 0
      %826 = vmatmul.mubr.bf16.gmra.mrb[0].mxu0 %v774
      %v827 = vpop.f32.mrb[0].mxu0
      %v828 = vadd.f32 %v739, %v827
      %v829 = vpop.f32.mrb[0].mxu0
      %v830 = vpop.f32.mrb[0].mxu0
      %v831 = vadd.f32 %v742, %v830
      %v832 = vpop.f32.mrb[0].mxu0
      %833 = vmatprep.mubr.bf16.mxu0 0
      %834 = vmatmul.mubr.bf16.gmra.mrb[0].mxu0 %v777
      %v835 = vpop.f32.mrb[0].mxu0
      %v836 = vadd.f32 %v747, %v835
      %v837 = vpop.f32.mrb[0].mxu0
      %v838 = vpop.f32.mrb[0].mxu0
      %v839 = vadd.f32 %v750, %v838
      %v840 = vpop.f32.mrb[0].mxu0
      %841 = vmatprep.mubr.bf16.mxu0 0
      %842 = vmatmul.mubr.bf16.gmra.mrb[0].mxu0 %v780
      %v843 = vpop.f32.mrb[0].mxu0
      %v844 = vadd.f32 %v755, %v843
      %v845 = vpop.f32.mrb[0].mxu0
      %v846 = vpop.f32.mrb[0].mxu0
      %v847 = vadd.f32 %v758, %v846
      %v848 = vpop.f32.mrb[0].mxu0
      %849 = vdwg.mxu0
      %s850 = scalar_lea.vmem [#allocation2], 32
      %v851 = vld [vmem:[%s850] sm:$0xff]
      %v852 = vld [vmem:[%s850 + $0x8] sm:$0x3]
      %v853 = vld [vmem:[%s850 + $0x10] sm:$0xff]
      %v854 = vld [vmem:[%s850 + $0x18] sm:$0x3]
      %v855 = vld [vmem:[%s850 + $0x20] sm:$0xff]
      %v856 = vld [vmem:[%s850 + $0x28] sm:$0x3]
      %v857 = vld [vmem:[%s850 + $0x30] sm:$0xff]
      %v858 = vld [vmem:[%s850 + $0x38] sm:$0x3]
      %v859 = vld [vmem:[%s850 + $0x40] sm:$0xff]
      %v860 = vld [vmem:[%s850 + $0x48] sm:$0x3]
      %v861 = vld [vmem:[%s850 + $0x50] sm:$0xff]
      %v862 = vld [vmem:[%s850 + $0x58] sm:$0x3]
      %v863 = vld [vmem:[%s850 + $0x60] sm:$0xff]
      %v864 = vld [vmem:[%s850 + $0x68] sm:$0x3]
      %v865 = vld [vmem:[%s850 + $0x70] sm:$0xff]
      %v866 = vld [vmem:[%s850 + $0x78] sm:$0x3]
      %v883 = vrot.slane %v851, 1
      %v884 = vrot.slane %v852, 1
      %v885 = vsel %vm396, %v883, %v884
      %v886 = vrot.slane %v853, 1
      %v887 = vrot.slane %v854, 1
      %v888 = vsel %vm396, %v886, %v887
      %v889 = vrot.slane %v855, 1
      %v890 = vrot.slane %v856, 1
      %v891 = vsel %vm396, %v889, %v890
      %v892 = vrot.slane %v857, 1
      %v893 = vrot.slane %v858, 1
      %v894 = vsel %vm396, %v892, %v893
      %v895 = vrot.slane %v859, 1
      %v896 = vrot.slane %v860, 1
      %v897 = vsel %vm396, %v895, %v896
      %v898 = vrot.slane %v861, 1
      %v899 = vrot.slane %v862, 1
      %v900 = vsel %vm396, %v898, %v899
      %v901 = vrot.slane %v863, 1
      %v902 = vrot.slane %v864, 1
      %v903 = vsel %vm396, %v901, %v902
      %v904 = vrot.slane %v865, 1
      %v905 = vrot.slane %v866, 1
      %v906 = vsel %vm396, %v904, %v905
      %907 = vrot.lane.b32.xlu0 %v885, 8
      %v908 = vpop.permute.xlu0 %907
      %909 = vrot.lane.b32.xlu0 %v888, 8
      %v910 = vpop.permute.xlu0 %909
      %911 = vrot.lane.b32.xlu0 %v891, 8
      %v912 = vpop.permute.xlu0 %911
      %913 = vrot.lane.b32.xlu0 %v894, 8
      %v914 = vpop.permute.xlu0 %913
      %915 = vrot.lane.b32.xlu0 %v897, 8
      %v916 = vpop.permute.xlu0 %915
      %917 = vrot.lane.b32.xlu0 %v900, 8
      %v918 = vpop.permute.xlu0 %917
      %919 = vrot.lane.b32.xlu0 %v903, 8
      %v920 = vpop.permute.xlu0 %919
      %921 = vrot.lane.b32.xlu0 %v906, 8
      %v922 = vpop.permute.xlu0 %921
      %v931 = vrot.slane %v851, 2
      %v932 = vrot.slane %v852, 2
      %v933 = vsel %vm445, %v931, %v932
      %v934 = vrot.slane %v853, 2
      %v935 = vrot.slane %v854, 2
      %v936 = vsel %vm445, %v934, %v935
      %v937 = vrot.slane %v855, 2
      %v938 = vrot.slane %v856, 2
      %v939 = vsel %vm445, %v937, %v938
      %v940 = vrot.slane %v857, 2
      %v941 = vrot.slane %v858, 2
      %v942 = vsel %vm445, %v940, %v941
      %v943 = vrot.slane %v859, 2
      %v944 = vrot.slane %v860, 2
      %v945 = vsel %vm445, %v943, %v944
      %v946 = vrot.slane %v861, 2
      %v947 = vrot.slane %v862, 2
      %v948 = vsel %vm445, %v946, %v947
      %v949 = vrot.slane %v863, 2
      %v950 = vrot.slane %v864, 2
      %v951 = vsel %vm445, %v949, %v950
      %v952 = vrot.slane %v865, 2
      %v953 = vrot.slane %v866, 2
      %v954 = vsel %vm445, %v952, %v953
      %955 = vrot.lane.b32.xlu0 %v933, 16
      %v956 = vpop.permute.xlu0 %955
      %957 = vrot.lane.b32.xlu0 %v936, 16
      %v958 = vpop.permute.xlu0 %957
      %959 = vrot.lane.b32.xlu0 %v939, 16
      %v960 = vpop.permute.xlu0 %959
      %961 = vrot.lane.b32.xlu0 %v942, 16
      %v962 = vpop.permute.xlu0 %961
      %963 = vrot.lane.b32.xlu0 %v945, 16
      %v964 = vpop.permute.xlu0 %963
      %965 = vrot.lane.b32.xlu0 %v948, 16
      %v966 = vpop.permute.xlu0 %965
      %967 = vrot.lane.b32.xlu0 %v951, 16
      %v968 = vpop.permute.xlu0 %967
      %969 = vrot.lane.b32.xlu0 %v954, 16
      %v970 = vpop.permute.xlu0 %969
      %v979 = vsel %vm327, %v851, %v908
      %v980 = vsel %vm327, %v853, %v910
      %v981 = vsel %vm327, %v855, %v912
      %v982 = vsel %vm327, %v857, %v914
      %v983 = vsel %vm327, %v859, %v916
      %v984 = vsel %vm327, %v861, %v918
      %v985 = vsel %vm327, %v863, %v920
      %v986 = vsel %vm327, %v865, %v922
      %v987 = vsel %vm502, %v979, %v956
      %v988 = vsel %vm502, %v980, %v958
      %v989 = vsel %vm502, %v981, %v960
      %v990 = vsel %vm502, %v982, %v962
      %v991 = vsel %vm502, %v983, %v964
      %v992 = vsel %vm502, %v984, %v966
      %v993 = vsel %vm502, %v985, %v968
      %v994 = vsel %vm502, %v986, %v970
      %v995 = vpack.c.bf16 %v988, %v987
      %v996 = vpack.c.bf16 %v990, %v989
      %v997 = vpack.c.bf16 %v992, %v991
      %v998 = vpack.c.bf16 %v994, %v993
      %s999 = scalar_lea.vmem %s3, 24
      %v1000 = vld [vmem:[%s999] sm:$0xf]
      %v1001 = vld [vmem:[%s999 + $0x4] sm:$0xf]
      %v1002 = vld [vmem:[%s999 + $0x8] sm:$0xf]
      %v1006 = vunpack.c.l.b16 %v1000
      %v1007 = vunpack.c.l.b16 %v1001
      %v1008 = vunpack.c.l.b16 %v1002
      %v1009 = vpack.c.b16 %v1007, %v1006
      %v1010 = vpack.c.b16 %v1008, %v1008
      %v1013 = vsel %vm679, %v995, 0
      %v1016 = vsel %vm679, %v996, 0
      %v1019 = vsel %vm679, %v997, 0
      %v1022 = vsel %vm679, %v998, 0
      %v1025 = vsel %vm692, %v1010, 0
      %1027 = vmatprep.subr.bf16.mxu0 0
      %1028 = vmatpush1.bf16.msra.mxu0 %v1009
      %1029 = vmatprep.subr.bf16.mxu0 0
      %1030 = vmatpush1.bf16.msra.mxu0 %v1025
      %1031 = vmatprep.subr.bf16.mxu0 0
      %1032 = vmatpush1.bf16.msra.mxu0 0
      %1033 = vmatprep.subr.bf16.mxu0 0
      %1034 = vmatpush1.bf16.msra.mxu0 0
      %1035 = vmatprep.subr.bf16.mxu0 0
      %1036 = vmatpush1.bf16.msra.mxu0 0
      %1037 = vmatprep.subr.bf16.mxu0 0
      %1038 = vmatpush1.bf16.msra.mxu0 0
      %1039 = vmatprep.subr.bf16.mxu0 0
      %1040 = vmatpush1.bf16.msra.mxu0 0
      %1041 = vmatprep.subr.bf16.mxu0 0
      %1042 = vmatpush1.bf16.msra.mxu0 0
      %1043 = vmatprep.subr.bf16.mxu0 0
      %1044 = vmatpush1.bf16.msra.mxu0 0
      %1045 = vmatprep.subr.bf16.mxu0 0
      %1046 = vmatpush1.bf16.msra.mxu0 0
      %1047 = vmatprep.subr.bf16.mxu0 0
      %1048 = vmatpush1.bf16.msra.mxu0 0
      %1049 = vmatprep.subr.bf16.mxu0 0
      %1050 = vmatpush1.bf16.msra.mxu0 0
      %1051 = vmatprep.subr.bf16.mxu0 0
      %1052 = vmatpush1.bf16.msra.mxu0 0
      %1053 = vmatprep.subr.bf16.mxu0 0
      %1054 = vmatpush1.bf16.msra.mxu0 0
      %1055 = vmatprep.subr.bf16.mxu0 0
      %1056 = vmatpush1.bf16.msra.mxu0 0
      %1057 = vmatprep.subr.bf16.mxu0 0
      %1058 = vmatpush1.bf16.msra.mxu0 0
      %1059 = vmatprep.mubr.bf16.mxu0 0
      %1060 = vmatmul.mubr.bf16.gmra.mrb[0].mxu0 %v1013
      %v1061 = vpop.f32.mrb[0].mxu0
      %v1062 = vadd.f32 0.0, %v1061
      %v1063 = vpop.f32.mrb[0].mxu0
      %v1064 = vpop.f32.mrb[0].mxu0
      %v1065 = vadd.f32 0.0, %v1064
      %v1066 = vpop.f32.mrb[0].mxu0
      %1067 = vmatprep.mubr.bf16.mxu0 0
      %1068 = vmatmul.mubr.bf16.gmra.mrb[0].mxu0 %v1016
      %v1069 = vpop.f32.mrb[0].mxu0
      %v1070 = vadd.f32 0.0, %v1069
      %v1071 = vpop.f32.mrb[0].mxu0
      %v1072 = vpop.f32.mrb[0].mxu0
      %v1073 = vadd.f32 0.0, %v1072
      %v1074 = vpop.f32.mrb[0].mxu0
      %1075 = vmatprep.mubr.bf16.mxu0 0
      %1076 = vmatmul.mubr.bf16.gmra.mrb[0].mxu0 %v1019
      %v1077 = vpop.f32.mrb[0].mxu0
      %v1078 = vadd.f32 0.0, %v1077
      %v1079 = vpop.f32.mrb[0].mxu0
      %v1080 = vpop.f32.mrb[0].mxu0
      %v1081 = vadd.f32 0.0, %v1080
      %v1082 = vpop.f32.mrb[0].mxu0
      %1083 = vmatprep.mubr.bf16.mxu0 0
      %1084 = vmatmul.mubr.bf16.gmra.mrb[0].mxu0 %v1022
      %v1085 = vpop.f32.mrb[0].mxu0
      %v1086 = vadd.f32 0.0, %v1085
      %v1087 = vpop.f32.mrb[0].mxu0
      %v1088 = vpop.f32.mrb[0].mxu0
      %v1089 = vadd.f32 0.0, %v1088
      %v1090 = vpop.f32.mrb[0].mxu0
      %1091 = vdwg.mxu0
      %v1092 = vadd.f32 %v820, %v1062
      %v1093 = vadd.f32 %v823, %v1065
      %v1094 = vadd.f32 %v828, %v1070
      %v1095 = vadd.f32 %v831, %v1073
      %v1096 = vadd.f32 %v836, %v1078
      %v1097 = vadd.f32 %v839, %v1081
      %v1098 = vadd.f32 %v844, %v1086
      %v1099 = vadd.f32 %v847, %v1089
      %v1100 = vld [vmem:[%s4] sm:$0x1]
      %v1102 = vlaneseq
      %v1103 = vshrl.u32 %v1102, 7
      %v1104 = vsub.s32 0, %v1103
      %v1105 = vrot.slane %v1100, %v1104
      %v1107 = vadd.f32 %v1092, %v1105
      %v1108 = vadd.f32 %v1093, %v1105
      %v1109 = vadd.f32 %v1094, %v1105
      %v1110 = vadd.f32 %v1095, %v1105
      %v1111 = vadd.f32 %v1096, %v1105
      %v1112 = vadd.f32 %v1097, %v1105
      %v1113 = vadd.f32 %v1098, %v1105
      %v1114 = vadd.f32 %v1099, %v1105
      %v1115 = vld [vmem:[%s266] sm:$0xf]
      %v1116 = vld [vmem:[%s266 + $0x4] sm:$0xf]
      %v1117 = vld [vmem:[%s266 + $0x8] sm:$0xf]
      %v1118 = vld [vmem:[%s266 + $0xc] sm:$0xf]
      %v1119 = vld [vmem:[%s266 + $0x10] sm:$0xf]
      %v1120 = vld [vmem:[%s266 + $0x14] sm:$0xf]
      %v1121 = vld [vmem:[%s266 + $0x18] sm:$0xf]
      %v1122 = vld [vmem:[%s266 + $0x1c] sm:$0xf]
      %v1123 = vunpack.c.l.bf16 %v1115
      %v1124 = vunpack.c.l.bf16 %v1116
      %v1125 = vunpack.c.l.bf16 %v1117
      %v1126 = vunpack.c.l.bf16 %v1118
      %v1127 = vunpack.c.l.bf16 %v1119
      %v1128 = vunpack.c.l.bf16 %v1120
      %v1129 = vunpack.c.l.bf16 %v1121
      %v1130 = vunpack.c.l.bf16 %v1122
      %v1131 = vadd.f32 %v1107, %v1123
      %v1132 = vadd.f32 %v1108, %v1124
      %v1133 = vadd.f32 %v1109, %v1125
      %v1134 = vadd.f32 %v1110, %v1126
      %v1135 = vadd.f32 %v1111, %v1127
      %v1136 = vadd.f32 %v1112, %v1128
      %v1137 = vadd.f32 %v1113, %v1129
      %v1138 = vadd.f32 %v1114, %v1130
      %1139 = vst.msk [vmem:[%s271] sm:$0xff] %vm327, %v1131
      %1140 = vst.msk [vmem:[%s271 + $0x8] sm:$0xff] %vm327, %v1132
      %1141 = vst.msk [vmem:[%s271 + $0x10] sm:$0xff] %vm327, %v1133
      %1142 = vst.msk [vmem:[%s271 + $0x18] sm:$0xff] %vm327, %v1134
      %1143 = vst.msk [vmem:[%s271 + $0x20] sm:$0xff] %vm327, %v1135
      %1144 = vst.msk [vmem:[%s271 + $0x28] sm:$0xff] %vm327, %v1136
      %1145 = vst.msk [vmem:[%s271 + $0x30] sm:$0xff] %vm327, %v1137
      %1146 = vst.msk [vmem:[%s271 + $0x38] sm:$0xff] %vm327, %v1138
      %p1147 = scmp.lt.s32.totalorder %s17, 1
      %s1148 = scalar_select %p1147, %s17, 1
      %s1149 = smul.addr %s1148, 8
      %s1150 = smul.addr %s1149, 8
      %s1151 = scalar_lea.vmem %s6, %s1150
      // Predicated region
      $region45: #{res_block_forward.3} parent=43 // pred_check
        %p1152 = pneg %p171
      $region46: #{res_block_forward.3} parent=43 // pred_check_branch
        %1154 = sbr.rel (%p1152) target = $region48
      $region47: #{res_block_forward.3} parent=43 // pred_region
        _
      $region48: #{res_block_forward.3} parent=43 // pred_fallthru
        _
    $region44: #{res_block_forward.3} parent=5 // pred_fallthru
      _
    %p1155 = scmp.le.s32.totalorder 2, %s12
    // Predicated region
    $region49: #{res_block_forward.3} parent=5 // pred_check
      %p1156 = pneg %p1155
    $region50: #{res_block_forward.3} parent=5 // pred_check_branch
      %1158 = sbr.rel (%p1156) target = $region52
    $region51: #{res_block_forward.3} parent=5 // pred_region
      %s1159 = ssub.s32 %s12, 2
      // Predicated region
      $region53: #{res_block_forward.3} parent=51 // pred_check
        %p1160 = pneg %p177
      $region54: #{res_block_forward.3} parent=51 // pred_check_branch
        %1162 = sbr.rel (%p1160) target = $region56
      $region55: #{res_block_forward.3} parent=51 // pred_region
        %p1163 = scmp.lt.s32.totalorder %s18, 1
        %s1164 = scalar_select %p1163, %s18, 1
        %s1165 = smul.addr %s1164, 8
        %s1166 = smul.addr %s1165, 8
        %s1167 = scalar_lea.vmem %s6, %s1166
      $region56: #{res_block_forward.3} parent=51 // pred_fallthru
        _
    $region52: #{res_block_forward.3} parent=5 // pred_fallthru
      _
  $region6: #{res_block_forward.3} parent=0 // loop_footer
    %s16 = sadd.s32 1, %s12
  $region7: #{res_block_forward.3} parent=0 // loop_footer_branch
    %11 = sbr.rel target = $region3
  $region8: #{res_block_forward.3} parent=0 // loop_exit
    _

</llo_original>
